<compile_context>
chip_gen: v6e
topology: v6e:2x2x1
jax: 0.10.0
libtpu: 0.0.40
codegen_flags: <defaults>
</compile_context>

<pallas_src>
import functools
import math

import jax
import jax.numpy as jnp
import numpy as np
from jax.experimental import pallas as pl
from jax.experimental.pallas import tpu as pltpu

_LANE = 128
_SUBLANE = 8
_LN_EPS = 1e-5                      # torch.nn.LayerNorm default


def _round_up(n, m):
    return ((n + m - 1) // m) * m


def _pad_rows(a, n_rows):
    pad = n_rows - a.shape[0]
    return a if pad == 0 else jnp.pad(a, ((0, pad), (0, 0)))


def _vmem_limit_bytes():
    """Generation-aware scoped-VMEM limit: ~7/8 of physical VMEM.
    v7x (64 MiB physical) -> 56 MiB; v5e/v6e (128 MiB) -> 112 MiB."""
    cap = 64 * 1024 * 1024
    try:
        info = pltpu.get_tpu_info()
        cap = int(getattr(info, "vmem_capacity_bytes", cap))
    except Exception:
        pass
    return max(32 * 1024 * 1024, cap - cap // 8)


def _const_spec(block_shape, index_map):
    """BlockSpec for constant-index blocks (weights/biases): single-buffered.
    Double-buffering a block that never changes only wastes VMEM."""
    try:
        return pl.BlockSpec(block_shape, index_map, pipeline_mode=pl.Buffered(1))
    except (AttributeError, TypeError, ValueError):   # older jax: no pipeline_mode
        return pl.BlockSpec(block_shape, index_map)


def _pick_row_tiling(n, max_tile, sub):
    """Row-tile size + padded row count. Prefer a divisor of n (no pad and no
    post-kernel slice); fall back to padding when only tiny divisors exist."""
    cap = max(sub, min(max_tile, _round_up(n, sub)))
    cap -= cap % sub
    cap = max(cap, sub)
    lo = max(sub, cap // 2)
    for t in range(cap, lo - 1, -sub):
        if n % t == 0:
            return t, n
    return cap, _round_up(n, cap)


def _heads_per_block(n_head, d_k, d_v):
    """Heads per K2 grid step: smallest group whose q/k and v widths are
    lane-dense (multiple of 128); otherwise all heads (block == full dim)."""
    for hpb in range(1, n_head + 1):
        if (n_head % hpb == 0 and (hpb * d_k) % _LANE == 0
                and (hpb * d_v) % _LANE == 0):
            return hpb
    return n_head


# --------------------------------------------------------------------------
# Kernels
# --------------------------------------------------------------------------

def _qkv_kernel(x_ref, wq_ref, wk_ref, wv_ref, bq_ref, bk_ref, bv_ref,
                q_ref, k_ref, v_ref):
    # One row tile of x, three matmuls, three native-layout outputs.
    x = x_ref[...]
    q_ref[...] = (jnp.dot(x, wq_ref[...], preferred_element_type=jnp.float32)
                  + bq_ref[...]).astype(q_ref.dtype)
    k_ref[...] = (jnp.dot(x, wk_ref[...], preferred_element_type=jnp.float32)
                  + bk_ref[...]).astype(k_ref.dtype)
    v_ref[...] = (jnp.dot(x, wv_ref[...], preferred_element_type=jnp.float32)
                  + bv_ref[...]).astype(v_ref.dtype)


def _attention_kernel(q_ref, k_ref, v_ref, m_ref, ctx_ref, attn_ref, *,
                      inv_temp, hpb, d_k, d_v):
    # q_ref/k_ref: [1, T, hpb*d_k]; v_ref: [1, T, hpb*d_v]
    # m_ref: [1, 1, T] key-pad mask (1.0 = masked key) or [1, T, T] dense mask.
    mask = m_ref[0]                                  # [1, T] or [T, T]
    ctx_parts = []
    for i in range(hpb):                             # static per-head loop
        q = q_ref[0, :, i * d_k:(i + 1) * d_k]
        k = k_ref[0, :, i * d_k:(i + 1) * d_k]
        v = v_ref[0, :, i * d_v:(i + 1) * d_v]
        # contract on d_k: MXU consumes the transposed operand via dim numbers,
        # no materialized k.T.
        s = jax.lax.dot_general(q, k, (((1,), (1,)), ((), ())),
                                preferred_element_type=jnp.float32) * inv_temp
        # matches torch masked_fill(mask, -inf); fully-masked rows -> NaN like torch.
        s = jnp.where(mask > 0.0, -jnp.inf, s)
        row_max = jnp.max(s, axis=-1, keepdims=True)
        p = jnp.exp(s - row_max)
        attn = p / jnp.sum(p, axis=-1, keepdims=True)
        attn_ref[i, 0] = attn.astype(attn_ref.dtype)
        ctx_parts.append(jnp.dot(attn.astype(v.dtype), v,
                                 preferred_element_type=jnp.float32))
    ctx = ctx_parts[0] if hpb == 1 else jnp.concatenate(ctx_parts, axis=-1)
    ctx_ref[0] = ctx.astype(ctx_ref.dtype)           # single lane-dense store


def _fc_add_ln_kernel(a_ref, r_ref, w_ref, b_ref, g_ref, beta_ref, m_ref, o_ref,
                      *, eps):
    # fc projection + residual + LayerNorm + non_pad_mask.
    y = jnp.dot(a_ref[...], w_ref[...], preferred_element_type=jnp.float32)
    y = y + b_ref[...] + r_ref[...].astype(jnp.float32)
    mu = jnp.mean(y, axis=-1, keepdims=True)
    d = y - mu
    var = jnp.mean(d * d, axis=-1, keepdims=True)
    y = d * jax.lax.rsqrt(var + eps)
    y = y * g_ref[...] + beta_ref[...]
    o_ref[...] = (y * m_ref[...]).astype(o_ref.dtype)


def _ffn_kernel(x_ref, w1_ref, b1_ref, w2_ref, b2_ref, g_ref, beta_ref, m_ref,
                o_ref, *, pad1, pad2, eps):
    # conv1d(k1, pad1) -> ReLU -> conv1d(k2, pad2) -> +residual -> LN -> *mask.
    # The conv halo is zero-padded here in VMEM (no wrapper-side HBM pad pass).
    x = x_ref[0]                                     # [T, d_model], compute dtype
    T, dm = x.shape
    k1 = w1_ref.shape[0]
    k2 = w2_ref.shape[0]
    d_inner = w1_ref.shape[2]

    if pad1 > 0:
        zpad = jnp.zeros((pad1, dm), dtype=x.dtype)
        xp = jnp.concatenate([zpad, x, zpad], axis=0)
    else:
        xp = x

    h = jnp.dot(xp[0:T, :], w1_ref[0], preferred_element_type=jnp.float32)
    for j in range(1, k1):                           # static unrolled tap loop
        h = h + jnp.dot(xp[j:j + T, :], w1_ref[j],
                        preferred_element_type=jnp.float32)
    h = jnp.maximum(h + b1_ref[...], 0.0)

    h = h.astype(w2_ref.dtype)
    if k2 == 1 and pad2 == 0:                        # FastSpeech default (9,1)/(4,0)
        y = jnp.dot(h, w2_ref[0], preferred_element_type=jnp.float32)
    else:                                            # generic second conv
        if pad2 > 0:
            zpad2 = jnp.zeros((pad2, d_inner), dtype=h.dtype)
            hp = jnp.concatenate([zpad2, h, zpad2], axis=0)
        else:
            hp = h
        y = jnp.dot(hp[0:T, :], w2_ref[0], preferred_element_type=jnp.float32)
        for j in range(1, k2):
            y = y + jnp.dot(hp[j:j + T, :], w2_ref[j],
                            preferred_element_type=jnp.float32)

    y = y + b2_ref[...] + x.astype(jnp.float32)      # residual (unmasked-pad free)
    mu = jnp.mean(y, axis=-1, keepdims=True)
    d = y - mu
    var = jnp.mean(d * d, axis=-1, keepdims=True)
    y = d * jax.lax.rsqrt(var + eps)
    y = y * g_ref[...] + beta_ref[...]
    o_ref[0] = (y * m_ref[0]).astype(o_ref.dtype)


# --------------------------------------------------------------------------
# Wrapper
# --------------------------------------------------------------------------

@functools.partial(jax.jit,
                   static_argnames=("n_head", "conv_padding", "tile_rows",
                                    "use_bf16"))
def fft_block_forward(x, non_pad_mask, slf_attn_mask, params, *, n_head,
                      conv_padding=(4, 0), tile_rows=None, use_bf16=False):
    """FFTBlock forward (dropout = identity / eval mode).

    x:             [B, T, d_model]
    non_pad_mask:  [B, T, 1]  (1.0 keep, 0.0 pad)
    slf_attn_mask: [B, T]  key-pad mask (1/True = masked key) -- preferred,
                   or [B, T, T] dense mask (torch masked_fill(mask, -inf)).
    Returns (enc_output [B, T, d_model], enc_slf_attn [n_head*B, T, T]).
    """
    B, T, d_model = x.shape
    H = n_head
    d_k = params["w_q"].shape[1] // H
    d_v = params["w_v"].shape[1] // H
    d_inner = params["w1"].shape[2]
    k1 = params["w1"].shape[0]
    k2 = params["w2"].shape[0]
    p1, p2 = conv_padding
    assert T + 2 * p1 - (k1 - 1) == T and T + 2 * p2 - (k2 - 1) == T, (
        "conv kernel/padding must preserve sequence length")

    out_dtype = x.dtype
    out_isz = jnp.dtype(out_dtype).itemsize
    f32 = jnp.float32
    cdt = jnp.bfloat16 if use_bf16 else x.dtype       # compute/storage dtype
    cdt_isz = jnp.dtype(cdt).itemsize
    sub = 16 if use_bf16 else _SUBLANE

    vmem_limit = _vmem_limit_bytes()
    if tile_rows is None:
        # bigger row tiles on 128-MiB-VMEM parts (v5e/v6e), smaller on v7x.
        tile_rows = 1024 if vmem_limit >= 96 * 1024 * 1024 else 512

    N = B * T
    tm, Np = _pick_row_tiling(N, tile_rows, sub)

    x2d_p = _pad_rows(x.reshape(N, d_model).astype(cdt), Np)
    npm2d_p = _pad_rows(non_pad_mask.reshape(N, 1).astype(f32), Np)

    hdk = H * d_k
    hdv = H * d_v

    # ---- K1: QKV projection, native [N, H*d] outputs (no later transposes) ----
    wq = params["w_q"].astype(cdt)
    wk = params["w_k"].astype(cdt)
    wv = params["w_v"].astype(cdt)
    bq = params["b_q"].reshape(1, hdk).astype(f32)
    bk = params["b_k"].reshape(1, hdk).astype(f32)
    bv = params["b_v"].reshape(1, hdv).astype(f32)

    q_p, k_p, v_p = pl.pallas_call(
        _qkv_kernel,
        out_shape=(jax.ShapeDtypeStruct((Np, hdk), cdt),
                   jax.ShapeDtypeStruct((Np, hdk), cdt),
                   jax.ShapeDtypeStruct((Np, hdv), cdt)),
        grid_spec=pltpu.PrefetchScalarGridSpec(
            num_scalar_prefetch=0,
            grid=(Np // tm,),
            in_specs=[
                pl.BlockSpec((tm, d_model), lambda i: (i, 0)),
                _const_spec((d_model, hdk), lambda i: (0, 0)),
                _const_spec((d_model, hdk), lambda i: (0, 0)),
                _const_spec((d_model, hdv), lambda i: (0, 0)),
                _const_spec((1, hdk), lambda i: (0, 0)),
                _const_spec((1, hdk), lambda i: (0, 0)),
                _const_spec((1, hdv), lambda i: (0, 0)),
            ],
            out_specs=(pl.BlockSpec((tm, hdk), lambda i: (i, 0)),
                       pl.BlockSpec((tm, hdk), lambda i: (i, 0)),
                       pl.BlockSpec((tm, hdv), lambda i: (i, 0))),
        ),
        compiler_params=pltpu.CompilerParams(
            dimension_semantics=("parallel",), vmem_limit_bytes=vmem_limit),
        cost_estimate=pl.CostEstimate(
            flops=2 * Np * d_model * (2 * hdk + hdv), transcendentals=0,
            bytes_accessed=int(Np * d_model * cdt_isz
                               + d_model * (2 * hdk + hdv) * cdt_isz
                               + Np * (2 * hdk + hdv) * cdt_isz)),
    )(x2d_p, wq, wk, wv, bq, bk, bv)

    if Np != N:
        q_p, k_p, v_p = q_p[:N], k_p[:N], v_p[:N]
    q3d = q_p.reshape(B, T, hdk)                     # free reshapes, no transpose
    k3d = k_p.reshape(B, T, hdk)
    v3d = v_p.reshape(B, T, hdv)

    # ---- K2: scaled dot-product attention, grid = (batch, head-group) ----
    if slf_attn_mask.ndim == 2:                      # [B,T] key-pad mask (cheap)
        mask_arr = slf_attn_mask.reshape(B, 1, T).astype(f32)
        mask_spec = pl.BlockSpec((1, 1, T), lambda b, g: (b, 0, 0))
    else:                                            # dense [B,T,T] mask
        mask_arr = slf_attn_mask.astype(f32)
        mask_spec = pl.BlockSpec((1, T, T), lambda b, g: (b, 0, 0))

    hpb = _heads_per_block(H, d_k, d_v)
    G = H // hpb
    inv_temp = 1.0 / float(np.power(d_k, 0.5))
    attn_dtype = cdt if use_bf16 else f32            # halve largest HBM write on bf16
    attn_isz = jnp.dtype(attn_dtype).itemsize

    ctx, attn = pl.pallas_call(
        functools.partial(_attention_kernel, inv_temp=inv_temp, hpb=hpb,
                          d_k=d_k, d_v=d_v),
        out_shape=(jax.ShapeDtypeStruct((B, T, hdv), cdt),
                   jax.ShapeDtypeStruct((H, B, T, T), attn_dtype)),
        grid_spec=pltpu.PrefetchScalarGridSpec(
            num_scalar_prefetch=0,
            grid=(B, G),          # head-group inner: mask block constant across it
            in_specs=[
                pl.BlockSpec((1, T, hpb * d_k), lambda b, g: (b, 0, g)),
                pl.BlockSpec((1, T, hpb * d_k), lambda b, g: (b, 0, g)),
                pl.BlockSpec((1, T, hpb * d_v), lambda b, g: (b, 0, g)),
                mask_spec,
            ],
            out_specs=(pl.BlockSpec((1, T, hpb * d_v), lambda b, g: (b, 0, g)),
                       pl.BlockSpec((hpb, 1, T, T), lambda b, g: (g, b, 0, 0))),
        ),
        compiler_params=pltpu.CompilerParams(
            dimension_semantics=("parallel", "parallel"),
            vmem_limit_bytes=vmem_limit),
        cost_estimate=pl.CostEstimate(
            flops=2 * H * B * T * T * (d_k + d_v),
            transcendentals=H * B * T * T,
            bytes_accessed=int((q3d.size + k3d.size + v3d.size) * cdt_isz
                               + mask_arr.size * 4
                               + B * T * hdv * cdt_isz
                               + H * B * T * T * attn_isz)),
    )(q3d, k3d, v3d, mask_arr)

    # ctx is already [B, T, H*d_v] (torch's permute(1,2,0,3).view layout).
    ctx2d_p = _pad_rows(ctx.reshape(N, hdv), Np)

    # ---- K3: fc projection + residual + LayerNorm + non_pad_mask ----
    w_fc = params["w_fc"].astype(cdt)
    b_fc = params["b_fc"].reshape(1, d_model).astype(f32)
    g1 = params["ln1_g"].reshape(1, d_model).astype(f32)
    be1 = params["ln1_b"].reshape(1, d_model).astype(f32)

    attn_out = pl.pallas_call(
        functools.partial(_fc_add_ln_kernel, eps=_LN_EPS),
        out_shape=jax.ShapeDtypeStruct((Np, d_model), cdt),
        grid_spec=pltpu.PrefetchScalarGridSpec(
            num_scalar_prefetch=0,
            grid=(Np // tm,),
            in_specs=[
                pl.BlockSpec((tm, hdv), lambda i: (i, 0)),
                pl.BlockSpec((tm, d_model), lambda i: (i, 0)),
                _const_spec((hdv, d_model), lambda i: (0, 0)),
                _const_spec((1, d_model), lambda i: (0, 0)),
                _const_spec((1, d_model), lambda i: (0, 0)),
                _const_spec((1, d_model), lambda i: (0, 0)),
                pl.BlockSpec((tm, 1), lambda i: (i, 0)),
            ],
            out_specs=pl.BlockSpec((tm, d_model), lambda i: (i, 0)),
        ),
        compiler_params=pltpu.CompilerParams(
            dimension_semantics=("parallel",), vmem_limit_bytes=vmem_limit),
        cost_estimate=pl.CostEstimate(
            flops=2 * Np * hdv * d_model, transcendentals=0,
            bytes_accessed=int(Np * (hdv + 2 * d_model) * cdt_isz
                               + hdv * d_model * cdt_isz + Np * 4)),
    )(ctx2d_p, x2d_p, w_fc, b_fc, g1, be1, npm2d_p)

    # ---- K4: position-wise FFN (conv1d / ReLU / conv1d / LN / mask) ----
    ffn_in = (attn_out[:N] if Np != N else attn_out).reshape(B, T, d_model)
    w1 = params["w1"].astype(cdt)                    # [k1, d_model, d_inner]
    b1 = params["b1"].reshape(1, d_inner).astype(f32)
    w2 = params["w2"].astype(cdt)                    # [k2, d_inner, d_model]
    b2 = params["b2"].reshape(1, d_model).astype(f32)
    g2 = params["ln2_g"].reshape(1, d_model).astype(f32)
    be2 = params["ln2_b"].reshape(1, d_model).astype(f32)
    npm3d = non_pad_mask.astype(f32)

    enc_output = pl.pallas_call(
        functools.partial(_ffn_kernel, pad1=p1, pad2=p2, eps=_LN_EPS),
        out_shape=jax.ShapeDtypeStruct((B, T, d_model), out_dtype),
        grid_spec=pltpu.PrefetchScalarGridSpec(
            num_scalar_prefetch=0,
            grid=(B,),
            in_specs=[
                pl.BlockSpec((1, T, d_model), lambda b: (b, 0, 0)),
                _const_spec((k1, d_model, d_inner), lambda b: (0, 0, 0)),
                _const_spec((1, d_inner), lambda b: (0, 0)),
                _const_spec((k2, d_inner, d_model), lambda b: (0, 0, 0)),
                _const_spec((1, d_model), lambda b: (0, 0)),
                _const_spec((1, d_model), lambda b: (0, 0)),
                _const_spec((1, d_model), lambda b: (0, 0)),
                pl.BlockSpec((1, T, 1), lambda b: (b, 0, 0)),
            ],
            out_specs=pl.BlockSpec((1, T, d_model), lambda b: (b, 0, 0)),
        ),
        compiler_params=pltpu.CompilerParams(
            dimension_semantics=("parallel",), vmem_limit_bytes=vmem_limit),
        cost_estimate=pl.CostEstimate(
            flops=2 * B * T * d_model * d_inner * (k1 + k2),
            transcendentals=0,
            bytes_accessed=int(B * T * d_model * (cdt_isz + out_isz)
                               + (k1 + k2) * d_model * d_inner * cdt_isz
                               + B * T * 4)),
    )(ffn_in, w1, b1, w2, b2, g2, be2, npm3d)

    enc_slf_attn = attn.reshape(H * B, T, T)         # head-major, matches torch
    return enc_output.astype(out_dtype), enc_slf_attn


# --------------------------------------------------------------------------
# Parameter init + pure-JAX reference
# --------------------------------------------------------------------------

def init_fft_block_params(key, d_model, d_inner, n_head, d_k, d_v,
                          conv_kernel=(9, 1)):
    ks = jax.random.split(key, 12)
    std_qk = float(np.sqrt(2.0 / (d_model + d_k)))
    std_v = float(np.sqrt(2.0 / (d_model + d_v)))
    std_fc = float(np.sqrt(2.0 / (n_head * d_v + d_model)))

    def lin_bias(k, fan_in, fan_out):
        bound = 1.0 / math.sqrt(fan_in)
        return jax.random.uniform(k, (fan_out,), minval=-bound, maxval=bound)

    std1 = math.sqrt(1.0 / (d_model * conv_kernel[0]))
    std2 = math.sqrt(1.0 / (d_inner * conv_kernel[1]))
    # Weights stored as [in, out]; conv weights as [kernel, in, out]
    # (transpose of torch's [out, in] / [out, in, kernel]).
    return dict(
        w_q=std_qk * jax.random.normal(ks[0], (d_model, n_head * d_k)),
        b_q=lin_bias(ks[1], d_model, n_head * d_k),
        w_k=std_qk * jax.random.normal(ks[2], (d_model, n_head * d_k)),
        b_k=lin_bias(ks[3], d_model, n_head * d_k),
        w_v=std_v * jax.random.normal(ks[4], (d_model, n_head * d_v)),
        b_v=lin_bias(ks[5], d_model, n_head * d_v),
        w_fc=std_fc * jax.random.normal(ks[6], (n_head * d_v, d_model)),
        b_fc=lin_bias(ks[7], n_head * d_v, d_model),
        ln1_g=jnp.ones((d_model,)), ln1_b=jnp.zeros((d_model,)),
        w1=std1 * jax.random.normal(ks[8], (conv_kernel[0], d_model, d_inner)),
        b1=std1 * jax.random.normal(ks[9], (d_inner,)),
        w2=std2 * jax.random.normal(ks[10], (conv_kernel[1], d_inner, d_model)),
        b2=std2 * jax.random.normal(ks[11], (d_model,)),
        ln2_g=jnp.ones((d_model,)), ln2_b=jnp.zeros((d_model,)),
    )


def _layer_norm_ref(x, gamma, beta, eps=_LN_EPS):
    mu = jnp.mean(x, axis=-1, keepdims=True)
    var = jnp.mean((x - mu) ** 2, axis=-1, keepdims=True)
    return (x - mu) / jnp.sqrt(var + eps) * gamma + beta


def fft_block_reference(x, non_pad_mask, slf_attn_mask, params, *, n_head,
                        conv_padding=(4, 0)):
    hi = jax.lax.Precision.HIGHEST
    B, T, d_model = x.shape
    H = n_head
    d_k = params["w_q"].shape[1] // H
    d_v = params["w_v"].shape[1] // H
    k1 = params["w1"].shape[0]
    k2 = params["w2"].shape[0]
    p1, p2 = conv_padding

    if slf_attn_mask.ndim == 2:
        mask3 = jnp.broadcast_to(slf_attn_mask[:, None, :] > 0, (B, T, T))
    else:
        mask3 = slf_attn_mask > 0

    residual = x
    q = jnp.einsum("btd,de->bte", x, params["w_q"], precision=hi) + params["b_q"]
    k = jnp.einsum("btd,de->bte", x, params["w_k"], precision=hi) + params["b_k"]
    v = jnp.einsum("btd,de->bte", x, params["w_v"], precision=hi) + params["b_v"]
    q = q.reshape(B, T, H, d_k).transpose(2, 0, 1, 3)
    k = k.reshape(B, T, H, d_k).transpose(2, 0, 1, 3)
    v = v.reshape(B, T, H, d_v).transpose(2, 0, 1, 3)
    scores = jnp.einsum("hbqd,hbkd->hbqk", q, k, precision=hi) / np.sqrt(d_k)
    scores = jnp.where(mask3[None], -jnp.inf, scores)
    attn = jax.nn.softmax(scores, axis=-1)
    ctx = jnp.einsum("hbqk,hbkd->hbqd", attn, v, precision=hi)
    ctx = ctx.transpose(1, 2, 0, 3).reshape(B, T, H * d_v)
    out = jnp.einsum("bte,ed->btd", ctx, params["w_fc"], precision=hi) + params["b_fc"]
    out = _layer_norm_ref(out + residual, params["ln1_g"], params["ln1_b"])
    out = out * non_pad_mask

    res2 = out
    xp = jnp.pad(out, ((0, 0), (p1, p1), (0, 0)))
    h = sum(jnp.einsum("btd,dh->bth", xp[:, j:j + T, :], params["w1"][j],
                       precision=hi) for j in range(k1)) + params["b1"]
    h = jnp.maximum(h, 0.0)
    hp = jnp.pad(h, ((0, 0), (p2, p2), (0, 0)))
    y = sum(jnp.einsum("bth,hd->btd", hp[:, j:j + T, :], params["w2"][j],
                       precision=hi) for j in range(k2)) + params["b2"]
    y = _layer_norm_ref(y + res2, params["ln2_g"], params["ln2_b"])
    y = y * non_pad_mask
    return y, attn.reshape(H * B, T, T)


if __name__ == "__main__":
    batch, seq = 2, 8
    d_model, d_inner = 32, 64
    n_head, d_k, d_v = 2, 16, 16
    conv_kernel, conv_padding = (9, 1), (4, 0)   # FastSpeech hp.fft_conv1d_{kernel,padding}

    key = jax.random.PRNGKey(0)
    kx, kp = jax.random.split(key)
    x = jax.random.normal(kx, (batch, seq, d_model), dtype=jnp.float32)
    params = init_fft_block_params(kp, d_model, d_inner, n_head, d_k, d_v,
                                   conv_kernel=conv_kernel)

    lengths = jnp.array([seq, seq - 2])
    t_idx = jnp.arange(seq)
    non_pad_mask = (t_idx[None, :] < lengths[:, None]).astype(jnp.float32)[..., None]
    # key-pad mask [B, T] (1.0 = masked key) -- FastSpeech's slf_attn_mask is
    # exactly this mask broadcast over the query axis.
    key_pad_mask = (t_idx[None, :] >= lengths[:, None]).astype(jnp.float32)

    enc_out, enc_attn = fft_block_forward(
        x, non_pad_mask, key_pad_mask, params,
        n_head=n_head, conv_padding=conv_padding)
    enc_out = jax.block_until_ready(enc_out)

    ref_out, ref_attn = fft_block_reference(
        x, non_pad_mask, key_pad_mask, params,
        n_head=n_head, conv_padding=conv_padding)

    assert enc_out.shape == (batch, seq, d_model)
    assert enc_attn.shape == (n_head * batch, seq, seq)
    assert jnp.allclose(enc_out, ref_out, atol=2e-3, rtol=2e-3), "output mismatch"
    assert jnp.allclose(enc_attn, ref_attn, atol=2e-3, rtol=2e-3), "attn mismatch"

    # Dense [B,T,T] mask path (exactly the torch module's mask argument).
    dense_mask = jnp.broadcast_to(key_pad_mask[:, None, :], (batch, seq, seq))
    enc_out_d, enc_attn_d = fft_block_forward(
        x, non_pad_mask, dense_mask, params,
        n_head=n_head, conv_padding=conv_padding)
    enc_out_d = jax.block_until_ready(enc_out_d)
    assert jnp.allclose(enc_out_d, ref_out, atol=2e-3, rtol=2e-3), "dense-mask mismatch"
    assert jnp.allclose(enc_attn_d, ref_attn, atol=2e-3, rtol=2e-3), "dense-mask attn mismatch"

    # bf16 fast path: halves HBM bytes (activations, weights and the attention-
    # weights write); f32 accumulation inside, so a looser tolerance applies.
    enc_out_bf16, _ = fft_block_forward(
        x, non_pad_mask, key_pad_mask, params,
        n_head=n_head, conv_padding=conv_padding, use_bf16=True)
    enc_out_bf16 = jax.block_until_ready(enc_out_bf16)
    enc_out_bf16 = enc_out_bf16.astype(jnp.float32)
    assert bool(jnp.all(jnp.isfinite(enc_out_bf16)))
    assert jnp.allclose(enc_out_bf16, ref_out, atol=0.25, rtol=0.25), "bf16 mismatch"

    print("KERNEL_OK")
</pallas_src>

<mosaic_0001>
module attributes {stable_mosaic.version = 11 : i64} {
  func.func @_fc_add_ln_kernel(%arg0: i32, %arg1: memref<16x32xf32, #tpu.memory_space<vmem>>, %arg2: memref<16x32xf32, #tpu.memory_space<vmem>>, %arg3: memref<32x32xf32, #tpu.memory_space<vmem>>, %arg4: memref<1x32xf32, #tpu.memory_space<vmem>>, %arg5: memref<1x32xf32, #tpu.memory_space<vmem>>, %arg6: memref<1x32xf32, #tpu.memory_space<vmem>>, %arg7: memref<16x1xf32, #tpu.memory_space<vmem>>, %arg8: memref<16x32xf32, #tpu.memory_space<vmem>>) attributes {dimension_semantics = [#tpu.dimension_semantics<parallel>], iteration_bounds = array<i64: 1>, scalar_prefetch = 0 : i64, scratch_operands = 0 : i64, tpu.core_type = #tpu.core_type<tc>, window_params = [{transform_indices = @transform_0, window_bounds = array<i64: 16, 32>}, {transform_indices = @transform_1, window_bounds = array<i64: 16, 32>}, {pipeline_mode = #tpu.pipeline_mode<synchronous>, transform_indices = @transform_2, window_bounds = array<i64: 32, 32>}, {pipeline_mode = #tpu.pipeline_mode<synchronous>, transform_indices = @transform_3, window_bounds = array<i64: 1, 32>}, {pipeline_mode = #tpu.pipeline_mode<synchronous>, transform_indices = @transform_4, window_bounds = array<i64: 1, 32>}, {pipeline_mode = #tpu.pipeline_mode<synchronous>, transform_indices = @transform_5, window_bounds = array<i64: 1, 32>}, {transform_indices = @transform_6, window_bounds = array<i64: 16, 1>}, {transform_indices = @transform_7, window_bounds = array<i64: 16, 32>}]} {
    %c0 = arith.constant 0 : index
    %c0_0 = arith.constant 0 : index
    %0 = vector.load %arg1[%c0, %c0_0] : memref<16x32xf32, #tpu.memory_space<vmem>>, vector<16x32xf32>
    %c0_1 = arith.constant 0 : index
    %c0_2 = arith.constant 0 : index
    %1 = vector.load %arg3[%c0_1, %c0_2] : memref<32x32xf32, #tpu.memory_space<vmem>>, vector<32x32xf32>
    %cst = arith.constant dense<0.000000e+00> : vector<16x32xf32>
    %2 = tpu.matmul %0, %1, %cst {dimension_numbers = #tpu.dot_dimension_numbers<[1], [0], [0], [1], [0, 0, 1, 1], [], []>} : vector<16x32xf32>, vector<32x32xf32>, vector<16x32xf32> -> vector<16x32xf32>
    %c0_3 = arith.constant 0 : index
    %c0_4 = arith.constant 0 : index
    %3 = vector.load %arg4[%c0_3, %c0_4] : memref<1x32xf32, #tpu.memory_space<vmem>>, vector<1x32xf32>
    %4 = vector.broadcast %3 : vector<1x32xf32> to vector<16x32xf32>
    %5 = arith.addf %2, %4 : vector<16x32xf32>
    %c0_5 = arith.constant 0 : index
    %c0_6 = arith.constant 0 : index
    %6 = vector.load %arg2[%c0_5, %c0_6] : memref<16x32xf32, #tpu.memory_space<vmem>>, vector<16x32xf32>
    %7 = arith.addf %5, %6 : vector<16x32xf32>
    %cst_7 = arith.constant dense<0.000000e+00> : vector<16xf32>
    %8 = vector.multi_reduction <add>, %7, %cst_7 [1] : vector<16x32xf32> to vector<16xf32>
    %9 = vector.shape_cast %8 : vector<16xf32> to vector<16x1xf32>
    %cst_8 = arith.constant 3.200000e+01 : f32
    %10 = vector.broadcast %cst_8 : f32 to vector<16x1xf32>
    %11 = arith.divf %9, %10 : vector<16x1xf32>
    %12 = vector.broadcast %11 : vector<16x1xf32> to vector<16x32xf32>
    %13 = arith.subf %7, %12 : vector<16x32xf32>
    %14 = arith.mulf %13, %13 : vector<16x32xf32>
    %cst_9 = arith.constant dense<0.000000e+00> : vector<16xf32>
    %15 = vector.multi_reduction <add>, %14, %cst_9 [1] : vector<16x32xf32> to vector<16xf32>
    %16 = vector.shape_cast %15 : vector<16xf32> to vector<16x1xf32>
    %cst_10 = arith.constant 3.200000e+01 : f32
    %17 = vector.broadcast %cst_10 : f32 to vector<16x1xf32>
    %18 = arith.divf %16, %17 : vector<16x1xf32>
    %cst_11 = arith.constant 9.99999974E-6 : f32
    %19 = vector.broadcast %cst_11 : f32 to vector<16x1xf32>
    %20 = arith.addf %18, %19 : vector<16x1xf32>
    %21 = math.rsqrt %20 : vector<16x1xf32>
    %22 = vector.broadcast %21 : vector<16x1xf32> to vector<16x32xf32>
    %23 = arith.mulf %13, %22 : vector<16x32xf32>
    %c0_12 = arith.constant 0 : index
    %c0_13 = arith.constant 0 : index
    %24 = vector.load %arg5[%c0_12, %c0_13] : memref<1x32xf32, #tpu.memory_space<vmem>>, vector<1x32xf32>
    %25 = vector.broadcast %24 : vector<1x32xf32> to vector<16x32xf32>
    %26 = arith.mulf %23, %25 : vector<16x32xf32>
    %c0_14 = arith.constant 0 : index
    %c0_15 = arith.constant 0 : index
    %27 = vector.load %arg6[%c0_14, %c0_15] : memref<1x32xf32, #tpu.memory_space<vmem>>, vector<1x32xf32>
    %28 = vector.broadcast %27 : vector<1x32xf32> to vector<16x32xf32>
    %29 = arith.addf %26, %28 : vector<16x32xf32>
    %c0_16 = arith.constant 0 : index
    %c0_17 = arith.constant 0 : index
    %30 = vector.load %arg7[%c0_16, %c0_17] : memref<16x1xf32, #tpu.memory_space<vmem>>, vector<16x1xf32>
    %31 = vector.broadcast %30 : vector<16x1xf32> to vector<16x32xf32>
    %32 = arith.mulf %29, %31 : vector<16x32xf32>
    %c0_18 = arith.constant 0 : index
    %c0_19 = arith.constant 0 : index
    %33 = vector.load %arg8[%c0_18, %c0_19] : memref<16x32xf32, #tpu.memory_space<vmem>>, vector<16x32xf32>
    tpu.vector_store %arg8[%c0_18, %c0_19], %32 {strides = array<i32>} : memref<16x32xf32, #tpu.memory_space<vmem>>, vector<16x32xf32>,
    return
  }
  func.func @transform_0(%arg0: i32) -> (i32, i32) {
    %c0_i32 = arith.constant 0 : i32
    %c0_i32_0 = arith.constant 0 : i32
    return %arg0, %c0_i32 : i32, i32
  }
  func.func @transform_1(%arg0: i32) -> (i32, i32) {
    %c0_i32 = arith.constant 0 : i32
    %c0_i32_0 = arith.constant 0 : i32
    return %arg0, %c0_i32 : i32, i32
  }
  func.func @transform_2(%arg0: i32) -> (i32, i32) {
    %c0_i32 = arith.constant 0 : i32
    %c0_i32_0 = arith.constant 0 : i32
    %c0_i32_1 = arith.constant 0 : i32
    return %c0_i32, %c0_i32_0 : i32, i32
  }
  func.func @transform_3(%arg0: i32) -> (i32, i32) {
    %c0_i32 = arith.constant 0 : i32
    %c0_i32_0 = arith.constant 0 : i32
    %c0_i32_1 = arith.constant 0 : i32
    return %c0_i32, %c0_i32_0 : i32, i32
  }
  func.func @transform_4(%arg0: i32) -> (i32, i32) {
    %c0_i32 = arith.constant 0 : i32
    %c0_i32_0 = arith.constant 0 : i32
    %c0_i32_1 = arith.constant 0 : i32
    return %c0_i32, %c0_i32_0 : i32, i32
  }
  func.func @transform_5(%arg0: i32) -> (i32, i32) {
    %c0_i32 = arith.constant 0 : i32
    %c0_i32_0 = arith.constant 0 : i32
    %c0_i32_1 = arith.constant 0 : i32
    return %c0_i32, %c0_i32_0 : i32, i32
  }
  func.func @transform_6(%arg0: i32) -> (i32, i32) {
    %c0_i32 = arith.constant 0 : i32
    %c0_i32_0 = arith.constant 0 : i32
    return %arg0, %c0_i32 : i32, i32
  }
  func.func @transform_7(%arg0: i32) -> (i32, i32) {
    %c0_i32 = arith.constant 0 : i32
    %c0_i32_0 = arith.constant 0 : i32
    return %arg0, %c0_i32 : i32, i32
  }
}

module attributes {stable_mosaic.version = 11 : i64} {
  func.func @_attention_kernel(%arg0: i32, %arg1: i32, %arg2: memref<1x8x32xf32, #tpu.memory_space<vmem>>, %arg3: memref<1x8x32xf32, #tpu.memory_space<vmem>>, %arg4: memref<1x8x32xf32, #tpu.memory_space<vmem>>, %arg5: memref<1x1x8xf32, #tpu.memory_space<vmem>>, %arg6: memref<1x8x32xf32, #tpu.memory_space<vmem>>, %arg7: memref<2x1x8x8xf32, #tpu.memory_space<vmem>>) attributes {dimension_semantics = [#tpu.dimension_semantics<parallel>, #tpu.dimension_semantics<parallel>], iteration_bounds = array<i64: 2, 1>, scalar_prefetch = 0 : i64, scratch_operands = 0 : i64, tpu.core_type = #tpu.core_type<tc>, window_params = [{transform_indices = @transform_0, window_bounds = array<i64: 1, 8, 32>}, {transform_indices = @transform_1, window_bounds = array<i64: 1, 8, 32>}, {transform_indices = @transform_2, window_bounds = array<i64: 1, 8, 32>}, {transform_indices = @transform_3, window_bounds = array<i64: 1, 1, 8>}, {transform_indices = @transform_4, window_bounds = array<i64: 1, 8, 32>}, {transform_indices = @transform_5, window_bounds = array<i64: 2, 1, 8, 8>}]} {
    %c0 = arith.constant 0 : index
    %c0_0 = arith.constant 0 : index
    %c0_1 = arith.constant 0 : index
    %0 = vector.load %arg5[%c0, %c0_0, %c0_1] : memref<1x1x8xf32, #tpu.memory_space<vmem>>, vector<1x1x8xf32>
    %1 = vector.shape_cast %0 : vector<1x1x8xf32> to vector<1x8xf32>
    %c0_2 = arith.constant 0 : index
    %c0_3 = arith.constant 0 : index
    %c0_4 = arith.constant 0 : index
    %2 = vector.load %arg2[%c0_2, %c0_3, %c0_4] : memref<1x8x32xf32, #tpu.memory_space<vmem>>, vector<1x8x16xf32>
    %3 = vector.shape_cast %2 : vector<1x8x16xf32> to vector<8x16xf32>
    %c0_5 = arith.constant 0 : index
    %c0_6 = arith.constant 0 : index
    %c0_7 = arith.constant 0 : index
    %4 = vector.load %arg3[%c0_5, %c0_6, %c0_7] : memref<1x8x32xf32, #tpu.memory_space<vmem>>, vector<1x8x16xf32>
    %5 = vector.shape_cast %4 : vector<1x8x16xf32> to vector<8x16xf32>
    %c0_8 = arith.constant 0 : index
    %c0_9 = arith.constant 0 : index
    %c0_10 = arith.constant 0 : index
    %6 = vector.load %arg4[%c0_8, %c0_9, %c0_10] : memref<1x8x32xf32, #tpu.memory_space<vmem>>, vector<1x8x16xf32>
    %7 = vector.shape_cast %6 : vector<1x8x16xf32> to vector<8x16xf32>
    %cst = arith.constant dense<0.000000e+00> : vector<8x8xf32>
    %8 = tpu.matmul %3, %5, %cst {dimension_numbers = #tpu.dot_dimension_numbers<[1], [1], [0], [0], [0, 0, 1, 0], [], []>} : vector<8x16xf32>, vector<8x16xf32>, vector<8x8xf32> -> vector<8x8xf32>
    %cst_11 = arith.constant 2.500000e-01 : f32
    %9 = vector.broadcast %cst_11 : f32 to vector<8x8xf32>
    %10 = arith.mulf %8, %9 : vector<8x8xf32>
    %cst_12 = arith.constant 0.000000e+00 : f32
    %11 = vector.broadcast %cst_12 : f32 to vector<1x8xf32>
    %12 = arith.cmpf ogt, %1, %11 : vector<1x8xf32>
    %cst_13 = arith.constant 0xFF800000 : f32
    %13 = vector.shape_cast %12 : vector<1x8xi1> to vector<1x8xi1>
    %14 = vector.broadcast %13 : vector<1x8xi1> to vector<8x8xi1>
    %15 = vector.broadcast %cst_13 : f32 to vector<8x8xf32>
    %16 = arith.select %14, %15, %10 : vector<8x8xi1>, vector<8x8xf32>
    %cst_14 = arith.constant dense<0xFF800000> : vector<8xf32>
    %17 = vector.multi_reduction <maximumf>, %16, %cst_14 [1] : vector<8x8xf32> to vector<8xf32>
    %18 = vector.shape_cast %17 : vector<8xf32> to vector<8x1xf32>
    %19 = vector.broadcast %18 : vector<8x1xf32> to vector<8x8xf32>
    %20 = arith.subf %16, %19 : vector<8x8xf32>
    %21 = math.exp %20 : vector<8x8xf32>
    %cst_15 = arith.constant dense<0.000000e+00> : vector<8xf32>
    %22 = vector.multi_reduction <add>, %21, %cst_15 [1] : vector<8x8xf32> to vector<8xf32>
    %23 = vector.shape_cast %22 : vector<8xf32> to vector<8x1xf32>
    %24 = vector.broadcast %23 : vector<8x1xf32> to vector<8x8xf32>
    %25 = arith.divf %21, %24 : vector<8x8xf32>
    %c0_16 = arith.constant 0 : index
    %c0_17 = arith.constant 0 : index
    %c0_18 = arith.constant 0 : index
    %c0_19 = arith.constant 0 : index
    %26 = vector.load %arg7[%c0_16, %c0_17, %c0_18, %c0_19] : memref<2x1x8x8xf32, #tpu.memory_space<vmem>>, vector<1x1x8x8xf32>
    %27 = vector.shape_cast %26 : vector<1x1x8x8xf32> to vector<8x8xf32>
    %28 = vector.shape_cast %25 : vector<8x8xf32> to vector<1x1x8x8xf32>
    tpu.vector_store %arg7[%c0_16, %c0_17, %c0_18, %c0_19], %28 {strides = array<i32>} : memref<2x1x8x8xf32, #tpu.memory_space<vmem>>, vector<1x1x8x8xf32>,
    %cst_20 = arith.constant dense<0.000000e+00> : vector<8x16xf32>
    %29 = tpu.matmul %25, %7, %cst_20 {dimension_numbers = #tpu.dot_dimension_numbers<[1], [0], [0], [1], [0, 0, 1, 1], [], []>} : vector<8x8xf32>, vector<8x16xf32>, vector<8x16xf32> -> vector<8x16xf32>
    %c0_21 = arith.constant 0 : index
    %c0_22 = arith.constant 0 : index
    %c16 = arith.constant 16 : index
    %30 = vector.load %arg2[%c0_21, %c0_22, %c16] : memref<1x8x32xf32, #tpu.memory_space<vmem>>, vector<1x8x16xf32>
    %31 = vector.shape_cast %30 : vector<1x8x16xf32> to vector<8x16xf32>
    %c0_23 = arith.constant 0 : index
    %c0_24 = arith.constant 0 : index
    %c16_25 = arith.constant 16 : index
    %32 = vector.load %arg3[%c0_23, %c0_24, %c16_25] : memref<1x8x32xf32, #tpu.memory_space<vmem>>, vector<1x8x16xf32>
    %33 = vector.shape_cast %32 : vector<1x8x16xf32> to vector<8x16xf32>
    %c0_26 = arith.constant 0 : index
    %c0_27 = arith.constant 0 : index
    %c16_28 = arith.constant 16 : index
    %34 = vector.load %arg4[%c0_26, %c0_27, %c16_28] : memref<1x8x32xf32, #tpu.memory_space<vmem>>, vector<1x8x16xf32>
    %35 = vector.shape_cast %34 : vector<1x8x16xf32> to vector<8x16xf32>
    %cst_29 = arith.constant dense<0.000000e+00> : vector<8x8xf32>
    %36 = tpu.matmul %31, %33, %cst_29 {dimension_numbers = #tpu.dot_dimension_numbers<[1], [1], [0], [0], [0, 0, 1, 0], [], []>} : vector<8x16xf32>, vector<8x16xf32>, vector<8x8xf32> -> vector<8x8xf32>
    %cst_30 = arith.constant 2.500000e-01 : f32
    %37 = vector.broadcast %cst_30 : f32 to vector<8x8xf32>
    %38 = arith.mulf %36, %37 : vector<8x8xf32>
    %cst_31 = arith.constant 0.000000e+00 : f32
    %39 = vector.broadcast %cst_31 : f32 to vector<1x8xf32>
    %40 = arith.cmpf ogt, %1, %39 : vector<1x8xf32>
    %cst_32 = arith.constant 0xFF800000 : f32
    %41 = vector.shape_cast %40 : vector<1x8xi1> to vector<1x8xi1>
    %42 = vector.broadcast %41 : vector<1x8xi1> to vector<8x8xi1>
    %43 = vector.broadcast %cst_32 : f32 to vector<8x8xf32>
    %44 = arith.select %42, %43, %38 : vector<8x8xi1>, vector<8x8xf32>
    %cst_33 = arith.constant dense<0xFF800000> : vector<8xf32>
    %45 = vector.multi_reduction <maximumf>, %44, %cst_33 [1] : vector<8x8xf32> to vector<8xf32>
    %46 = vector.shape_cast %45 : vector<8xf32> to vector<8x1xf32>
    %47 = vector.broadcast %46 : vector<8x1xf32> to vector<8x8xf32>
    %48 = arith.subf %44, %47 : vector<8x8xf32>
    %49 = math.exp %48 : vector<8x8xf32>
    %cst_34 = arith.constant dense<0.000000e+00> : vector<8xf32>
    %50 = vector.multi_reduction <add>, %49, %cst_34 [1] : vector<8x8xf32> to vector<8xf32>
    %51 = vector.shape_cast %50 : vector<8xf32> to vector<8x1xf32>
    %52 = vector.broadcast %51 : vector<8x1xf32> to vector<8x8xf32>
    %53 = arith.divf %49, %52 : vector<8x8xf32>
    %c1 = arith.constant 1 : index
    %c0_35 = arith.constant 0 : index
    %c0_36 = arith.constant 0 : index
    %c0_37 = arith.constant 0 : index
    %54 = vector.load %arg7[%c1, %c0_35, %c0_36, %c0_37] : memref<2x1x8x8xf32, #tpu.memory_space<vmem>>, vector<1x1x8x8xf32>
    %55 = vector.shape_cast %54 : vector<1x1x8x8xf32> to vector<8x8xf32>
    %56 = vector.shape_cast %53 : vector<8x8xf32> to vector<1x1x8x8xf32>
    tpu.vector_store %arg7[%c1, %c0_35, %c0_36, %c0_37], %56 {strides = array<i32>} : memref<2x1x8x8xf32, #tpu.memory_space<vmem>>, vector<1x1x8x8xf32>,
    %cst_38 = arith.constant dense<0.000000e+00> : vector<8x16xf32>
    %57 = tpu.matmul %53, %35, %cst_38 {dimension_numbers = #tpu.dot_dimension_numbers<[1], [0], [0], [1], [0, 0, 1, 1], [], []>} : vector<8x8xf32>, vector<8x16xf32>, vector<8x16xf32> -> vector<8x16xf32>
    %58 = tpu.concatenate %29, %57 in 1 : vector<8x16xf32>, vector<8x16xf32> -> vector<8x32xf32>
    %c0_39 = arith.constant 0 : index
    %c0_40 = arith.constant 0 : index
    %c0_41 = arith.constant 0 : index
    %59 = vector.load %arg6[%c0_39, %c0_40, %c0_41] : memref<1x8x32xf32, #tpu.memory_space<vmem>>, vector<1x8x32xf32>
    %60 = vector.shape_cast %59 : vector<1x8x32xf32> to vector<8x32xf32>
    %61 = vector.shape_cast %58 : vector<8x32xf32> to vector<1x8x32xf32>
    tpu.vector_store %arg6[%c0_39, %c0_40, %c0_41], %61 {strides = array<i32>} : memref<1x8x32xf32, #tpu.memory_space<vmem>>, vector<1x8x32xf32>,
    return
  }
  func.func @transform_0(%arg0: i32, %arg1: i32) -> (i32, i32, i32) {
    %c0_i32 = arith.constant 0 : i32
    %c0_i32_0 = arith.constant 0 : i32
    return %arg0, %c0_i32, %arg1 : i32, i32, i32
  }
  func.func @transform_1(%arg0: i32, %arg1: i32) -> (i32, i32, i32) {
    %c0_i32 = arith.constant 0 : i32
    %c0_i32_0 = arith.constant 0 : i32
    return %arg0, %c0_i32, %arg1 : i32, i32, i32
  }
  func.func @transform_2(%arg0: i32, %arg1: i32) -> (i32, i32, i32) {
    %c0_i32 = arith.constant 0 : i32
    %c0_i32_0 = arith.constant 0 : i32
    return %arg0, %c0_i32, %arg1 : i32, i32, i32
  }
  func.func @transform_3(%arg0: i32, %arg1: i32) -> (i32, i32, i32) {
    %c0_i32 = arith.constant 0 : i32
    %c0_i32_0 = arith.constant 0 : i32
    %c0_i32_1 = arith.constant 0 : i32
    return %arg0, %c0_i32, %c0_i32_0 : i32, i32, i32
  }
  func.func @transform_4(%arg0: i32, %arg1: i32) -> (i32, i32, i32) {
    %c0_i32 = arith.constant 0 : i32
    %c0_i32_0 = arith.constant 0 : i32
    return %arg0, %c0_i32, %arg1 : i32, i32, i32
  }
  func.func @transform_5(%arg0: i32, %arg1: i32) -> (i32, i32, i32, i32) {
    %c0_i32 = arith.constant 0 : i32
    %c0_i32_0 = arith.constant 0 : i32
    %c0_i32_1 = arith.constant 0 : i32
    return %arg1, %arg0, %c0_i32, %c0_i32_0 : i32, i32, i32, i32
  }
}

module attributes {stable_mosaic.version = 11 : i64} {
  func.func @_qkv_kernel(%arg0: i32, %arg1: memref<16x32xf32, #tpu.memory_space<vmem>>, %arg2: memref<32x32xf32, #tpu.memory_space<vmem>>, %arg3: memref<32x32xf32, #tpu.memory_space<vmem>>, %arg4: memref<32x32xf32, #tpu.memory_space<vmem>>, %arg5: memref<1x32xf32, #tpu.memory_space<vmem>>, %arg6: memref<1x32xf32, #tpu.memory_space<vmem>>, %arg7: memref<1x32xf32, #tpu.memory_space<vmem>>, %arg8: memref<16x32xf32, #tpu.memory_space<vmem>>, %arg9: memref<16x32xf32, #tpu.memory_space<vmem>>, %arg10: memref<16x32xf32, #tpu.memory_space<vmem>>) attributes {dimension_semantics = [#tpu.dimension_semantics<parallel>], iteration_bounds = array<i64: 1>, scalar_prefetch = 0 : i64, scratch_operands = 0 : i64, tpu.core_type = #tpu.core_type<tc>, window_params = [{transform_indices = @transform_0, window_bounds = array<i64: 16, 32>}, {pipeline_mode = #tpu.pipeline_mode<synchronous>, transform_indices = @transform_1, window_bounds = array<i64: 32, 32>}, {pipeline_mode = #tpu.pipeline_mode<synchronous>, transform_indices = @transform_2, window_bounds = array<i64: 32, 32>}, {pipeline_mode = #tpu.pipeline_mode<synchronous>, transform_indices = @transform_3, window_bounds = array<i64: 32, 32>}, {pipeline_mode = #tpu.pipeline_mode<synchronous>, transform_indices = @transform_4, window_bounds = array<i64: 1, 32>}, {pipeline_mode = #tpu.pipeline_mode<synchronous>, transform_indices = @transform_5, window_bounds = array<i64: 1, 32>}, {pipeline_mode = #tpu.pipeline_mode<synchronous>, transform_indices = @transform_6, window_bounds = array<i64: 1, 32>}, {transform_indices = @transform_7, window_bounds = array<i64: 16, 32>}, {transform_indices = @transform_8, window_bounds = array<i64: 16, 32>}, {transform_indices = @transform_9, window_bounds = array<i64: 16, 32>}]} {
    %c0 = arith.constant 0 : index
    %c0_0 = arith.constant 0 : index
    %0 = vector.load %arg1[%c0, %c0_0] : memref<16x32xf32, #tpu.memory_space<vmem>>, vector<16x32xf32>
    %c0_1 = arith.constant 0 : index
    %c0_2 = arith.constant 0 : index
    %1 = vector.load %arg2[%c0_1, %c0_2] : memref<32x32xf32, #tpu.memory_space<vmem>>, vector<32x32xf32>
    %cst = arith.constant dense<0.000000e+00> : vector<16x32xf32>
    %2 = tpu.matmul %0, %1, %cst {dimension_numbers = #tpu.dot_dimension_numbers<[1], [0], [0], [1], [0, 0, 1, 1], [], []>} : vector<16x32xf32>, vector<32x32xf32>, vector<16x32xf32> -> vector<16x32xf32>
    %c0_3 = arith.constant 0 : index
    %c0_4 = arith.constant 0 : index
    %3 = vector.load %arg5[%c0_3, %c0_4] : memref<1x32xf32, #tpu.memory_space<vmem>>, vector<1x32xf32>
    %4 = vector.broadcast %3 : vector<1x32xf32> to vector<16x32xf32>
    %5 = arith.addf %2, %4 : vector<16x32xf32>
    %c0_5 = arith.constant 0 : index
    %c0_6 = arith.constant 0 : index
    %6 = vector.load %arg8[%c0_5, %c0_6] : memref<16x32xf32, #tpu.memory_space<vmem>>, vector<16x32xf32>
    tpu.vector_store %arg8[%c0_5, %c0_6], %5 {strides = array<i32>} : memref<16x32xf32, #tpu.memory_space<vmem>>, vector<16x32xf32>,
    %c0_7 = arith.constant 0 : index
    %c0_8 = arith.constant 0 : index
    %7 = vector.load %arg3[%c0_7, %c0_8] : memref<32x32xf32, #tpu.memory_space<vmem>>, vector<32x32xf32>
    %cst_9 = arith.constant dense<0.000000e+00> : vector<16x32xf32>
    %8 = tpu.matmul %0, %7, %cst_9 {dimension_numbers = #tpu.dot_dimension_numbers<[1], [0], [0], [1], [0, 0, 1, 1], [], []>} : vector<16x32xf32>, vector<32x32xf32>, vector<16x32xf32> -> vector<16x32xf32>
    %c0_10 = arith.constant 0 : index
    %c0_11 = arith.constant 0 : index
    %9 = vector.load %arg6[%c0_10, %c0_11] : memref<1x32xf32, #tpu.memory_space<vmem>>, vector<1x32xf32>
    %10 = vector.broadcast %9 : vector<1x32xf32> to vector<16x32xf32>
    %11 = arith.addf %8, %10 : vector<16x32xf32>
    %c0_12 = arith.constant 0 : index
    %c0_13 = arith.constant 0 : index
    %12 = vector.load %arg9[%c0_12, %c0_13] : memref<16x32xf32, #tpu.memory_space<vmem>>, vector<16x32xf32>
    tpu.vector_store %arg9[%c0_12, %c0_13], %11 {strides = array<i32>} : memref<16x32xf32, #tpu.memory_space<vmem>>, vector<16x32xf32>,
    %c0_14 = arith.constant 0 : index
    %c0_15 = arith.constant 0 : index
    %13 = vector.load %arg4[%c0_14, %c0_15] : memref<32x32xf32, #tpu.memory_space<vmem>>, vector<32x32xf32>
    %cst_16 = arith.constant dense<0.000000e+00> : vector<16x32xf32>
    %14 = tpu.matmul %0, %13, %cst_16 {dimension_numbers = #tpu.dot_dimension_numbers<[1], [0], [0], [1], [0, 0, 1, 1], [], []>} : vector<16x32xf32>, vector<32x32xf32>, vector<16x32xf32> -> vector<16x32xf32>
    %c0_17 = arith.constant 0 : index
    %c0_18 = arith.constant 0 : index
    %15 = vector.load %arg7[%c0_17, %c0_18] : memref<1x32xf32, #tpu.memory_space<vmem>>, vector<1x32xf32>
    %16 = vector.broadcast %15 : vector<1x32xf32> to vector<16x32xf32>
    %17 = arith.addf %14, %16 : vector<16x32xf32>
    %c0_19 = arith.constant 0 : index
    %c0_20 = arith.constant 0 : index
    %18 = vector.load %arg10[%c0_19, %c0_20] : memref<16x32xf32, #tpu.memory_space<vmem>>, vector<16x32xf32>
    tpu.vector_store %arg10[%c0_19, %c0_20], %17 {strides = array<i32>} : memref<16x32xf32, #tpu.memory_space<vmem>>, vector<16x32xf32>,
    return
  }
  func.func @transform_0(%arg0: i32) -> (i32, i32) {
    %c0_i32 = arith.constant 0 : i32
    %c0_i32_0 = arith.constant 0 : i32
    return %arg0, %c0_i32 : i32, i32
  }
  func.func @transform_1(%arg0: i32) -> (i32, i32) {
    %c0_i32 = arith.constant 0 : i32
    %c0_i32_0 = arith.constant 0 : i32
    %c0_i32_1 = arith.constant 0 : i32
    return %c0_i32, %c0_i32_0 : i32, i32
  }
  func.func @transform_2(%arg0: i32) -> (i32, i32) {
    %c0_i32 = arith.constant 0 : i32
    %c0_i32_0 = arith.constant 0 : i32
    %c0_i32_1 = arith.constant 0 : i32
    return %c0_i32, %c0_i32_0 : i32, i32
  }
  func.func @transform_3(%arg0: i32) -> (i32, i32) {
    %c0_i32 = arith.constant 0 : i32
    %c0_i32_0 = arith.constant 0 : i32
    %c0_i32_1 = arith.constant 0 : i32
    return %c0_i32, %c0_i32_0 : i32, i32
  }
  func.func @transform_4(%arg0: i32) -> (i32, i32) {
    %c0_i32 = arith.constant 0 : i32
    %c0_i32_0 = arith.constant 0 : i32
    %c0_i32_1 = arith.constant 0 : i32
    return %c0_i32, %c0_i32_0 : i32, i32
  }
  func.func @transform_5(%arg0: i32) -> (i32, i32) {
    %c0_i32 = arith.constant 0 : i32
    %c0_i32_0 = arith.constant 0 : i32
    %c0_i32_1 = arith.constant 0 : i32
    return %c0_i32, %c0_i32_0 : i32, i32
  }
  func.func @transform_6(%arg0: i32) -> (i32, i32) {
    %c0_i32 = arith.constant 0 : i32
    %c0_i32_0 = arith.constant 0 : i32
    %c0_i32_1 = arith.constant 0 : i32
    return %c0_i32, %c0_i32_0 : i32, i32
  }
  func.func @transform_7(%arg0: i32) -> (i32, i32) {
    %c0_i32 = arith.constant 0 : i32
    %c0_i32_0 = arith.constant 0 : i32
    return %arg0, %c0_i32 : i32, i32
  }
  func.func @transform_8(%arg0: i32) -> (i32, i32) {
    %c0_i32 = arith.constant 0 : i32
    %c0_i32_0 = arith.constant 0 : i32
    return %arg0, %c0_i32 : i32, i32
  }
  func.func @transform_9(%arg0: i32) -> (i32, i32) {
    %c0_i32 = arith.constant 0 : i32
    %c0_i32_0 = arith.constant 0 : i32
    return %arg0, %c0_i32 : i32, i32
  }
}

module attributes {stable_mosaic.version = 11 : i64} {
  func.func @_ffn_kernel(%arg0: i32, %arg1: memref<1x8x32xf32, #tpu.memory_space<vmem>>, %arg2: memref<9x32x64xf32, #tpu.memory_space<vmem>>, %arg3: memref<1x64xf32, #tpu.memory_space<vmem>>, %arg4: memref<1x64x32xf32, #tpu.memory_space<vmem>>, %arg5: memref<1x32xf32, #tpu.memory_space<vmem>>, %arg6: memref<1x32xf32, #tpu.memory_space<vmem>>, %arg7: memref<1x32xf32, #tpu.memory_space<vmem>>, %arg8: memref<1x8x1xf32, #tpu.memory_space<vmem>>, %arg9: memref<1x8x32xf32, #tpu.memory_space<vmem>>) attributes {dimension_semantics = [#tpu.dimension_semantics<parallel>], iteration_bounds = array<i64: 2>, scalar_prefetch = 0 : i64, scratch_operands = 0 : i64, tpu.core_type = #tpu.core_type<tc>, window_params = [{transform_indices = @transform_0, window_bounds = array<i64: 1, 8, 32>}, {pipeline_mode = #tpu.pipeline_mode<synchronous>, transform_indices = @transform_1, window_bounds = array<i64: 9, 32, 64>}, {pipeline_mode = #tpu.pipeline_mode<synchronous>, transform_indices = @transform_2, window_bounds = array<i64: 1, 64>}, {pipeline_mode = #tpu.pipeline_mode<synchronous>, transform_indices = @transform_3, window_bounds = array<i64: 1, 64, 32>}, {pipeline_mode = #tpu.pipeline_mode<synchronous>, transform_indices = @transform_4, window_bounds = array<i64: 1, 32>}, {pipeline_mode = #tpu.pipeline_mode<synchronous>, transform_indices = @transform_5, window_bounds = array<i64: 1, 32>}, {pipeline_mode = #tpu.pipeline_mode<synchronous>, transform_indices = @transform_6, window_bounds = array<i64: 1, 32>}, {transform_indices = @transform_7, window_bounds = array<i64: 1, 8, 1>}, {transform_indices = @transform_8, window_bounds = array<i64: 1, 8, 32>}]} {
    %c0 = arith.constant 0 : index
    %c0_0 = arith.constant 0 : index
    %c0_1 = arith.constant 0 : index
    %0 = vector.load %arg1[%c0, %c0_0, %c0_1] : memref<1x8x32xf32, #tpu.memory_space<vmem>>, vector<1x8x32xf32>
    %1 = vector.shape_cast %0 : vector<1x8x32xf32> to vector<8x32xf32>
    %cst = arith.constant 0.000000e+00 : f32
    %2 = vector.broadcast %cst : f32 to vector<4x32xf32>
    %3 = tpu.concatenate %2, %1, %2 in 0 : vector<4x32xf32>, vector<8x32xf32>, vector<4x32xf32> -> vector<16x32xf32>
    %4 = vector.extract_strided_slice %3 {offsets = [0, 0], sizes = [8, 32], strides = [1, 1]} : vector<16x32xf32> to vector<8x32xf32>
    %c0_2 = arith.constant 0 : index
    %c0_3 = arith.constant 0 : index
    %c0_4 = arith.constant 0 : index
    %5 = vector.load %arg2[%c0_2, %c0_3, %c0_4] : memref<9x32x64xf32, #tpu.memory_space<vmem>>, vector<1x32x64xf32>
    %6 = vector.shape_cast %5 : vector<1x32x64xf32> to vector<32x64xf32>
    %cst_5 = arith.constant dense<0.000000e+00> : vector<8x64xf32>
    %7 = tpu.matmul %4, %6, %cst_5 {dimension_numbers = #tpu.dot_dimension_numbers<[1], [0], [0], [1], [0, 0, 1, 1], [], []>} : vector<8x32xf32>, vector<32x64xf32>, vector<8x64xf32> -> vector<8x64xf32>
    %8 = vector.extract_strided_slice %3 {offsets = [1, 0], sizes = [8, 32], strides = [1, 1]} : vector<16x32xf32> to vector<8x32xf32>
    %c1 = arith.constant 1 : index
    %c0_6 = arith.constant 0 : index
    %c0_7 = arith.constant 0 : index
    %9 = vector.load %arg2[%c1, %c0_6, %c0_7] : memref<9x32x64xf32, #tpu.memory_space<vmem>>, vector<1x32x64xf32>
    %10 = vector.shape_cast %9 : vector<1x32x64xf32> to vector<32x64xf32>
    %cst_8 = arith.constant dense<0.000000e+00> : vector<8x64xf32>
    %11 = tpu.matmul %8, %10, %cst_8 {dimension_numbers = #tpu.dot_dimension_numbers<[1], [0], [0], [1], [0, 0, 1, 1], [], []>} : vector<8x32xf32>, vector<32x64xf32>, vector<8x64xf32> -> vector<8x64xf32>
    %12 = arith.addf %7, %11 : vector<8x64xf32>
    %13 = vector.extract_strided_slice %3 {offsets = [2, 0], sizes = [8, 32], strides = [1, 1]} : vector<16x32xf32> to vector<8x32xf32>
    %c2 = arith.constant 2 : index
    %c0_9 = arith.constant 0 : index
    %c0_10 = arith.constant 0 : index
    %14 = vector.load %arg2[%c2, %c0_9, %c0_10] : memref<9x32x64xf32, #tpu.memory_space<vmem>>, vector<1x32x64xf32>
    %15 = vector.shape_cast %14 : vector<1x32x64xf32> to vector<32x64xf32>
    %cst_11 = arith.constant dense<0.000000e+00> : vector<8x64xf32>
    %16 = tpu.matmul %13, %15, %cst_11 {dimension_numbers = #tpu.dot_dimension_numbers<[1], [0], [0], [1], [0, 0, 1, 1], [], []>} : vector<8x32xf32>, vector<32x64xf32>, vector<8x64xf32> -> vector<8x64xf32>
    %17 = arith.addf %12, %16 : vector<8x64xf32>
    %18 = vector.extract_strided_slice %3 {offsets = [3, 0], sizes = [8, 32], strides = [1, 1]} : vector<16x32xf32> to vector<8x32xf32>
    %c3 = arith.constant 3 : index
    %c0_12 = arith.constant 0 : index
    %c0_13 = arith.constant 0 : index
    %19 = vector.load %arg2[%c3, %c0_12, %c0_13] : memref<9x32x64xf32, #tpu.memory_space<vmem>>, vector<1x32x64xf32>
    %20 = vector.shape_cast %19 : vector<1x32x64xf32> to vector<32x64xf32>
    %cst_14 = arith.constant dense<0.000000e+00> : vector<8x64xf32>
    %21 = tpu.matmul %18, %20, %cst_14 {dimension_numbers = #tpu.dot_dimension_numbers<[1], [0], [0], [1], [0, 0, 1, 1], [], []>} : vector<8x32xf32>, vector<32x64xf32>, vector<8x64xf32> -> vector<8x64xf32>
    %22 = arith.addf %17, %21 : vector<8x64xf32>
    %23 = vector.extract_strided_slice %3 {offsets = [4, 0], sizes = [8, 32], strides = [1, 1]} : vector<16x32xf32> to vector<8x32xf32>
    %c4 = arith.constant 4 : index
    %c0_15 = arith.constant 0 : index
    %c0_16 = arith.constant 0 : index
    %24 = vector.load %arg2[%c4, %c0_15, %c0_16] : memref<9x32x64xf32, #tpu.memory_space<vmem>>, vector<1x32x64xf32>
    %25 = vector.shape_cast %24 : vector<1x32x64xf32> to vector<32x64xf32>
    %cst_17 = arith.constant dense<0.000000e+00> : vector<8x64xf32>
    %26 = tpu.matmul %23, %25, %cst_17 {dimension_numbers = #tpu.dot_dimension_numbers<[1], [0], [0], [1], [0, 0, 1, 1], [], []>} : vector<8x32xf32>, vector<32x64xf32>, vector<8x64xf32> -> vector<8x64xf32>
    %27 = arith.addf %22, %26 : vector<8x64xf32>
    %28 = vector.extract_strided_slice %3 {offsets = [5, 0], sizes = [8, 32], strides = [1, 1]} : vector<16x32xf32> to vector<8x32xf32>
    %c5 = arith.constant 5 : index
    %c0_18 = arith.constant 0 : index
    %c0_19 = arith.constant 0 : index
    %29 = vector.load %arg2[%c5, %c0_18, %c0_19] : memref<9x32x64xf32, #tpu.memory_space<vmem>>, vector<1x32x64xf32>
    %30 = vector.shape_cast %29 : vector<1x32x64xf32> to vector<32x64xf32>
    %cst_20 = arith.constant dense<0.000000e+00> : vector<8x64xf32>
    %31 = tpu.matmul %28, %30, %cst_20 {dimension_numbers = #tpu.dot_dimension_numbers<[1], [0], [0], [1], [0, 0, 1, 1], [], []>} : vector<8x32xf32>, vector<32x64xf32>, vector<8x64xf32> -> vector<8x64xf32>
    %32 = arith.addf %27, %31 : vector<8x64xf32>
    %33 = vector.extract_strided_slice %3 {offsets = [6, 0], sizes = [8, 32], strides = [1, 1]} : vector<16x32xf32> to vector<8x32xf32>
    %c6 = arith.constant 6 : index
    %c0_21 = arith.constant 0 : index
    %c0_22 = arith.constant 0 : index
    %34 = vector.load %arg2[%c6, %c0_21, %c0_22] : memref<9x32x64xf32, #tpu.memory_space<vmem>>, vector<1x32x64xf32>
    %35 = vector.shape_cast %34 : vector<1x32x64xf32> to vector<32x64xf32>
    %cst_23 = arith.constant dense<0.000000e+00> : vector<8x64xf32>
    %36 = tpu.matmul %33, %35, %cst_23 {dimension_numbers = #tpu.dot_dimension_numbers<[1], [0], [0], [1], [0, 0, 1, 1], [], []>} : vector<8x32xf32>, vector<32x64xf32>, vector<8x64xf32> -> vector<8x64xf32>
    %37 = arith.addf %32, %36 : vector<8x64xf32>
    %38 = vector.extract_strided_slice %3 {offsets = [7, 0], sizes = [8, 32], strides = [1, 1]} : vector<16x32xf32> to vector<8x32xf32>
    %c7 = arith.constant 7 : index
    %c0_24 = arith.constant 0 : index
    %c0_25 = arith.constant 0 : index
    %39 = vector.load %arg2[%c7, %c0_24, %c0_25] : memref<9x32x64xf32, #tpu.memory_space<vmem>>, vector<1x32x64xf32>
    %40 = vector.shape_cast %39 : vector<1x32x64xf32> to vector<32x64xf32>
    %cst_26 = arith.constant dense<0.000000e+00> : vector<8x64xf32>
    %41 = tpu.matmul %38, %40, %cst_26 {dimension_numbers = #tpu.dot_dimension_numbers<[1], [0], [0], [1], [0, 0, 1, 1], [], []>} : vector<8x32xf32>, vector<32x64xf32>, vector<8x64xf32> -> vector<8x64xf32>
    %42 = arith.addf %37, %41 : vector<8x64xf32>
    %43 = vector.extract_strided_slice %3 {offsets = [8, 0], sizes = [8, 32], strides = [1, 1]} : vector<16x32xf32> to vector<8x32xf32>
    %c8 = arith.constant 8 : index
    %c0_27 = arith.constant 0 : index
    %c0_28 = arith.constant 0 : index
    %44 = vector.load %arg2[%c8, %c0_27, %c0_28] : memref<9x32x64xf32, #tpu.memory_space<vmem>>, vector<1x32x64xf32>
    %45 = vector.shape_cast %44 : vector<1x32x64xf32> to vector<32x64xf32>
    %cst_29 = arith.constant dense<0.000000e+00> : vector<8x64xf32>
    %46 = tpu.matmul %43, %45, %cst_29 {dimension_numbers = #tpu.dot_dimension_numbers<[1], [0], [0], [1], [0, 0, 1, 1], [], []>} : vector<8x32xf32>, vector<32x64xf32>, vector<8x64xf32> -> vector<8x64xf32>
    %47 = arith.addf %42, %46 : vector<8x64xf32>
    %c0_30 = arith.constant 0 : index
    %c0_31 = arith.constant 0 : index
    %48 = vector.load %arg3[%c0_30, %c0_31] : memref<1x64xf32, #tpu.memory_space<vmem>>, vector<1x64xf32>
    %49 = vector.broadcast %48 : vector<1x64xf32> to vector<8x64xf32>
    %50 = arith.addf %47, %49 : vector<8x64xf32>
    %cst_32 = arith.constant 0.000000e+00 : f32
    %51 = vector.broadcast %cst_32 : f32 to vector<8x64xf32>
    %52 = arith.maximumf %50, %51 : vector<8x64xf32>
    %c0_33 = arith.constant 0 : index
    %c0_34 = arith.constant 0 : index
    %c0_35 = arith.constant 0 : index
    %53 = vector.load %arg4[%c0_33, %c0_34, %c0_35] : memref<1x64x32xf32, #tpu.memory_space<vmem>>, vector<1x64x32xf32>
    %54 = vector.shape_cast %53 : vector<1x64x32xf32> to vector<64x32xf32>
    %cst_36 = arith.constant dense<0.000000e+00> : vector<8x32xf32>
    %55 = tpu.matmul %52, %54, %cst_36 {dimension_numbers = #tpu.dot_dimension_numbers<[1], [0], [0], [1], [0, 0, 1, 1], [], []>} : vector<8x64xf32>, vector<64x32xf32>, vector<8x32xf32> -> vector<8x32xf32>
    %c0_37 = arith.constant 0 : index
    %c0_38 = arith.constant 0 : index
    %56 = vector.load %arg5[%c0_37, %c0_38] : memref<1x32xf32, #tpu.memory_space<vmem>>, vector<1x32xf32>
    %57 = vector.broadcast %56 : vector<1x32xf32> to vector<8x32xf32>
    %58 = arith.addf %55, %57 : vector<8x32xf32>
    %59 = arith.addf %58, %1 : vector<8x32xf32>
    %cst_39 = arith.constant dense<0.000000e+00> : vector<8xf32>
    %60 = vector.multi_reduction <add>, %59, %cst_39 [1] : vector<8x32xf32> to vector<8xf32>
    %61 = vector.shape_cast %60 : vector<8xf32> to vector<8x1xf32>
    %cst_40 = arith.constant 3.200000e+01 : f32
    %62 = vector.broadcast %cst_40 : f32 to vector<8x1xf32>
    %63 = arith.divf %61, %62 : vector<8x1xf32>
    %64 = vector.broadcast %63 : vector<8x1xf32> to vector<8x32xf32>
    %65 = arith.subf %59, %64 : vector<8x32xf32>
    %66 = arith.mulf %65, %65 : vector<8x32xf32>
    %cst_41 = arith.constant dense<0.000000e+00> : vector<8xf32>
    %67 = vector.multi_reduction <add>, %66, %cst_41 [1] : vector<8x32xf32> to vector<8xf32>
    %68 = vector.shape_cast %67 : vector<8xf32> to vector<8x1xf32>
    %cst_42 = arith.constant 3.200000e+01 : f32
    %69 = vector.broadcast %cst_42 : f32 to vector<8x1xf32>
    %70 = arith.divf %68, %69 : vector<8x1xf32>
    %cst_43 = arith.constant 9.99999974E-6 : f32
    %71 = vector.broadcast %cst_43 : f32 to vector<8x1xf32>
    %72 = arith.addf %70, %71 : vector<8x1xf32>
    %73 = math.rsqrt %72 : vector<8x1xf32>
    %74 = vector.broadcast %73 : vector<8x1xf32> to vector<8x32xf32>
    %75 = arith.mulf %65, %74 : vector<8x32xf32>
    %c0_44 = arith.constant 0 : index
    %c0_45 = arith.constant 0 : index
    %76 = vector.load %arg6[%c0_44, %c0_45] : memref<1x32xf32, #tpu.memory_space<vmem>>, vector<1x32xf32>
    %77 = vector.broadcast %76 : vector<1x32xf32> to vector<8x32xf32>
    %78 = arith.mulf %75, %77 : vector<8x32xf32>
    %c0_46 = arith.constant 0 : index
    %c0_47 = arith.constant 0 : index
    %79 = vector.load %arg7[%c0_46, %c0_47] : memref<1x32xf32, #tpu.memory_space<vmem>>, vector<1x32xf32>
    %80 = vector.broadcast %79 : vector<1x32xf32> to vector<8x32xf32>
    %81 = arith.addf %78, %80 : vector<8x32xf32>
    %c0_48 = arith.constant 0 : index
    %c0_49 = arith.constant 0 : index
    %c0_50 = arith.constant 0 : index
    %82 = vector.load %arg8[%c0_48, %c0_49, %c0_50] : memref<1x8x1xf32, #tpu.memory_space<vmem>>, vector<1x8x1xf32>
    %83 = vector.shape_cast %82 : vector<1x8x1xf32> to vector<8x1xf32>
    %84 = vector.broadcast %83 : vector<8x1xf32> to vector<8x32xf32>
    %85 = arith.mulf %81, %84 : vector<8x32xf32>
    %c0_51 = arith.constant 0 : index
    %c0_52 = arith.constant 0 : index
    %c0_53 = arith.constant 0 : index
    %86 = vector.load %arg9[%c0_51, %c0_52, %c0_53] : memref<1x8x32xf32, #tpu.memory_space<vmem>>, vector<1x8x32xf32>
    %87 = vector.shape_cast %86 : vector<1x8x32xf32> to vector<8x32xf32>
    %88 = vector.shape_cast %85 : vector<8x32xf32> to vector<1x8x32xf32>
    tpu.vector_store %arg9[%c0_51, %c0_52, %c0_53], %88 {strides = array<i32>} : memref<1x8x32xf32, #tpu.memory_space<vmem>>, vector<1x8x32xf32>,
    return
  }
  func.func @transform_0(%arg0: i32) -> (i32, i32, i32) {
    %c0_i32 = arith.constant 0 : i32
    %c0_i32_0 = arith.constant 0 : i32
    %c0_i32_1 = arith.constant 0 : i32
    return %arg0, %c0_i32, %c0_i32_0 : i32, i32, i32
  }
  func.func @transform_1(%arg0: i32) -> (i32, i32, i32) {
    %c0_i32 = arith.constant 0 : i32
    %c0_i32_0 = arith.constant 0 : i32
    %c0_i32_1 = arith.constant 0 : i32
    %c0_i32_2 = arith.constant 0 : i32
    return %c0_i32, %c0_i32_0, %c0_i32_1 : i32, i32, i32
  }
  func.func @transform_2(%arg0: i32) -> (i32, i32) {
    %c0_i32 = arith.constant 0 : i32
    %c0_i32_0 = arith.constant 0 : i32
    %c0_i32_1 = arith.constant 0 : i32
    return %c0_i32, %c0_i32_0 : i32, i32
  }
  func.func @transform_3(%arg0: i32) -> (i32, i32, i32) {
    %c0_i32 = arith.constant 0 : i32
    %c0_i32_0 = arith.constant 0 : i32
    %c0_i32_1 = arith.constant 0 : i32
    %c0_i32_2 = arith.constant 0 : i32
    return %c0_i32, %c0_i32_0, %c0_i32_1 : i32, i32, i32
  }
  func.func @transform_4(%arg0: i32) -> (i32, i32) {
    %c0_i32 = arith.constant 0 : i32
    %c0_i32_0 = arith.constant 0 : i32
    %c0_i32_1 = arith.constant 0 : i32
    return %c0_i32, %c0_i32_0 : i32, i32
  }
  func.func @transform_5(%arg0: i32) -> (i32, i32) {
    %c0_i32 = arith.constant 0 : i32
    %c0_i32_0 = arith.constant 0 : i32
    %c0_i32_1 = arith.constant 0 : i32
    return %c0_i32, %c0_i32_0 : i32, i32
  }
  func.func @transform_6(%arg0: i32) -> (i32, i32) {
    %c0_i32 = arith.constant 0 : i32
    %c0_i32_0 = arith.constant 0 : i32
    %c0_i32_1 = arith.constant 0 : i32
    return %c0_i32, %c0_i32_0 : i32, i32
  }
  func.func @transform_7(%arg0: i32) -> (i32, i32, i32) {
    %c0_i32 = arith.constant 0 : i32
    %c0_i32_0 = arith.constant 0 : i32
    %c0_i32_1 = arith.constant 0 : i32
    return %arg0, %c0_i32, %c0_i32_0 : i32, i32, i32
  }
  func.func @transform_8(%arg0: i32) -> (i32, i32, i32) {
    %c0_i32 = arith.constant 0 : i32
    %c0_i32_0 = arith.constant 0 : i32
    %c0_i32_1 = arith.constant 0 : i32
    return %arg0, %c0_i32, %c0_i32_0 : i32, i32, i32
  }
}

</mosaic_0001>

<llo_original>
// kernel: fft_block_forward.5
$region0: #{fft_block_forward.5}
  #allocation0 [shape = 'u32[]', space=smem, size = 0x4, offset = 0x4, fixed_abs, tag = 'smem constant byte address 0x4 - core index']
  #allocation1 [shape = 'u32[144,128]{1,0:T(1,128)}', space=vmem, size = 0x12000, scoped, tag = 'internal scratch']
  %s0 = inlined_call_operand.vmem [shape: f32[2,8,32], index: 0, kind: input, shape index: {}]
  %s1 = inlined_call_operand.vmem [shape: f32[2,8,32], index: 1, kind: input, shape index: {}]
  %s2 = inlined_call_operand.vmem [shape: f32[2,8,32], index: 2, kind: input, shape index: {}]
  %s3 = inlined_call_operand.hbm [shape: f32[2,1,8], index: 3, kind: input, shape index: {}]
  %s4 = inlined_call_operand.vmem [shape: f32[2,8,32], index: 4, kind: output, shape index: {0}]
  %s5 = inlined_call_operand.hbm [shape: f32[2,2,8,8], index: 5, kind: output, shape index: {1}]
  %6 = xla_tuple %s4, %s5
  %s7 = sld [smem:[#allocation0]]
  $region61: #{fft_block_forward.5} parent=0
    _
  %s9 = ssub.s32 1, %s7
  %s10 = scalar_select 0, %s9, %s7
  $region1: #{fft_block_forward.5} parent=0
    #allocation2 [shape = 'u8[1024]{0}', space=vmem, size = 0x400, scoped, tag = 'input window, operand 3']
    #allocation3 [shape = 's32[2]{0}', space=sflag, size = 0x8, scoped, tag = 'scoped memory for fft_block_forward.5']
    #allocation4 [shape = 's32[2]{0}', space=sflag, size = 0x8, scoped, tag = 'scoped memory for fft_block_forward.5']
    #allocation5 [shape = 'u8[16384]{0}', space=vmem, size = 0x4000, scoped, tag = 'output window, operand 1']
    %11 = vsyncpa [#allocation3], 0
    %s12 = scalar_lea.sflag [#allocation3], 1
    %13 = vsyncpa %s12, 0
    %14 = vsyncpa [#allocation4], 0
    %s15 = scalar_lea.sflag [#allocation4], 1
    %16 = vsyncpa %s15, 0
    loop: start=0, step=1, limit=4
    $region2: #{fft_block_forward.5} parent=1 // loop_pre_header
      _
    $region3: #{fft_block_forward.5} parent=1 // loop_header
      %s18 = sphi 0, %s22
      %p19 = scmp.ge.s32.totalorder %s18, 4
      %s25 = sphi 0, %s37
      %s26 = sphi 0, %s33
      %s27 = sphi 0, %s25
      %s28 = sphi 0, %s26
      %s29 = sphi 0, %s27
      %s30 = sphi 0, %s28
      %s42 = sphi 0, %s44
      %s45 = sphi 0, %s42
      %s46 = sphi 0, %s45
      %s62 = sphi 0, %s46
      %s70 = sphi 0, %s72
      %s73 = sphi 0, %s70
      %s74 = sphi 0, %s73
      %s90 = sphi 0, %s74
      %s98 = sphi 0, %s100
      %s101 = sphi 0, %s98
      %s102 = sphi 0, %s101
      %s118 = sphi 0, %s102
      %s124 = sphi 0, %s126
      %s127 = sphi 0, %s124
      %s128 = sphi 0, %s127
      %s144 = sphi 0, %s128
      %s152 = sphi 0, %s154
      %s155 = sphi 0, %s152
      %s156 = sphi 0, %s155
      %s172 = sphi 0, %s156
      %s180 = sphi 0, %s182
      %s183 = sphi 0, %s180
      %s184 = sphi 0, %s183
      %s200 = sphi 0, %s184
    $region4: #{fft_block_forward.5} parent=1 // loop_header_branch
      %21 = sbr.rel (%p19) target = $region8
    $region5: #{fft_block_forward.5} parent=1 // loop_body
      %s23 = ssub.s32 %s18, 1
      %s24 = ssub.s32 %s18, 2
      %s31 = sadd.s32 1, %s26
      %p32 = scmp.ge.s32.totalorder %s31, 1
      %s33 = scalar_select %p32, 0, %s31
      %s34 = sadd.s32 1, %s25
      %s35 = scalar_select %p32, %s34, %s25
      %p36 = scmp.ge.s32.totalorder %s35, 2
      %s37 = scalar_select %p36, 0, %s35
      %s38 = ssub.s32 %s25, %s37
      %s39 = ssub.s32 %s26, %s33
      %s40 = sor.u32 %s38, %s39
      %p41 = scmp.eq.s32.totalorder %s40, 0
      %s43 = sadd.s32 %s42, 1
      %s44 = scalar_select %p41, %s42, %s43
      %p47 = pneg %p41
      %p48 = scmp.eq.s32.totalorder %s18, 1
      %p49 = por %p47, %p48
      %p50 = scmp.ne.s32.totalorder %s42, %s45
      %p51 = scmp.eq.s32.totalorder %s18, 0
      %p52 = por %p50, %p51
      %p53 = scmp.ne.s32.totalorder %s42, %s45
      %p54 = scmp.eq.s32.totalorder %s23, 1
      %p55 = por %p53, %p54
      %p56 = scmp.ne.s32.totalorder %s45, %s46
      %p57 = scmp.eq.s32.totalorder %s23, 0
      %p58 = por %p56, %p57
      %p59 = scmp.ne.s32.totalorder %s45, %s46
      %p60 = scmp.eq.s32.totalorder %s24, 1
      %p61 = por %p59, %p60
      %p63 = scmp.ne.s32.totalorder %s46, %s62
      %p64 = scmp.eq.s32.totalorder %s24, 0
      %p65 = por %p63, %p64
      %s66 = ssub.s32 %s25, %s37
      %s67 = ssub.s32 %s26, %s33
      %s68 = sor.u32 %s66, %s67
      %p69 = scmp.eq.s32.totalorder %s68, 0
      %s71 = sadd.s32 %s70, 1
      %s72 = scalar_select %p69, %s70, %s71
      %p75 = pneg %p69
      %p76 = scmp.eq.s32.totalorder %s18, 1
      %p77 = por %p75, %p76
      %p78 = scmp.ne.s32.totalorder %s70, %s73
      %p79 = scmp.eq.s32.totalorder %s18, 0
      %p80 = por %p78, %p79
      %p81 = scmp.ne.s32.totalorder %s70, %s73
      %p82 = scmp.eq.s32.totalorder %s23, 1
      %p83 = por %p81, %p82
      %p84 = scmp.ne.s32.totalorder %s73, %s74
      %p85 = scmp.eq.s32.totalorder %s23, 0
      %p86 = por %p84, %p85
      %p87 = scmp.ne.s32.totalorder %s73, %s74
      %p88 = scmp.eq.s32.totalorder %s24, 1
      %p89 = por %p87, %p88
      %p91 = scmp.ne.s32.totalorder %s74, %s90
      %p92 = scmp.eq.s32.totalorder %s24, 0
      %p93 = por %p91, %p92
      %s94 = ssub.s32 %s25, %s37
      %s95 = ssub.s32 %s26, %s33
      %s96 = sor.u32 %s94, %s95
      %p97 = scmp.eq.s32.totalorder %s96, 0
      %s99 = sadd.s32 %s98, 1
      %s100 = scalar_select %p97, %s98, %s99
      %p103 = pneg %p97
      %p104 = scmp.eq.s32.totalorder %s18, 1
      %p105 = por %p103, %p104
      %p106 = scmp.ne.s32.totalorder %s98, %s101
      %p107 = scmp.eq.s32.totalorder %s18, 0
      %p108 = por %p106, %p107
      %p109 = scmp.ne.s32.totalorder %s98, %s101
      %p110 = scmp.eq.s32.totalorder %s23, 1
      %p111 = por %p109, %p110
      %p112 = scmp.ne.s32.totalorder %s101, %s102
      %p113 = scmp.eq.s32.totalorder %s23, 0
      %p114 = por %p112, %p113
      %p115 = scmp.ne.s32.totalorder %s101, %s102
      %p116 = scmp.eq.s32.totalorder %s24, 1
      %p117 = por %p115, %p116
      %p119 = scmp.ne.s32.totalorder %s102, %s118
      %p120 = scmp.eq.s32.totalorder %s24, 0
      %p121 = por %p119, %p120
      %s122 = ssub.s32 %s25, %s37
      %p123 = scmp.eq.s32.totalorder %s122, 0
      %s125 = sadd.s32 %s124, 1
      %s126 = scalar_select %p123, %s124, %s125
      %p129 = pneg %p123
      %p130 = scmp.eq.s32.totalorder %s18, 1
      %p131 = por %p129, %p130
      %p132 = scmp.ne.s32.totalorder %s124, %s127
      %p133 = scmp.eq.s32.totalorder %s18, 0
      %p134 = por %p132, %p133
      %p135 = scmp.ne.s32.totalorder %s124, %s127
      %p136 = scmp.eq.s32.totalorder %s23, 1
      %p137 = por %p135, %p136
      %p138 = scmp.ne.s32.totalorder %s127, %s128
      %p139 = scmp.eq.s32.totalorder %s23, 0
      %p140 = por %p138, %p139
      %p141 = scmp.ne.s32.totalorder %s127, %s128
      %p142 = scmp.eq.s32.totalorder %s24, 1
      %p143 = por %p141, %p142
      %p145 = scmp.ne.s32.totalorder %s128, %s144
      %p146 = scmp.eq.s32.totalorder %s24, 0
      %p147 = por %p145, %p146
      %s148 = ssub.s32 %s25, %s37
      %s149 = ssub.s32 %s26, %s33
      %s150 = sor.u32 %s148, %s149
      %p151 = scmp.eq.s32.totalorder %s150, 0
      %s153 = sadd.s32 %s152, 1
      %s154 = scalar_select %p151, %s152, %s153
      %p157 = pneg %p151
      %p158 = scmp.eq.s32.totalorder %s18, 1
      %p159 = por %p157, %p158
      %p160 = scmp.ne.s32.totalorder %s152, %s155
      %p161 = scmp.eq.s32.totalorder %s18, 0
      %p162 = por %p160, %p161
      %p163 = scmp.ne.s32.totalorder %s152, %s155
      %p164 = scmp.eq.s32.totalorder %s23, 1
      %p165 = por %p163, %p164
      %p166 = scmp.ne.s32.totalorder %s155, %s156
      %p167 = scmp.eq.s32.totalorder %s23, 0
      %p168 = por %p166, %p167
      %p169 = scmp.ne.s32.totalorder %s155, %s156
      %p170 = scmp.eq.s32.totalorder %s24, 1
      %p171 = por %p169, %p170
      %p173 = scmp.ne.s32.totalorder %s156, %s172
      %p174 = scmp.eq.s32.totalorder %s24, 0
      %p175 = por %p173, %p174
      %s176 = ssub.s32 %s26, %s33
      %s177 = ssub.s32 %s25, %s37
      %s178 = sor.u32 %s176, %s177
      %p179 = scmp.eq.s32.totalorder %s178, 0
      %s181 = sadd.s32 %s180, 1
      %s182 = scalar_select %p179, %s180, %s181
      %p185 = pneg %p179
      %p186 = scmp.eq.s32.totalorder %s18, 1
      %p187 = por %p185, %p186
      %p188 = scmp.ne.s32.totalorder %s180, %s183
      %p189 = scmp.eq.s32.totalorder %s18, 0
      %p190 = por %p188, %p189
      %p191 = scmp.ne.s32.totalorder %s180, %s183
      %p192 = scmp.eq.s32.totalorder %s23, 1
      %p193 = por %p191, %p192
      %p194 = scmp.ne.s32.totalorder %s183, %s184
      %p195 = scmp.eq.s32.totalorder %s23, 0
      %p196 = por %p194, %p195
      %p197 = scmp.ne.s32.totalorder %s183, %s184
      %p198 = scmp.eq.s32.totalorder %s24, 1
      %p199 = por %p197, %p198
      %p201 = scmp.ne.s32.totalorder %s184, %s200
      %p202 = scmp.eq.s32.totalorder %s24, 0
      %p203 = por %p201, %p202
      %p204 = scmp.le.s32.totalorder 1, %s18
      %p205 = scmp.lt.s32.totalorder %s18, 3
      %p206 = pnand %p204, %p205
      %p207 = pneg %p206
      // Predicated region
      $region9: #{fft_block_forward.5} parent=5 // pred_check
        _
      $region10: #{fft_block_forward.5} parent=5 // pred_check_branch
        %209 = sbr.rel (%p206) target = $region12
      $region11: #{fft_block_forward.5} parent=5 // pred_region
        %s210 = ssub.s32 %s18, 1
      $region12: #{fft_block_forward.5} parent=5 // pred_fallthru
        _
      %p211 = scmp.lt.s32.totalorder %s18, 2
      // Predicated region
      $region13: #{fft_block_forward.5} parent=5 // pred_check
        %p212 = pneg %p211
      $region14: #{fft_block_forward.5} parent=5 // pred_check_branch
        %214 = sbr.rel (%p212) target = $region16
      $region15: #{fft_block_forward.5} parent=5 // pred_region
        // Predicated region
        $region17: #{fft_block_forward.5} parent=15 // pred_check
          %p215 = pneg %p52
        $region18: #{fft_block_forward.5} parent=15 // pred_check_branch
          %217 = sbr.rel (%p215) target = $region20
        $region19: #{fft_block_forward.5} parent=15 // pred_region
          %p218 = scmp.lt.s32.totalorder %s25, 1
          %s219 = scalar_select %p218, %s25, 1
          %p220 = scmp.lt.s32.totalorder %s26, 0
          %s221 = scalar_select %p220, %s26, 0
          %s222 = sadd.s32 %s221, %s219
          %s223 = smul.addr %s222, 8
          %s224 = scalar_lea.vmem %s0, %s223
        $region20: #{fft_block_forward.5} parent=15 // pred_fallthru
          _
        // Predicated region
        $region21: #{fft_block_forward.5} parent=15 // pred_check
          %p225 = pneg %p80
        $region22: #{fft_block_forward.5} parent=15 // pred_check_branch
          %227 = sbr.rel (%p225) target = $region24
        $region23: #{fft_block_forward.5} parent=15 // pred_region
          %p228 = scmp.lt.s32.totalorder %s25, 1
          %s229 = scalar_select %p228, %s25, 1
          %p230 = scmp.lt.s32.totalorder %s26, 0
          %s231 = scalar_select %p230, %s26, 0
          %s232 = sadd.s32 %s231, %s229
          %s233 = smul.addr %s232, 8
          %s234 = scalar_lea.vmem %s1, %s233
        $region24: #{fft_block_forward.5} parent=15 // pred_fallthru
          _
        // Predicated region
        $region25: #{fft_block_forward.5} parent=15 // pred_check
          %p235 = pneg %p108
        $region26: #{fft_block_forward.5} parent=15 // pred_check_branch
          %237 = sbr.rel (%p235) target = $region28
        $region27: #{fft_block_forward.5} parent=15 // pred_region
          %p238 = scmp.lt.s32.totalorder %s25, 1
          %s239 = scalar_select %p238, %s25, 1
          %p240 = scmp.lt.s32.totalorder %s26, 0
          %s241 = scalar_select %p240, %s26, 0
          %s242 = sadd.s32 %s241, %s239
          %s243 = smul.addr %s242, 8
          %s244 = scalar_lea.vmem %s2, %s243
        $region28: #{fft_block_forward.5} parent=15 // pred_fallthru
          _
        // Predicated region
        $region29: #{fft_block_forward.5} parent=15 // pred_check
          %p245 = pneg %p134
        $region30: #{fft_block_forward.5} parent=15 // pred_check_branch
          %247 = sbr.rel (%p245) target = $region32
        $region31: #{fft_block_forward.5} parent=15 // pred_region
          %s248 = sand.u32 %s124, 1
          %s249 = scalar_lea.sflag [#allocation3], %s248
          %s250 = sand.u32 %s124, 1
          %s251 = scalar_lea.vmem [#allocation2], %s250
          %s253 = ssub.s32 16, 16
          %254 = vsyncadd %s249, %s253
          %s255 = smul.addr %s25, 16
          %s256 = scalar_lea.hbm %s3, %s255
          %s258 = sshll.u32 %s251, 4
          %s259 = int_to_ptr.vmem [resolvable:$true] %s258
          %261 = dma.hbm_to_vmem [thread:$0]  %s256, 16, %s259, %s249
        $region32: #{fft_block_forward.5} parent=15 // pred_fallthru
          _
      $region16: #{fft_block_forward.5} parent=5 // pred_fallthru
        _
      %p262 = scmp.le.s32.totalorder 1, %s18
      %p263 = scmp.lt.s32.totalorder %s18, 3
      %p264 = pnand %p262, %p263
      %p265 = pneg %p264
      // Predicated region
      $region33: #{fft_block_forward.5} parent=5 // pred_check
        _
      $region34: #{fft_block_forward.5} parent=5 // pred_check_branch
        %267 = sbr.rel (%p264) target = $region36
      $region35: #{fft_block_forward.5} parent=5 // pred_region
        %s268 = ssub.s32 %s18, 1
        %s269 = sand.u32 %s127, 1
        %s270 = scalar_lea.sflag [#allocation3], %s269
        %s271 = sand.u32 %s127, 1
        %s272 = scalar_lea.vmem [#allocation2], %s271
        // Predicated region
        $region37: #{fft_block_forward.5} parent=35 // pred_check
          %p273 = pneg %p140
        $region38: #{fft_block_forward.5} parent=35 // pred_check_branch
          %275 = sbr.rel (%p273) target = $region40
        $region39: #{fft_block_forward.5} parent=35 // pred_region
          %276 = dma.done %s270, 16
        $region40: #{fft_block_forward.5} parent=35 // pred_fallthru
          _
        %p277 = scmp.lt.s32.totalorder %s27, 1
        %s278 = scalar_select %p277, %s27, 1
        %p279 = scmp.lt.s32.totalorder %s28, 0
        %s280 = scalar_select %p279, %s28, 0
        %s281 = sadd.s32 %s280, %s278
        %s282 = smul.addr %s281, 8
        %s283 = scalar_lea.vmem %s0, %s282
        %p284 = pneg %p58
        %p285 = pneg %p55
        %p286 = scmp.lt.s32.totalorder %s27, 1
        %s287 = scalar_select %p286, %s27, 1
        %p288 = scmp.lt.s32.totalorder %s28, 0
        %s289 = scalar_select %p288, %s28, 0
        %s290 = sadd.s32 %s289, %s287
        %s291 = smul.addr %s290, 8
        %s292 = scalar_lea.vmem %s1, %s291
        %p293 = pneg %p86
        %p294 = pneg %p83
        %p295 = scmp.lt.s32.totalorder %s27, 1
        %s296 = scalar_select %p295, %s27, 1
        %p297 = scmp.lt.s32.totalorder %s28, 0
        %s298 = scalar_select %p297, %s28, 0
        %s299 = sadd.s32 %s298, %s296
        %s300 = smul.addr %s299, 8
        %s301 = scalar_lea.vmem %s2, %s300
        %p302 = pneg %p114
        %p303 = pneg %p111
        %s304 = sand.u32 %s127, 1
        %s305 = scalar_lea.sflag [#allocation3], %s304
        %s306 = sand.u32 %s127, 1
        %s307 = scalar_lea.vmem [#allocation2], %s306
        %p308 = pneg %p140
        %p309 = pneg %p137
        %p310 = pneg %p168
        %p311 = pneg %p165
        %p312 = scmp.lt.s32.totalorder %s27, 1
        %s313 = scalar_select %p312, %s27, 1
        %p314 = scmp.lt.s32.totalorder %s28, 0
        %s315 = scalar_select %p314, %s28, 0
        %s316 = sadd.s32 %s315, %s313
        %s317 = smul.addr %s316, 8
        %s318 = scalar_lea.vmem %s4, %s317
        %p319 = pneg %p196
        %p320 = pneg %p193
        %s321 = sand.u32 %s183, 1
        %s322 = scalar_lea.sflag [#allocation4], %s321
        %s323 = sand.u32 %s183, 1
        %s324 = smul.addr %s323, 16
        %s325 = scalar_lea.vmem [#allocation5], %s324
        %p326 = scmp.lt.s32.totalorder %s27, 1
        %s327 = scalar_select %p326, %s27, 1
        %p328 = scmp.lt.s32.totalorder %s28, 0
        %s329 = scalar_select %p328, %s28, 0
        %s330 = sadd.s32 %s329, %s327
        %s331 = smul.addr %s330, 8
        %s332 = scalar_lea.vmem %s0, %s331
        %p333 = scmp.lt.s32.totalorder %s27, 1
        %s334 = scalar_select %p333, %s27, 1
        %p335 = scmp.lt.s32.totalorder %s28, 0
        %s336 = scalar_select %p335, %s28, 0
        %s337 = sadd.s32 %s336, %s334
        %s338 = smul.addr %s337, 8
        %s339 = scalar_lea.vmem %s1, %s338
        %p340 = scmp.lt.s32.totalorder %s27, 1
        %s341 = scalar_select %p340, %s27, 1
        %p342 = scmp.lt.s32.totalorder %s28, 0
        %s343 = scalar_select %p342, %s28, 0
        %s344 = sadd.s32 %s343, %s341
        %s345 = smul.addr %s344, 8
        %s346 = scalar_lea.vmem %s2, %s345
        %p347 = scmp.lt.s32.totalorder %s27, 1
        %s348 = scalar_select %p347, %s27, 1
        %p349 = scmp.lt.s32.totalorder %s28, 0
        %s350 = scalar_select %p349, %s28, 0
        %s351 = sadd.s32 %s350, %s348
        %s352 = smul.addr %s351, 8
        %s353 = scalar_lea.vmem %s4, %s352
        %s354 = smul.u32 2, %s28
        %v355 = vld [vmem:[%s272] sm:$0x1]
        %v356 = vld [vmem:[%s332] sm:$0xff]
        %v357 = vld [vmem:[%s339] sm:$0xff]
        %v358 = vld [vmem:[%s346] sm:$0xff]
        %vm359 = vcmask 130048
        %v361 = vsel %vm359, %v356, 0
        %v364 = vsel %vm359, %v357, 0
        %366 = vmatprep.subr.mxu0 0.0
        %367 = vmatpush1.xpose.msra.mxu0 0.0
        %368 = vmatprep.subr.mxu0 0.0
        %369 = vmatpush1.xpose.msra.mxu0 0.0
        %370 = vmatprep.subr.mxu0 0.0
        %371 = vmatpush1.xpose.msra.mxu0 0.0
        %372 = vmatprep.subr.mxu0 0.0
        %373 = vmatpush1.xpose.msra.mxu0 0.0
        %374 = vmatprep.subr.mxu0 0.0
        %375 = vmatpush1.xpose.msra.mxu0 0.0
        %376 = vmatprep.subr.mxu0 0.0
        %377 = vmatpush1.xpose.msra.mxu0 0.0
        %378 = vmatprep.subr.mxu0 0.0
        %379 = vmatpush1.xpose.msra.mxu0 0.0
        %380 = vmatprep.subr.mxu0 0.0
        %381 = vmatpush1.xpose.msra.mxu0 0.0
        %382 = vmatprep.subr.mxu0 0.0
        %383 = vmatpush1.xpose.msra.mxu0 0.0
        %384 = vmatprep.subr.mxu0 0.0
        %385 = vmatpush1.xpose.msra.mxu0 0.0
        %386 = vmatprep.subr.mxu0 0.0
        %387 = vmatpush1.xpose.msra.mxu0 0.0
        %388 = vmatprep.subr.mxu0 0.0
        %389 = vmatpush1.xpose.msra.mxu0 0.0
        %390 = vmatprep.subr.mxu0 0.0
        %391 = vmatpush1.xpose.msra.mxu0 0.0
        %392 = vmatprep.subr.mxu0 0.0
        %393 = vmatpush1.xpose.msra.mxu0 0.0
        %394 = vmatprep.subr.mxu0 0.0
        %395 = vmatpush1.xpose.msra.mxu0 0.0
        %396 = vmatprep.subr.mxu0 0.0
        %397 = vmatpush1.xpose.msra.mxu0 %v364
        %398 = vmatprep.subr.mxu0 0.0
        %399 = vmatpush2.xpose.msra.mxu0 0.0
        %400 = vmatprep.subr.mxu0 0.0
        %401 = vmatpush2.xpose.msra.mxu0 0.0
        %402 = vmatprep.subr.mxu0 0.0
        %403 = vmatpush2.xpose.msra.mxu0 0.0
        %404 = vmatprep.subr.mxu0 0.0
        %405 = vmatpush2.xpose.msra.mxu0 0.0
        %406 = vmatprep.subr.mxu0 0.0
        %407 = vmatpush2.xpose.msra.mxu0 0.0
        %408 = vmatprep.subr.mxu0 0.0
        %409 = vmatpush2.xpose.msra.mxu0 0.0
        %410 = vmatprep.subr.mxu0 0.0
        %411 = vmatpush2.xpose.msra.mxu0 0.0
        %412 = vmatprep.subr.mxu0 0.0
        %413 = vmatpush2.xpose.msra.mxu0 0.0
        %414 = vmatprep.subr.mxu0 0.0
        %415 = vmatpush2.xpose.msra.mxu0 0.0
        %416 = vmatprep.subr.mxu0 0.0
        %417 = vmatpush2.xpose.msra.mxu0 0.0
        %418 = vmatprep.subr.mxu0 0.0
        %419 = vmatpush2.xpose.msra.mxu0 0.0
        %420 = vmatprep.subr.mxu0 0.0
        %421 = vmatpush2.xpose.msra.mxu0 0.0
        %422 = vmatprep.subr.mxu0 0.0
        %423 = vmatpush2.xpose.msra.mxu0 0.0
        %424 = vmatprep.subr.mxu0 0.0
        %425 = vmatpush2.xpose.msra.mxu0 0.0
        %426 = vmatprep.subr.mxu0 0.0
        %427 = vmatpush2.xpose.msra.mxu0 0.0
        %428 = vmatprep.subr.mxu0 0.0
        %429 = vmatpush2.xpose.msra.mxu0 0.0
        %430 = vmatprep.mubr.f32.mxu0 0.0
        %431 = vmatmul.mubr.f32.gmra.mxu0 %v361
        %v432 = vpop.f32.mrf.mxu0
        %v433 = vadd.f32 0.0, %v432
        %v434 = vpop.f32.mrf.mxu0
        %435 = vdwg.mxu0
        %v436 = vmul.f32 %v433, 0.25
        %vm437 = vcmp.gt.f32.partialorder %v355, 0.0
        %v438 = vsel %vm437, 1, 0
        %v439 = vlaneseq
        %v440 = vshrl.u32 %v439, 7
        %v441 = vsub.s32 0, %v440
        %v442 = vrot.slane %v438, %v441
        %vm443 = vcmp.eq.s32.totalorder %v442, 1
        %v444 = vsel %vm443, -inf, %v436
        %vm445 = vcmask 64512
        %v446 = vsel %vm445, %v444, -inf
        %447 = vmax.xlane.f32.xlu0 %v446
        %v448 = vpop.xlane.xlu0 %447
        %v449 = vsub.f32 %v444, %v448
        %v450 = vmul.f32 %v449, 1.442695
        %v451 = vpow.pop %v450
        %v452 = vsel %vm445, %v451, 0.0
        %453 = vadd.xlane.f32.xlu0 %v452
        %v454 = vpop.xlane.xlu0 %453
        %v455 = vrcp.pop %v454
        %v456 = vmul.f32 %v451, %v455
        %457 = vst.msk [vmem:[%s325] sm:$0xff] %vm445, %v456
        %v459 = vsel %vm445, %v456, 0
        %461 = vmatprep.subr.mxu0 0.0
        %462 = vmatpush1.msra.mxu0 0.0
        %463 = vmatprep.subr.mxu0 0.0
        %464 = vmatpush1.msra.mxu0 0.0
        %465 = vmatprep.subr.mxu0 0.0
        %466 = vmatpush1.msra.mxu0 0.0
        %467 = vmatprep.subr.mxu0 0.0
        %468 = vmatpush1.msra.mxu0 0.0
        %469 = vmatprep.subr.mxu0 0.0
        %470 = vmatpush1.msra.mxu0 0.0
        %471 = vmatprep.subr.mxu0 0.0
        %472 = vmatpush1.msra.mxu0 0.0
        %473 = vmatprep.subr.mxu0 0.0
        %474 = vmatpush1.msra.mxu0 0.0
        %475 = vmatprep.subr.mxu0 0.0
        %476 = vmatpush1.msra.mxu0 0.0
        %477 = vmatprep.subr.mxu0 0.0
        %478 = vmatpush1.msra.mxu0 0.0
        %479 = vmatprep.subr.mxu0 0.0
        %480 = vmatpush1.msra.mxu0 0.0
        %481 = vmatprep.subr.mxu0 0.0
        %482 = vmatpush1.msra.mxu0 0.0
        %483 = vmatprep.subr.mxu0 0.0
        %484 = vmatpush1.msra.mxu0 0.0
        %485 = vmatprep.subr.mxu0 0.0
        %486 = vmatpush1.msra.mxu0 0.0
        %487 = vmatprep.subr.mxu0 0.0
        %488 = vmatpush1.msra.mxu0 0.0
        %489 = vmatprep.subr.mxu0 0.0
        %490 = vmatpush1.msra.mxu0 0.0
        %491 = vmatprep.subr.mxu0 0.0
        %492 = vmatpush1.msra.mxu0 %v358
        %493 = vmatprep.subr.mxu0 0.0
        %494 = vmatpush2.msra.mxu0 0.0
        %495 = vmatprep.subr.mxu0 0.0
        %496 = vmatpush2.msra.mxu0 0.0
        %497 = vmatprep.subr.mxu0 0.0
        %498 = vmatpush2.msra.mxu0 0.0
        %499 = vmatprep.subr.mxu0 0.0
        %500 = vmatpush2.msra.mxu0 0.0
        %501 = vmatprep.subr.mxu0 0.0
        %502 = vmatpush2.msra.mxu0 0.0
        %503 = vmatprep.subr.mxu0 0.0
        %504 = vmatpush2.msra.mxu0 0.0
        %505 = vmatprep.subr.mxu0 0.0
        %506 = vmatpush2.msra.mxu0 0.0
        %507 = vmatprep.subr.mxu0 0.0
        %508 = vmatpush2.msra.mxu0 0.0
        %509 = vmatprep.subr.mxu0 0.0
        %510 = vmatpush2.msra.mxu0 0.0
        %511 = vmatprep.subr.mxu0 0.0
        %512 = vmatpush2.msra.mxu0 0.0
        %513 = vmatprep.subr.mxu0 0.0
        %514 = vmatpush2.msra.mxu0 0.0
        %515 = vmatprep.subr.mxu0 0.0
        %516 = vmatpush2.msra.mxu0 0.0
        %517 = vmatprep.subr.mxu0 0.0
        %518 = vmatpush2.msra.mxu0 0.0
        %519 = vmatprep.subr.mxu0 0.0
        %520 = vmatpush2.msra.mxu0 0.0
        %521 = vmatprep.subr.mxu0 0.0
        %522 = vmatpush2.msra.mxu0 0.0
        %523 = vmatprep.subr.mxu0 0.0
        %524 = vmatpush2.msra.mxu0 0.0
        %525 = vmatprep.mubr.f32.mxu0 0.0
        %526 = vmatmul.mubr.f32.gmra.mxu0 %v459
        %v527 = vpop.f32.mrf.mxu0
        %v528 = vadd.f32 0.0, %v527
        %v529 = vpop.f32.mrf.mxu0
        %530 = vdwg.mxu0
        %v531 = vld [vmem:[%s332] sm:$0xff]
        %v532 = vld [vmem:[%s339] sm:$0xff]
        %v533 = vld [vmem:[%s346] sm:$0xff]
        %535 = vrot.lane.b32.xlu0 %v531, 112
        %v536 = vpop.permute.xlu0 %535
        %538 = vrot.lane.b32.xlu0 %v532, 112
        %v539 = vpop.permute.xlu0 %538
        %v540 = vsel %vm359, %v536, 0
        %v542 = vsel %vm359, %v539, 0
        %544 = vmatprep.subr.mxu0 0.0
        %545 = vmatpush1.xpose.msra.mxu0 0.0
        %546 = vmatprep.subr.mxu0 0.0
        %547 = vmatpush1.xpose.msra.mxu0 0.0
        %548 = vmatprep.subr.mxu0 0.0
        %549 = vmatpush1.xpose.msra.mxu0 0.0
        %550 = vmatprep.subr.mxu0 0.0
        %551 = vmatpush1.xpose.msra.mxu0 0.0
        %552 = vmatprep.subr.mxu0 0.0
        %553 = vmatpush1.xpose.msra.mxu0 0.0
        %554 = vmatprep.subr.mxu0 0.0
        %555 = vmatpush1.xpose.msra.mxu0 0.0
        %556 = vmatprep.subr.mxu0 0.0
        %557 = vmatpush1.xpose.msra.mxu0 0.0
        %558 = vmatprep.subr.mxu0 0.0
        %559 = vmatpush1.xpose.msra.mxu0 0.0
        %560 = vmatprep.subr.mxu0 0.0
        %561 = vmatpush1.xpose.msra.mxu0 0.0
        %562 = vmatprep.subr.mxu0 0.0
        %563 = vmatpush1.xpose.msra.mxu0 0.0
        %564 = vmatprep.subr.mxu0 0.0
        %565 = vmatpush1.xpose.msra.mxu0 0.0
        %566 = vmatprep.subr.mxu0 0.0
        %567 = vmatpush1.xpose.msra.mxu0 0.0
        %568 = vmatprep.subr.mxu0 0.0
        %569 = vmatpush1.xpose.msra.mxu0 0.0
        %570 = vmatprep.subr.mxu0 0.0
        %571 = vmatpush1.xpose.msra.mxu0 0.0
        %572 = vmatprep.subr.mxu0 0.0
        %573 = vmatpush1.xpose.msra.mxu0 0.0
        %574 = vmatprep.subr.mxu0 0.0
        %575 = vmatpush1.xpose.msra.mxu0 %v542
        %576 = vmatprep.subr.mxu0 0.0
        %577 = vmatpush2.xpose.msra.mxu0 0.0
        %578 = vmatprep.subr.mxu0 0.0
        %579 = vmatpush2.xpose.msra.mxu0 0.0
        %580 = vmatprep.subr.mxu0 0.0
        %581 = vmatpush2.xpose.msra.mxu0 0.0
        %582 = vmatprep.subr.mxu0 0.0
        %583 = vmatpush2.xpose.msra.mxu0 0.0
        %584 = vmatprep.subr.mxu0 0.0
        %585 = vmatpush2.xpose.msra.mxu0 0.0
        %586 = vmatprep.subr.mxu0 0.0
        %587 = vmatpush2.xpose.msra.mxu0 0.0
        %588 = vmatprep.subr.mxu0 0.0
        %589 = vmatpush2.xpose.msra.mxu0 0.0
        %590 = vmatprep.subr.mxu0 0.0
        %591 = vmatpush2.xpose.msra.mxu0 0.0
        %592 = vmatprep.subr.mxu0 0.0
        %593 = vmatpush2.xpose.msra.mxu0 0.0
        %594 = vmatprep.subr.mxu0 0.0
        %595 = vmatpush2.xpose.msra.mxu0 0.0
        %596 = vmatprep.subr.mxu0 0.0
        %597 = vmatpush2.xpose.msra.mxu0 0.0
        %598 = vmatprep.subr.mxu0 0.0
        %599 = vmatpush2.xpose.msra.mxu0 0.0
        %600 = vmatprep.subr.mxu0 0.0
        %601 = vmatpush2.xpose.msra.mxu0 0.0
        %602 = vmatprep.subr.mxu0 0.0
        %603 = vmatpush2.xpose.msra.mxu0 0.0
        %604 = vmatprep.subr.mxu0 0.0
        %605 = vmatpush2.xpose.msra.mxu0 0.0
        %606 = vmatprep.subr.mxu0 0.0
        %607 = vmatpush2.xpose.msra.mxu0 0.0
        %608 = vmatprep.mubr.f32.mxu0 0.0
        %609 = vmatmul.mubr.f32.gmra.mxu0 %v540
        %v610 = vpop.f32.mrf.mxu0
        %v611 = vadd.f32 0.0, %v610
        %v612 = vpop.f32.mrf.mxu0
        %613 = vdwg.mxu0
        %v614 = vmul.f32 %v611, 0.25
        %v615 = vsel %vm443, -inf, %v614
        %v616 = vsel %vm445, %v615, -inf
        %617 = vmax.xlane.f32.xlu0 %v616
        %v618 = vpop.xlane.xlu0 %617
        %v619 = vsub.f32 %v615, %v618
        %v620 = vmul.f32 %v619, 1.442695
        %v621 = vpow.pop %v620
        %v622 = vsel %vm445, %v621, 0.0
        %623 = vadd.xlane.f32.xlu0 %v622
        %v624 = vpop.xlane.xlu0 %623
        %v625 = vrcp.pop %v624
        %v626 = vmul.f32 %v621, %v625
        %s627 = scalar_lea.vmem %s325, 8 [#allocation5]
        %628 = vst.msk [vmem:[%s627] sm:$0xff] %vm445, %v626
        %630 = vrot.lane.b32.xlu0 %v533, 112
        %v631 = vpop.permute.xlu0 %630
        %v634 = vsel %vm445, %v626, 0
        %636 = vmatprep.subr.mxu0 0.0
        %637 = vmatpush1.msra.mxu0 0.0
        %638 = vmatprep.subr.mxu0 0.0
        %639 = vmatpush1.msra.mxu0 0.0
        %640 = vmatprep.subr.mxu0 0.0
        %641 = vmatpush1.msra.mxu0 0.0
        %642 = vmatprep.subr.mxu0 0.0
        %643 = vmatpush1.msra.mxu0 0.0
        %644 = vmatprep.subr.mxu0 0.0
        %645 = vmatpush1.msra.mxu0 0.0
        %646 = vmatprep.subr.mxu0 0.0
        %647 = vmatpush1.msra.mxu0 0.0
        %648 = vmatprep.subr.mxu0 0.0
        %649 = vmatpush1.msra.mxu0 0.0
        %650 = vmatprep.subr.mxu0 0.0
        %651 = vmatpush1.msra.mxu0 0.0
        %652 = vmatprep.subr.mxu0 0.0
        %653 = vmatpush1.msra.mxu0 0.0
        %654 = vmatprep.subr.mxu0 0.0
        %655 = vmatpush1.msra.mxu0 0.0
        %656 = vmatprep.subr.mxu0 0.0
        %657 = vmatpush1.msra.mxu0 0.0
        %658 = vmatprep.subr.mxu0 0.0
        %659 = vmatpush1.msra.mxu0 0.0
        %660 = vmatprep.subr.mxu0 0.0
        %661 = vmatpush1.msra.mxu0 0.0
        %662 = vmatprep.subr.mxu0 0.0
        %663 = vmatpush1.msra.mxu0 0.0
        %664 = vmatprep.subr.mxu0 0.0
        %665 = vmatpush1.msra.mxu0 0.0
        %666 = vmatprep.subr.mxu0 0.0
        %667 = vmatpush1.msra.mxu0 %v631
        %668 = vmatprep.subr.mxu0 0.0
        %669 = vmatpush2.msra.mxu0 0.0
        %670 = vmatprep.subr.mxu0 0.0
        %671 = vmatpush2.msra.mxu0 0.0
        %672 = vmatprep.subr.mxu0 0.0
        %673 = vmatpush2.msra.mxu0 0.0
        %674 = vmatprep.subr.mxu0 0.0
        %675 = vmatpush2.msra.mxu0 0.0
        %676 = vmatprep.subr.mxu0 0.0
        %677 = vmatpush2.msra.mxu0 0.0
        %678 = vmatprep.subr.mxu0 0.0
        %679 = vmatpush2.msra.mxu0 0.0
        %680 = vmatprep.subr.mxu0 0.0
        %681 = vmatpush2.msra.mxu0 0.0
        %682 = vmatprep.subr.mxu0 0.0
        %683 = vmatpush2.msra.mxu0 0.0
        %684 = vmatprep.subr.mxu0 0.0
        %685 = vmatpush2.msra.mxu0 0.0
        %686 = vmatprep.subr.mxu0 0.0
        %687 = vmatpush2.msra.mxu0 0.0
        %688 = vmatprep.subr.mxu0 0.0
        %689 = vmatpush2.msra.mxu0 0.0
        %690 = vmatprep.subr.mxu0 0.0
        %691 = vmatpush2.msra.mxu0 0.0
        %692 = vmatprep.subr.mxu0 0.0
        %693 = vmatpush2.msra.mxu0 0.0
        %694 = vmatprep.subr.mxu0 0.0
        %695 = vmatpush2.msra.mxu0 0.0
        %696 = vmatprep.subr.mxu0 0.0
        %697 = vmatpush2.msra.mxu0 0.0
        %698 = vmatprep.subr.mxu0 0.0
        %699 = vmatpush2.msra.mxu0 0.0
        %700 = vmatprep.mubr.f32.mxu0 0.0
        %701 = vmatmul.mubr.f32.gmra.mxu0 %v634
        %v702 = vpop.f32.mrf.mxu0
        %v703 = vadd.f32 0.0, %v702
        %v704 = vpop.f32.mrf.mxu0
        %705 = vdwg.mxu0
        %707 = vrot.lane.b32.xlu0 %v703, 16
        %v708 = vpop.permute.xlu0 %707
        %v710 = vsel %vm359, %v528, %v708
        %vm711 = vcmask 261120
        %712 = vst.msk [vmem:[%s353] sm:$0xff] %vm711, %v710
        %p713 = scmp.lt.s32.totalorder %s27, 1
        %s714 = scalar_select %p713, %s27, 1
        %p715 = scmp.lt.s32.totalorder %s28, 0
        %s716 = scalar_select %p715, %s28, 0
        %s717 = sadd.s32 %s716, %s714
        %s718 = smul.addr %s717, 8
        %s719 = scalar_lea.vmem %s4, %s718
        %s720 = sand.u32 %s183, 1
        %s721 = scalar_lea.sflag [#allocation4], %s720
        %s722 = sand.u32 %s183, 1
        %s723 = smul.addr %s722, 16
        %s724 = scalar_lea.vmem [#allocation5], %s723
        // Predicated region
        $region41: #{fft_block_forward.5} parent=35 // pred_check
          %p725 = pneg %p165
        $region42: #{fft_block_forward.5} parent=35 // pred_check_branch
          %727 = sbr.rel (%p725) target = $region44
        $region43: #{fft_block_forward.5} parent=35 // pred_region
          _
        $region44: #{fft_block_forward.5} parent=35 // pred_fallthru
          _
        // Predicated region
        $region45: #{fft_block_forward.5} parent=35 // pred_check
          %p728 = pneg %p193
        $region46: #{fft_block_forward.5} parent=35 // pred_check_branch
          %730 = sbr.rel (%p728) target = $region48
        $region47: #{fft_block_forward.5} parent=35 // pred_region
          %s731 = smul.u32 2, %s28
          %s733 = ssub.s32 256, 256
          %734 = vsyncadd %s721, %s733
          %s735 = smul.addr %s731, 2
          %s736 = sadd.s32 %s27, %s735
          %s737 = smul.addr %s736, 128
          %s738 = scalar_lea.hbm %s5, %s737
          %s739 = sshll.u32 %s724, 4
          %s740 = int_to_ptr.vmem [resolvable:$true] %s739
          %745 = dma.vmem_to_hbm [thread:$0]  %s740, 256, %s738, %s721, 128, 256, 8
        $region48: #{fft_block_forward.5} parent=35 // pred_fallthru
          _
      $region36: #{fft_block_forward.5} parent=5 // pred_fallthru
        _
      %p746 = scmp.le.s32.totalorder 2, %s18
      // Predicated region
      $region49: #{fft_block_forward.5} parent=5 // pred_check
        %p747 = pneg %p746
      $region50: #{fft_block_forward.5} parent=5 // pred_check_branch
        %749 = sbr.rel (%p747) target = $region52
      $region51: #{fft_block_forward.5} parent=5 // pred_region
        %s750 = ssub.s32 %s18, 2
        // Predicated region
        $region53: #{fft_block_forward.5} parent=51 // pred_check
          %p751 = pneg %p171
        $region54: #{fft_block_forward.5} parent=51 // pred_check_branch
          %753 = sbr.rel (%p751) target = $region56
        $region55: #{fft_block_forward.5} parent=51 // pred_region
          %p754 = scmp.lt.s32.totalorder %s29, 1
          %s755 = scalar_select %p754, %s29, 1
          %p756 = scmp.lt.s32.totalorder %s30, 0
          %s757 = scalar_select %p756, %s30, 0
          %s758 = sadd.s32 %s757, %s755
          %s759 = smul.addr %s758, 8
          %s760 = scalar_lea.vmem %s4, %s759
        $region56: #{fft_block_forward.5} parent=51 // pred_fallthru
          _
        // Predicated region
        $region57: #{fft_block_forward.5} parent=51 // pred_check
          %p761 = pneg %p199
        $region58: #{fft_block_forward.5} parent=51 // pred_check_branch
          %763 = sbr.rel (%p761) target = $region60
        $region59: #{fft_block_forward.5} parent=51 // pred_region
          %s764 = sand.u32 %s184, 1
          %s765 = scalar_lea.sflag [#allocation4], %s764
          %s766 = sand.u32 %s184, 1
          %s767 = smul.addr %s766, 16
          %s768 = scalar_lea.vmem [#allocation5], %s767
          %769 = dma.done %s765, 256
        $region60: #{fft_block_forward.5} parent=51 // pred_fallthru
          _
      $region52: #{fft_block_forward.5} parent=5 // pred_fallthru
        _
    $region6: #{fft_block_forward.5} parent=1 // loop_footer
      %s22 = sadd.s32 1, %s18
    $region7: #{fft_block_forward.5} parent=1 // loop_footer_branch
      %17 = sbr.rel target = $region3
    $region8: #{fft_block_forward.5} parent=1 // loop_exit
      _
    %770 = vsyncpa [#allocation3], 1
    %s771 = scalar_lea.sflag [#allocation3], 1
    %772 = vsyncpa %s771, 1
    %773 = vsyncpa [#allocation4], 1
    %s774 = scalar_lea.sflag [#allocation4], 1
    %775 = vsyncpa %s774, 1

// kernel: fft_block_forward.4
$region0: #{fft_block_forward.4}
  #allocation0 [shape = 'u32[]', space=smem, size = 0x4, offset = 0x4, fixed_abs, tag = 'smem constant byte address 0x4 - core index']
  #allocation1 [shape = 'u32[144,128]{1,0:T(1,128)}', space=vmem, size = 0x12000, scoped, tag = 'internal scratch']
  %s0 = inlined_call_operand.hbm [shape: f32[16,32], index: 0, kind: input, shape index: {}]
  %s1 = inlined_call_operand.vmem [shape: f32[32,32], index: 1, kind: input, shape index: {}]
  %s2 = inlined_call_operand.hbm [shape: f32[32,32], index: 2, kind: input, shape index: {}]
  %s3 = inlined_call_operand.hbm [shape: f32[32,32], index: 3, kind: input, shape index: {}]
  %s4 = inlined_call_operand.hbm [shape: f32[1,32], index: 4, kind: input, shape index: {}]
  %s5 = inlined_call_operand.hbm [shape: f32[1,32], index: 5, kind: input, shape index: {}]
  %s6 = inlined_call_operand.hbm [shape: f32[1,32], index: 6, kind: input, shape index: {}]
  %s7 = inlined_call_operand.vmem [shape: f32[16,32], index: 7, kind: output, shape index: {0}]
  %s8 = inlined_call_operand.vmem [shape: f32[16,32], index: 8, kind: output, shape index: {1}]
  %s9 = inlined_call_operand.vmem [shape: f32[16,32], index: 9, kind: output, shape index: {2}]
  %10 = xla_tuple %s7, %s8, %s9
  %s11 = sld [smem:[#allocation0]]
  $region78: #{fft_block_forward.4} parent=0
    _
  %s13 = ssub.s32 1, %s11
  %s14 = scalar_select 0, %s13, %s11
  $region1: #{fft_block_forward.4} parent=0
    #allocation2 [shape = 'u8[8192]{0}', space=vmem, size = 0x2000, scoped, tag = 'input window, operand 0, single buffered']
    #allocation3 [shape = 's32[1]{0}', space=sflag, size = 0x4, scoped, tag = 'scoped memory for fft_block_forward.4']
    #allocation4 [shape = 'u8[16384]{0}', space=vmem, size = 0x4000, scoped, tag = 'input window, operand 2, single buffered']
    #allocation5 [shape = 's32[1]{0}', space=sflag, size = 0x4, scoped, tag = 'scoped memory for fft_block_forward.4']
    #allocation6 [shape = 'u8[16384]{0}', space=vmem, size = 0x4000, scoped, tag = 'input window, operand 3, single buffered']
    #allocation7 [shape = 'u8[512]{0}', space=vmem, size = 0x400, scoped, tag = 'input window, operand 4, single buffered']
    #allocation8 [shape = 's32[1]{0}', space=sflag, size = 0x4, scoped, tag = 'scoped memory for fft_block_forward.4']
    #allocation9 [shape = 'u8[512]{0}', space=vmem, size = 0x400, scoped, tag = 'input window, operand 5, single buffered']
    #allocation10 [shape = 'u8[512]{0}', space=vmem, size = 0x400, scoped, tag = 'input window, operand 6, single buffered']
    #allocation11 [shape = 's32[1]{0}', space=sflag, size = 0x4, scoped, tag = 'scoped memory for fft_block_forward.4']
    %15 = vsyncpa [#allocation3], 0
    %16 = vsyncpa [#allocation5], 0
    %17 = vsyncpa [#allocation8], 0
    %18 = vsyncpa [#allocation11], 0
    // Predicated region
    $region2: #{fft_block_forward.4} parent=1 // pred_check
      _
    $region3: #{fft_block_forward.4} parent=1 // pred_check_branch
      %20 = sbr.rel (0) target = $region5
    $region4: #{fft_block_forward.4} parent=1 // pred_region
      %s22 = ssub.s32 256, 256
      %23 = vsyncadd [#allocation3], %s22
      %s24 = sshll.u32 [#allocation2], 4
      %s25 = int_to_ptr.vmem [resolvable:$true] %s24
      %30 = dma.hbm_to_vmem [thread:$0]  %s0, 256, %s25, [#allocation3], 128, 128, 8
    $region5: #{fft_block_forward.4} parent=1 // pred_fallthru
      _
    // Predicated region
    $region6: #{fft_block_forward.4} parent=1 // pred_check
      _
    $region7: #{fft_block_forward.4} parent=1 // pred_check_branch
      %32 = sbr.rel (0) target = $region9
    $region8: #{fft_block_forward.4} parent=1 // pred_region
      _
    $region9: #{fft_block_forward.4} parent=1 // pred_fallthru
      _
    // Predicated region
    $region10: #{fft_block_forward.4} parent=1 // pred_check
      _
    $region11: #{fft_block_forward.4} parent=1 // pred_check_branch
      %34 = sbr.rel (0) target = $region13
    $region12: #{fft_block_forward.4} parent=1 // pred_region
      %s36 = ssub.s32 512, 512
      %37 = vsyncadd [#allocation5], %s36
      %s38 = sshll.u32 [#allocation4], 4
      %s39 = int_to_ptr.vmem [resolvable:$true] %s38
      %44 = dma.hbm_to_vmem [thread:$0]  %s2, 512, %s39, [#allocation5], 128, 128, 8
    $region13: #{fft_block_forward.4} parent=1 // pred_fallthru
      _
    // Predicated region
    $region14: #{fft_block_forward.4} parent=1 // pred_check
      _
    $region15: #{fft_block_forward.4} parent=1 // pred_check_branch
      %46 = sbr.rel (0) target = $region17
    $region16: #{fft_block_forward.4} parent=1 // pred_region
      %s48 = ssub.s32 512, 512
      %49 = vsyncadd [#allocation5], %s48
      %s50 = sshll.u32 [#allocation6], 4
      %s51 = int_to_ptr.vmem [resolvable:$true] %s50
      %56 = dma.hbm_to_vmem [thread:$0]  %s3, 512, %s51, [#allocation5], 128, 128, 8
    $region17: #{fft_block_forward.4} parent=1 // pred_fallthru
      _
    // Predicated region
    $region18: #{fft_block_forward.4} parent=1 // pred_check
      _
    $region19: #{fft_block_forward.4} parent=1 // pred_check_branch
      %58 = sbr.rel (0) target = $region21
    $region20: #{fft_block_forward.4} parent=1 // pred_region
      %s60 = ssub.s32 16, 16
      %61 = vsyncadd [#allocation8], %s60
      %s63 = sshll.u32 [#allocation7], 4
      %s64 = int_to_ptr.vmem [resolvable:$true] %s63
      %66 = dma.hbm_to_vmem [thread:$0]  %s4, 16, %s64, [#allocation8]
    $region21: #{fft_block_forward.4} parent=1 // pred_fallthru
      _
    // Predicated region
    $region22: #{fft_block_forward.4} parent=1 // pred_check
      _
    $region23: #{fft_block_forward.4} parent=1 // pred_check_branch
      %68 = sbr.rel (0) target = $region25
    $region24: #{fft_block_forward.4} parent=1 // pred_region
      %s70 = ssub.s32 16, 16
      %71 = vsyncadd [#allocation8], %s70
      %s73 = sshll.u32 [#allocation9], 4
      %s74 = int_to_ptr.vmem [resolvable:$true] %s73
      %76 = dma.hbm_to_vmem [thread:$0]  %s5, 16, %s74, [#allocation8]
    $region25: #{fft_block_forward.4} parent=1 // pred_fallthru
      _
    // Predicated region
    $region26: #{fft_block_forward.4} parent=1 // pred_check
      _
    $region27: #{fft_block_forward.4} parent=1 // pred_check_branch
      %78 = sbr.rel (0) target = $region29
    $region28: #{fft_block_forward.4} parent=1 // pred_region
      %s80 = ssub.s32 16, 16
      %81 = vsyncadd [#allocation11], %s80
      %s83 = sshll.u32 [#allocation10], 4
      %s84 = int_to_ptr.vmem [resolvable:$true] %s83
      %86 = dma.hbm_to_vmem [thread:$0]  %s6, 16, %s84, [#allocation11]
    $region29: #{fft_block_forward.4} parent=1 // pred_fallthru
      _
    // Predicated region
    $region30: #{fft_block_forward.4} parent=1 // pred_check
      _
    $region31: #{fft_block_forward.4} parent=1 // pred_check_branch
      %88 = sbr.rel (0) target = $region33
    $region32: #{fft_block_forward.4} parent=1 // pred_region
      %89 = dma.done [#allocation3], 256
    $region33: #{fft_block_forward.4} parent=1 // pred_fallthru
      _
    // Predicated region
    $region34: #{fft_block_forward.4} parent=1 // pred_check
      _
    $region35: #{fft_block_forward.4} parent=1 // pred_check_branch
      %91 = sbr.rel (0) target = $region37
    $region36: #{fft_block_forward.4} parent=1 // pred_region
      %92 = dma.done [#allocation5], 512
    $region37: #{fft_block_forward.4} parent=1 // pred_fallthru
      _
    // Predicated region
    $region38: #{fft_block_forward.4} parent=1 // pred_check
      _
    $region39: #{fft_block_forward.4} parent=1 // pred_check_branch
      %94 = sbr.rel (0) target = $region41
    $region40: #{fft_block_forward.4} parent=1 // pred_region
      %95 = dma.done [#allocation5], 512
    $region41: #{fft_block_forward.4} parent=1 // pred_fallthru
      _
    // Predicated region
    $region42: #{fft_block_forward.4} parent=1 // pred_check
      _
    $region43: #{fft_block_forward.4} parent=1 // pred_check_branch
      %97 = sbr.rel (0) target = $region45
    $region44: #{fft_block_forward.4} parent=1 // pred_region
      %98 = dma.done [#allocation8], 16
    $region45: #{fft_block_forward.4} parent=1 // pred_fallthru
      _
    // Predicated region
    $region46: #{fft_block_forward.4} parent=1 // pred_check
      _
    $region47: #{fft_block_forward.4} parent=1 // pred_check_branch
      %100 = sbr.rel (0) target = $region49
    $region48: #{fft_block_forward.4} parent=1 // pred_region
      %101 = dma.done [#allocation8], 16
    $region49: #{fft_block_forward.4} parent=1 // pred_fallthru
      _
    // Predicated region
    $region50: #{fft_block_forward.4} parent=1 // pred_check
      _
    $region51: #{fft_block_forward.4} parent=1 // pred_check_branch
      %103 = sbr.rel (0) target = $region53
    $region52: #{fft_block_forward.4} parent=1 // pred_region
      %104 = dma.done [#allocation11], 16
    $region53: #{fft_block_forward.4} parent=1 // pred_fallthru
      _
    %v105 = vld [vmem:[#allocation2] sm:$0xff]
    %v106 = vld [vmem:[#allocation2 + $0x8] sm:$0xff]
    %v107 = vld [vmem:[%s1] sm:$0xff]
    %v108 = vld [vmem:[%s1 + $0x8] sm:$0xff]
    %v109 = vld [vmem:[%s1 + $0x10] sm:$0xff]
    %v110 = vld [vmem:[%s1 + $0x18] sm:$0xff]
    %v111 = vld [vmem:[#allocation7] sm:$0x1]
    %v113 = vlaneseq
    %v114 = vshrl.u32 %v113, 7
    %v115 = vsub.s32 0, %v114
    %v116 = vrot.slane %v111, %v115
    %vm118 = vcmask 261120
    %v120 = vsel %vm118, %v105, 0
    %v123 = vsel %vm118, %v106, 0
    %125 = vmatprep.subr.mxu0 0.0
    %126 = vmatpush1.msra.mxu0 0.0
    %127 = vmatprep.subr.mxu0 0.0
    %128 = vmatpush1.msra.mxu0 0.0
    %129 = vmatprep.subr.mxu0 0.0
    %130 = vmatpush1.msra.mxu0 0.0
    %131 = vmatprep.subr.mxu0 0.0
    %132 = vmatpush1.msra.mxu0 0.0
    %133 = vmatprep.subr.mxu0 0.0
    %134 = vmatpush1.msra.mxu0 0.0
    %135 = vmatprep.subr.mxu0 0.0
    %136 = vmatpush1.msra.mxu0 0.0
    %137 = vmatprep.subr.mxu0 0.0
    %138 = vmatpush1.msra.mxu0 0.0
    %139 = vmatprep.subr.mxu0 0.0
    %140 = vmatpush1.msra.mxu0 0.0
    %141 = vmatprep.subr.mxu0 0.0
    %142 = vmatpush1.msra.mxu0 0.0
    %143 = vmatprep.subr.mxu0 0.0
    %144 = vmatpush1.msra.mxu0 0.0
    %145 = vmatprep.subr.mxu0 0.0
    %146 = vmatpush1.msra.mxu0 0.0
    %147 = vmatprep.subr.mxu0 0.0
    %148 = vmatpush1.msra.mxu0 0.0
    %149 = vmatprep.subr.mxu0 0.0
    %150 = vmatpush1.msra.mxu0 %v110
    %151 = vmatprep.subr.mxu0 0.0
    %152 = vmatpush1.msra.mxu0 %v109
    %153 = vmatprep.subr.mxu0 0.0
    %154 = vmatpush1.msra.mxu0 %v108
    %155 = vmatprep.subr.mxu0 0.0
    %156 = vmatpush1.msra.mxu0 %v107
    %157 = vmatprep.subr.mxu0 0.0
    %158 = vmatpush2.msra.mxu0 0.0
    %159 = vmatprep.subr.mxu0 0.0
    %160 = vmatpush2.msra.mxu0 0.0
    %161 = vmatprep.subr.mxu0 0.0
    %162 = vmatpush2.msra.mxu0 0.0
    %163 = vmatprep.subr.mxu0 0.0
    %164 = vmatpush2.msra.mxu0 0.0
    %165 = vmatprep.subr.mxu0 0.0
    %166 = vmatpush2.msra.mxu0 0.0
    %167 = vmatprep.subr.mxu0 0.0
    %168 = vmatpush2.msra.mxu0 0.0
    %169 = vmatprep.subr.mxu0 0.0
    %170 = vmatpush2.msra.mxu0 0.0
    %171 = vmatprep.subr.mxu0 0.0
    %172 = vmatpush2.msra.mxu0 0.0
    %173 = vmatprep.subr.mxu0 0.0
    %174 = vmatpush2.msra.mxu0 0.0
    %175 = vmatprep.subr.mxu0 0.0
    %176 = vmatpush2.msra.mxu0 0.0
    %177 = vmatprep.subr.mxu0 0.0
    %178 = vmatpush2.msra.mxu0 0.0
    %179 = vmatprep.subr.mxu0 0.0
    %180 = vmatpush2.msra.mxu0 0.0
    %181 = vmatprep.subr.mxu0 0.0
    %182 = vmatpush2.msra.mxu0 0.0
    %183 = vmatprep.subr.mxu0 0.0
    %184 = vmatpush2.msra.mxu0 0.0
    %185 = vmatprep.subr.mxu0 0.0
    %186 = vmatpush2.msra.mxu0 0.0
    %187 = vmatprep.subr.mxu0 0.0
    %188 = vmatpush2.msra.mxu0 0.0
    %189 = vmatprep.mubr.f32.mxu0 0.0
    %190 = vmatmul.mubr.f32.gmra.mxu0 %v120
    %v191 = vpop.f32.mrf.mxu0
    %v192 = vadd.f32 %v116, %v191
    %v193 = vpop.f32.mrf.mxu0
    %194 = vmatprep.mubr.f32.mxu0 0.0
    %195 = vmatmul.mubr.f32.gmra.mxu0 %v123
    %v196 = vpop.f32.mrf.mxu0
    %v197 = vadd.f32 %v116, %v196
    %v198 = vpop.f32.mrf.mxu0
    %199 = vdwg.mxu0
    %200 = vst.msk [vmem:[%s7] sm:$0xff] %vm118, %v192
    %201 = vst.msk [vmem:[%s7 + $0x8] sm:$0xff] %vm118, %v197
    %v202 = vld [vmem:[#allocation4] sm:$0xff]
    %v203 = vld [vmem:[#allocation4 + $0x8] sm:$0xff]
    %v204 = vld [vmem:[#allocation4 + $0x10] sm:$0xff]
    %v205 = vld [vmem:[#allocation4 + $0x18] sm:$0xff]
    %v206 = vld [vmem:[#allocation9] sm:$0x1]
    %v208 = vlaneseq
    %v209 = vshrl.u32 %v208, 7
    %v210 = vsub.s32 0, %v209
    %v211 = vrot.slane %v206, %v210
    %213 = vmatprep.subr.mxu0 0.0
    %214 = vmatpush1.msra.mxu0 0.0
    %215 = vmatprep.subr.mxu0 0.0
    %216 = vmatpush1.msra.mxu0 0.0
    %217 = vmatprep.subr.mxu0 0.0
    %218 = vmatpush1.msra.mxu0 0.0
    %219 = vmatprep.subr.mxu0 0.0
    %220 = vmatpush1.msra.mxu0 0.0
    %221 = vmatprep.subr.mxu0 0.0
    %222 = vmatpush1.msra.mxu0 0.0
    %223 = vmatprep.subr.mxu0 0.0
    %224 = vmatpush1.msra.mxu0 0.0
    %225 = vmatprep.subr.mxu0 0.0
    %226 = vmatpush1.msra.mxu0 0.0
    %227 = vmatprep.subr.mxu0 0.0
    %228 = vmatpush1.msra.mxu0 0.0
    %229 = vmatprep.subr.mxu0 0.0
    %230 = vmatpush1.msra.mxu0 0.0
    %231 = vmatprep.subr.mxu0 0.0
    %232 = vmatpush1.msra.mxu0 0.0
    %233 = vmatprep.subr.mxu0 0.0
    %234 = vmatpush1.msra.mxu0 0.0
    %235 = vmatprep.subr.mxu0 0.0
    %236 = vmatpush1.msra.mxu0 0.0
    %237 = vmatprep.subr.mxu0 0.0
    %238 = vmatpush1.msra.mxu0 %v205
    %239 = vmatprep.subr.mxu0 0.0
    %240 = vmatpush1.msra.mxu0 %v204
    %241 = vmatprep.subr.mxu0 0.0
    %242 = vmatpush1.msra.mxu0 %v203
    %243 = vmatprep.subr.mxu0 0.0
    %244 = vmatpush1.msra.mxu0 %v202
    %245 = vmatprep.subr.mxu0 0.0
    %246 = vmatpush2.msra.mxu0 0.0
    %247 = vmatprep.subr.mxu0 0.0
    %248 = vmatpush2.msra.mxu0 0.0
    %249 = vmatprep.subr.mxu0 0.0
    %250 = vmatpush2.msra.mxu0 0.0
    %251 = vmatprep.subr.mxu0 0.0
    %252 = vmatpush2.msra.mxu0 0.0
    %253 = vmatprep.subr.mxu0 0.0
    %254 = vmatpush2.msra.mxu0 0.0
    %255 = vmatprep.subr.mxu0 0.0
    %256 = vmatpush2.msra.mxu0 0.0
    %257 = vmatprep.subr.mxu0 0.0
    %258 = vmatpush2.msra.mxu0 0.0
    %259 = vmatprep.subr.mxu0 0.0
    %260 = vmatpush2.msra.mxu0 0.0
    %261 = vmatprep.subr.mxu0 0.0
    %262 = vmatpush2.msra.mxu0 0.0
    %263 = vmatprep.subr.mxu0 0.0
    %264 = vmatpush2.msra.mxu0 0.0
    %265 = vmatprep.subr.mxu0 0.0
    %266 = vmatpush2.msra.mxu0 0.0
    %267 = vmatprep.subr.mxu0 0.0
    %268 = vmatpush2.msra.mxu0 0.0
    %269 = vmatprep.subr.mxu0 0.0
    %270 = vmatpush2.msra.mxu0 0.0
    %271 = vmatprep.subr.mxu0 0.0
    %272 = vmatpush2.msra.mxu0 0.0
    %273 = vmatprep.subr.mxu0 0.0
    %274 = vmatpush2.msra.mxu0 0.0
    %275 = vmatprep.subr.mxu0 0.0
    %276 = vmatpush2.msra.mxu0 0.0
    %277 = vmatprep.mubr.f32.mxu0 0.0
    %278 = vmatmul.mubr.f32.gmra.mxu0 %v120
    %v279 = vpop.f32.mrf.mxu0
    %v280 = vadd.f32 %v211, %v279
    %v281 = vpop.f32.mrf.mxu0
    %282 = vmatprep.mubr.f32.mxu0 0.0
    %283 = vmatmul.mubr.f32.gmra.mxu0 %v123
    %v284 = vpop.f32.mrf.mxu0
    %v285 = vadd.f32 %v211, %v284
    %v286 = vpop.f32.mrf.mxu0
    %287 = vdwg.mxu0
    %288 = vst.msk [vmem:[%s8] sm:$0xff] %vm118, %v280
    %289 = vst.msk [vmem:[%s8 + $0x8] sm:$0xff] %vm118, %v285
    %v290 = vld [vmem:[#allocation6] sm:$0xff]
    %v291 = vld [vmem:[#allocation6 + $0x8] sm:$0xff]
    %v292 = vld [vmem:[#allocation6 + $0x10] sm:$0xff]
    %v293 = vld [vmem:[#allocation6 + $0x18] sm:$0xff]
    %v294 = vld [vmem:[#allocation10] sm:$0x1]
    %v296 = vlaneseq
    %v297 = vshrl.u32 %v296, 7
    %v298 = vsub.s32 0, %v297
    %v299 = vrot.slane %v294, %v298
    %301 = vmatprep.subr.mxu0 0.0
    %302 = vmatpush1.msra.mxu0 0.0
    %303 = vmatprep.subr.mxu0 0.0
    %304 = vmatpush1.msra.mxu0 0.0
    %305 = vmatprep.subr.mxu0 0.0
    %306 = vmatpush1.msra.mxu0 0.0
    %307 = vmatprep.subr.mxu0 0.0
    %308 = vmatpush1.msra.mxu0 0.0
    %309 = vmatprep.subr.mxu0 0.0
    %310 = vmatpush1.msra.mxu0 0.0
    %311 = vmatprep.subr.mxu0 0.0
    %312 = vmatpush1.msra.mxu0 0.0
    %313 = vmatprep.subr.mxu0 0.0
    %314 = vmatpush1.msra.mxu0 0.0
    %315 = vmatprep.subr.mxu0 0.0
    %316 = vmatpush1.msra.mxu0 0.0
    %317 = vmatprep.subr.mxu0 0.0
    %318 = vmatpush1.msra.mxu0 0.0
    %319 = vmatprep.subr.mxu0 0.0
    %320 = vmatpush1.msra.mxu0 0.0
    %321 = vmatprep.subr.mxu0 0.0
    %322 = vmatpush1.msra.mxu0 0.0
    %323 = vmatprep.subr.mxu0 0.0
    %324 = vmatpush1.msra.mxu0 0.0
    %325 = vmatprep.subr.mxu0 0.0
    %326 = vmatpush1.msra.mxu0 %v293
    %327 = vmatprep.subr.mxu0 0.0
    %328 = vmatpush1.msra.mxu0 %v292
    %329 = vmatprep.subr.mxu0 0.0
    %330 = vmatpush1.msra.mxu0 %v291
    %331 = vmatprep.subr.mxu0 0.0
    %332 = vmatpush1.msra.mxu0 %v290
    %333 = vmatprep.subr.mxu0 0.0
    %334 = vmatpush2.msra.mxu0 0.0
    %335 = vmatprep.subr.mxu0 0.0
    %336 = vmatpush2.msra.mxu0 0.0
    %337 = vmatprep.subr.mxu0 0.0
    %338 = vmatpush2.msra.mxu0 0.0
    %339 = vmatprep.subr.mxu0 0.0
    %340 = vmatpush2.msra.mxu0 0.0
    %341 = vmatprep.subr.mxu0 0.0
    %342 = vmatpush2.msra.mxu0 0.0
    %343 = vmatprep.subr.mxu0 0.0
    %344 = vmatpush2.msra.mxu0 0.0
    %345 = vmatprep.subr.mxu0 0.0
    %346 = vmatpush2.msra.mxu0 0.0
    %347 = vmatprep.subr.mxu0 0.0
    %348 = vmatpush2.msra.mxu0 0.0
    %349 = vmatprep.subr.mxu0 0.0
    %350 = vmatpush2.msra.mxu0 0.0
    %351 = vmatprep.subr.mxu0 0.0
    %352 = vmatpush2.msra.mxu0 0.0
    %353 = vmatprep.subr.mxu0 0.0
    %354 = vmatpush2.msra.mxu0 0.0
    %355 = vmatprep.subr.mxu0 0.0
    %356 = vmatpush2.msra.mxu0 0.0
    %357 = vmatprep.subr.mxu0 0.0
    %358 = vmatpush2.msra.mxu0 0.0
    %359 = vmatprep.subr.mxu0 0.0
    %360 = vmatpush2.msra.mxu0 0.0
    %361 = vmatprep.subr.mxu0 0.0
    %362 = vmatpush2.msra.mxu0 0.0
    %363 = vmatprep.subr.mxu0 0.0
    %364 = vmatpush2.msra.mxu0 0.0
    %365 = vmatprep.mubr.f32.mxu0 0.0
    %366 = vmatmul.mubr.f32.gmra.mxu0 %v120
    %v367 = vpop.f32.mrf.mxu0
    %v368 = vadd.f32 %v299, %v367
    %v369 = vpop.f32.mrf.mxu0
    %370 = vmatprep.mubr.f32.mxu0 0.0
    %371 = vmatmul.mubr.f32.gmra.mxu0 %v123
    %v372 = vpop.f32.mrf.mxu0
    %v373 = vadd.f32 %v299, %v372
    %v374 = vpop.f32.mrf.mxu0
    %375 = vdwg.mxu0
    %376 = vst.msk [vmem:[%s9] sm:$0xff] %vm118, %v368
    %377 = vst.msk [vmem:[%s9 + $0x8] sm:$0xff] %vm118, %v373
    // Predicated region
    $region54: #{fft_block_forward.4} parent=1 // pred_check
      _
    $region55: #{fft_block_forward.4} parent=1 // pred_check_branch
      %379 = sbr.rel (0) target = $region57
    $region56: #{fft_block_forward.4} parent=1 // pred_region
      _
    $region57: #{fft_block_forward.4} parent=1 // pred_fallthru
      _
    // Predicated region
    $region58: #{fft_block_forward.4} parent=1 // pred_check
      _
    $region59: #{fft_block_forward.4} parent=1 // pred_check_branch
      %381 = sbr.rel (0) target = $region61
    $region60: #{fft_block_forward.4} parent=1 // pred_region
      _
    $region61: #{fft_block_forward.4} parent=1 // pred_fallthru
      _
    // Predicated region
    $region62: #{fft_block_forward.4} parent=1 // pred_check
      _
    $region63: #{fft_block_forward.4} parent=1 // pred_check_branch
      %383 = sbr.rel (0) target = $region65
    $region64: #{fft_block_forward.4} parent=1 // pred_region
      _
    $region65: #{fft_block_forward.4} parent=1 // pred_fallthru
      _
    // Predicated region
    $region66: #{fft_block_forward.4} parent=1 // pred_check
      _
    $region67: #{fft_block_forward.4} parent=1 // pred_check_branch
      %385 = sbr.rel (0) target = $region69
    $region68: #{fft_block_forward.4} parent=1 // pred_region
      _
    $region69: #{fft_block_forward.4} parent=1 // pred_fallthru
      _
    // Predicated region
    $region70: #{fft_block_forward.4} parent=1 // pred_check
      _
    $region71: #{fft_block_forward.4} parent=1 // pred_check_branch
      %387 = sbr.rel (0) target = $region73
    $region72: #{fft_block_forward.4} parent=1 // pred_region
      _
    $region73: #{fft_block_forward.4} parent=1 // pred_fallthru
      _
    // Predicated region
    $region74: #{fft_block_forward.4} parent=1 // pred_check
      _
    $region75: #{fft_block_forward.4} parent=1 // pred_check_branch
      %389 = sbr.rel (0) target = $region77
    $region76: #{fft_block_forward.4} parent=1 // pred_region
      _
    $region77: #{fft_block_forward.4} parent=1 // pred_fallthru
      _
    %390 = vsyncpa [#allocation3], 1
    %391 = vsyncpa [#allocation5], 1
    %392 = vsyncpa [#allocation8], 1
    %393 = vsyncpa [#allocation11], 1

// kernel: fft_block_forward.6
$region0: #{fft_block_forward.6}
  #allocation0 [shape = 'u32[]', space=smem, size = 0x4, offset = 0x4, fixed_abs, tag = 'smem constant byte address 0x4 - core index']
  #allocation1 [shape = 'u32[144,128]{1,0:T(1,128)}', space=vmem, size = 0x12000, scoped, tag = 'internal scratch']
  %s0 = inlined_call_operand.vmem [shape: f32[16,32], index: 0, kind: input, shape index: {}]
  %s1 = inlined_call_operand.hbm [shape: f32[16,32], index: 1, kind: input, shape index: {}]
  %s2 = inlined_call_operand.vmem [shape: f32[32,32], index: 2, kind: input, shape index: {}]
  %s3 = inlined_call_operand.hbm [shape: f32[1,32], index: 3, kind: input, shape index: {}]
  %s4 = inlined_call_operand.hbm [shape: f32[1,32], index: 4, kind: input, shape index: {}]
  %s5 = inlined_call_operand.hbm [shape: f32[1,32], index: 5, kind: input, shape index: {}]
  %s6 = inlined_call_operand.vmem [shape: f32[16,1], index: 6, kind: input, shape index: {}]
  %s7 = inlined_call_operand.vmem [shape: f32[16,32], index: 7, kind: output, shape index: {}]
  %s8 = sld [smem:[#allocation0]]
  $region54: #{fft_block_forward.6} parent=0
    _
  %s10 = ssub.s32 1, %s8
  %s11 = scalar_select 0, %s10, %s8
  $region1: #{fft_block_forward.6} parent=0
    #allocation2 [shape = 'u8[8192]{0}', space=vmem, size = 0x2000, scoped, tag = 'input window, operand 1, single buffered']
    #allocation3 [shape = 's32[1]{0}', space=sflag, size = 0x4, scoped, tag = 'scoped memory for fft_block_forward.6']
    #allocation4 [shape = 'u8[512]{0}', space=vmem, size = 0x400, scoped, tag = 'input window, operand 3, single buffered']
    #allocation5 [shape = 's32[1]{0}', space=sflag, size = 0x4, scoped, tag = 'scoped memory for fft_block_forward.6']
    #allocation6 [shape = 'u8[512]{0}', space=vmem, size = 0x400, scoped, tag = 'input window, operand 4, single buffered']
    #allocation7 [shape = 'u8[512]{0}', space=vmem, size = 0x400, scoped, tag = 'input window, operand 5, single buffered']
    #allocation8 [shape = 's32[1]{0}', space=sflag, size = 0x4, scoped, tag = 'scoped memory for fft_block_forward.6']
    %12 = vsyncpa [#allocation3], 0
    %13 = vsyncpa [#allocation5], 0
    %14 = vsyncpa [#allocation8], 0
    // Predicated region
    $region2: #{fft_block_forward.6} parent=1 // pred_check
      _
    $region3: #{fft_block_forward.6} parent=1 // pred_check_branch
      %16 = sbr.rel (0) target = $region5
    $region4: #{fft_block_forward.6} parent=1 // pred_region
      _
    $region5: #{fft_block_forward.6} parent=1 // pred_fallthru
      _
    // Predicated region
    $region6: #{fft_block_forward.6} parent=1 // pred_check
      _
    $region7: #{fft_block_forward.6} parent=1 // pred_check_branch
      %18 = sbr.rel (0) target = $region9
    $region8: #{fft_block_forward.6} parent=1 // pred_region
      %s20 = ssub.s32 256, 256
      %21 = vsyncadd [#allocation3], %s20
      %s22 = sshll.u32 [#allocation2], 4
      %s23 = int_to_ptr.vmem [resolvable:$true] %s22
      %28 = dma.hbm_to_vmem [thread:$0]  %s1, 256, %s23, [#allocation3], 128, 128, 8
    $region9: #{fft_block_forward.6} parent=1 // pred_fallthru
      _
    // Predicated region
    $region10: #{fft_block_forward.6} parent=1 // pred_check
      _
    $region11: #{fft_block_forward.6} parent=1 // pred_check_branch
      %30 = sbr.rel (0) target = $region13
    $region12: #{fft_block_forward.6} parent=1 // pred_region
      _
    $region13: #{fft_block_forward.6} parent=1 // pred_fallthru
      _
    // Predicated region
    $region14: #{fft_block_forward.6} parent=1 // pred_check
      _
    $region15: #{fft_block_forward.6} parent=1 // pred_check_branch
      %32 = sbr.rel (0) target = $region17
    $region16: #{fft_block_forward.6} parent=1 // pred_region
      %s34 = ssub.s32 16, 16
      %35 = vsyncadd [#allocation5], %s34
      %s37 = sshll.u32 [#allocation4], 4
      %s38 = int_to_ptr.vmem [resolvable:$true] %s37
      %40 = dma.hbm_to_vmem [thread:$0]  %s3, 16, %s38, [#allocation5]
    $region17: #{fft_block_forward.6} parent=1 // pred_fallthru
      _
    // Predicated region
    $region18: #{fft_block_forward.6} parent=1 // pred_check
      _
    $region19: #{fft_block_forward.6} parent=1 // pred_check_branch
      %42 = sbr.rel (0) target = $region21
    $region20: #{fft_block_forward.6} parent=1 // pred_region
      %s44 = ssub.s32 16, 16
      %45 = vsyncadd [#allocation5], %s44
      %s47 = sshll.u32 [#allocation6], 4
      %s48 = int_to_ptr.vmem [resolvable:$true] %s47
      %50 = dma.hbm_to_vmem [thread:$0]  %s4, 16, %s48, [#allocation5]
    $region21: #{fft_block_forward.6} parent=1 // pred_fallthru
      _
    // Predicated region
    $region22: #{fft_block_forward.6} parent=1 // pred_check
      _
    $region23: #{fft_block_forward.6} parent=1 // pred_check_branch
      %52 = sbr.rel (0) target = $region25
    $region24: #{fft_block_forward.6} parent=1 // pred_region
      %s54 = ssub.s32 16, 16
      %55 = vsyncadd [#allocation8], %s54
      %s57 = sshll.u32 [#allocation7], 4
      %s58 = int_to_ptr.vmem [resolvable:$true] %s57
      %60 = dma.hbm_to_vmem [thread:$0]  %s5, 16, %s58, [#allocation8]
    $region25: #{fft_block_forward.6} parent=1 // pred_fallthru
      _
    // Predicated region
    $region26: #{fft_block_forward.6} parent=1 // pred_check
      _
    $region27: #{fft_block_forward.6} parent=1 // pred_check_branch
      %62 = sbr.rel (0) target = $region29
    $region28: #{fft_block_forward.6} parent=1 // pred_region
      _
    $region29: #{fft_block_forward.6} parent=1 // pred_fallthru
      _
    // Predicated region
    $region30: #{fft_block_forward.6} parent=1 // pred_check
      _
    $region31: #{fft_block_forward.6} parent=1 // pred_check_branch
      %64 = sbr.rel (0) target = $region33
    $region32: #{fft_block_forward.6} parent=1 // pred_region
      %65 = dma.done [#allocation3], 256
    $region33: #{fft_block_forward.6} parent=1 // pred_fallthru
      _
    // Predicated region
    $region34: #{fft_block_forward.6} parent=1 // pred_check
      _
    $region35: #{fft_block_forward.6} parent=1 // pred_check_branch
      %67 = sbr.rel (0) target = $region37
    $region36: #{fft_block_forward.6} parent=1 // pred_region
      %68 = dma.done [#allocation5], 16
    $region37: #{fft_block_forward.6} parent=1 // pred_fallthru
      _
    // Predicated region
    $region38: #{fft_block_forward.6} parent=1 // pred_check
      _
    $region39: #{fft_block_forward.6} parent=1 // pred_check_branch
      %70 = sbr.rel (0) target = $region41
    $region40: #{fft_block_forward.6} parent=1 // pred_region
      %71 = dma.done [#allocation5], 16
    $region41: #{fft_block_forward.6} parent=1 // pred_fallthru
      _
    // Predicated region
    $region42: #{fft_block_forward.6} parent=1 // pred_check
      _
    $region43: #{fft_block_forward.6} parent=1 // pred_check_branch
      %73 = sbr.rel (0) target = $region45
    $region44: #{fft_block_forward.6} parent=1 // pred_region
      %74 = dma.done [#allocation8], 16
    $region45: #{fft_block_forward.6} parent=1 // pred_fallthru
      _
    %v75 = vld [vmem:[%s0] sm:$0xff]
    %v76 = vld [vmem:[%s0 + $0x8] sm:$0xff]
    %v77 = vld [vmem:[%s2] sm:$0xff]
    %v78 = vld [vmem:[%s2 + $0x8] sm:$0xff]
    %v79 = vld [vmem:[%s2 + $0x10] sm:$0xff]
    %v80 = vld [vmem:[%s2 + $0x18] sm:$0xff]
    %v81 = vld [vmem:[#allocation4] sm:$0x1]
    %v83 = vlaneseq
    %v84 = vshrl.u32 %v83, 7
    %v85 = vsub.s32 0, %v84
    %v86 = vrot.slane %v81, %v85
    %vm88 = vcmask 261120
    %v90 = vsel %vm88, %v75, 0
    %v93 = vsel %vm88, %v76, 0
    %95 = vmatprep.subr.mxu0 0.0
    %96 = vmatpush1.msra.mxu0 0.0
    %97 = vmatprep.subr.mxu0 0.0
    %98 = vmatpush1.msra.mxu0 0.0
    %99 = vmatprep.subr.mxu0 0.0
    %100 = vmatpush1.msra.mxu0 0.0
    %101 = vmatprep.subr.mxu0 0.0
    %102 = vmatpush1.msra.mxu0 0.0
    %103 = vmatprep.subr.mxu0 0.0
    %104 = vmatpush1.msra.mxu0 0.0
    %105 = vmatprep.subr.mxu0 0.0
    %106 = vmatpush1.msra.mxu0 0.0
    %107 = vmatprep.subr.mxu0 0.0
    %108 = vmatpush1.msra.mxu0 0.0
    %109 = vmatprep.subr.mxu0 0.0
    %110 = vmatpush1.msra.mxu0 0.0
    %111 = vmatprep.subr.mxu0 0.0
    %112 = vmatpush1.msra.mxu0 0.0
    %113 = vmatprep.subr.mxu0 0.0
    %114 = vmatpush1.msra.mxu0 0.0
    %115 = vmatprep.subr.mxu0 0.0
    %116 = vmatpush1.msra.mxu0 0.0
    %117 = vmatprep.subr.mxu0 0.0
    %118 = vmatpush1.msra.mxu0 0.0
    %119 = vmatprep.subr.mxu0 0.0
    %120 = vmatpush1.msra.mxu0 %v80
    %121 = vmatprep.subr.mxu0 0.0
    %122 = vmatpush1.msra.mxu0 %v79
    %123 = vmatprep.subr.mxu0 0.0
    %124 = vmatpush1.msra.mxu0 %v78
    %125 = vmatprep.subr.mxu0 0.0
    %126 = vmatpush1.msra.mxu0 %v77
    %127 = vmatprep.subr.mxu0 0.0
    %128 = vmatpush2.msra.mxu0 0.0
    %129 = vmatprep.subr.mxu0 0.0
    %130 = vmatpush2.msra.mxu0 0.0
    %131 = vmatprep.subr.mxu0 0.0
    %132 = vmatpush2.msra.mxu0 0.0
    %133 = vmatprep.subr.mxu0 0.0
    %134 = vmatpush2.msra.mxu0 0.0
    %135 = vmatprep.subr.mxu0 0.0
    %136 = vmatpush2.msra.mxu0 0.0
    %137 = vmatprep.subr.mxu0 0.0
    %138 = vmatpush2.msra.mxu0 0.0
    %139 = vmatprep.subr.mxu0 0.0
    %140 = vmatpush2.msra.mxu0 0.0
    %141 = vmatprep.subr.mxu0 0.0
    %142 = vmatpush2.msra.mxu0 0.0
    %143 = vmatprep.subr.mxu0 0.0
    %144 = vmatpush2.msra.mxu0 0.0
    %145 = vmatprep.subr.mxu0 0.0
    %146 = vmatpush2.msra.mxu0 0.0
    %147 = vmatprep.subr.mxu0 0.0
    %148 = vmatpush2.msra.mxu0 0.0
    %149 = vmatprep.subr.mxu0 0.0
    %150 = vmatpush2.msra.mxu0 0.0
    %151 = vmatprep.subr.mxu0 0.0
    %152 = vmatpush2.msra.mxu0 0.0
    %153 = vmatprep.subr.mxu0 0.0
    %154 = vmatpush2.msra.mxu0 0.0
    %155 = vmatprep.subr.mxu0 0.0
    %156 = vmatpush2.msra.mxu0 0.0
    %157 = vmatprep.subr.mxu0 0.0
    %158 = vmatpush2.msra.mxu0 0.0
    %159 = vmatprep.mubr.f32.mxu0 0.0
    %160 = vmatmul.mubr.f32.gmra.mxu0 %v90
    %v161 = vpop.f32.mrf.mxu0
    %v162 = vadd.f32 %v86, %v161
    %v163 = vpop.f32.mrf.mxu0
    %164 = vmatprep.mubr.f32.mxu0 0.0
    %165 = vmatmul.mubr.f32.gmra.mxu0 %v93
    %v166 = vpop.f32.mrf.mxu0
    %v167 = vadd.f32 %v86, %v166
    %v168 = vpop.f32.mrf.mxu0
    %169 = vdwg.mxu0
    %v170 = vld [vmem:[#allocation2] sm:$0xff]
    %v171 = vld [vmem:[#allocation2 + $0x8] sm:$0xff]
    %v172 = vadd.f32 %v162, %v170
    %v173 = vadd.f32 %v167, %v171
    %v174 = vsel %vm88, %v172, 0.0
    %175 = vadd.xlane.f32.xlu0 %v174
    %v176 = vpop.xlane.xlu0 %175
    %v177 = vsel %vm88, %v173, 0.0
    %178 = vadd.xlane.f32.xlu0 %v177
    %v179 = vpop.xlane.xlu0 %178
    %v180 = vrcp.pop 32.0
    %v181 = vmul.f32 %v176, %v180
    %v182 = vmul.f32 %v179, %v180
    %v183 = vsub.f32 %v172, %v181
    %v184 = vsub.f32 %v173, %v182
    %v185 = vmul.f32 %v183, %v183
    %v186 = vmul.f32 %v184, %v184
    %v187 = vsel %vm88, %v185, 0.0
    %188 = vadd.xlane.f32.xlu0 %v187
    %v189 = vpop.xlane.xlu0 %188
    %v190 = vsel %vm88, %v186, 0.0
    %191 = vadd.xlane.f32.xlu0 %v190
    %v192 = vpop.xlane.xlu0 %191
    %v193 = vmul.f32 %v189, %v180
    %v194 = vmul.f32 %v192, %v180
    %v195 = vadd.f32 %v193, 1e-05
    %v196 = vadd.f32 %v194, 1e-05
    %v197 = vrsqrt.pop %v195
    %v198 = vrsqrt.pop %v196
    %v199 = vmul.f32 %v183, %v197
    %v200 = vmul.f32 %v184, %v198
    %v201 = vld [vmem:[#allocation6] sm:$0x1]
    %v203 = vlaneseq
    %v204 = vshrl.u32 %v203, 7
    %v205 = vsub.s32 0, %v204
    %v206 = vrot.slane %v201, %v205
    %v208 = vmul.f32 %v199, %v206
    %v209 = vmul.f32 %v200, %v206
    %v210 = vld [vmem:[#allocation7] sm:$0x1]
    %v212 = vlaneseq
    %v213 = vshrl.u32 %v212, 7
    %v214 = vsub.s32 0, %v213
    %v215 = vrot.slane %v210, %v214
    %v217 = vadd.f32 %v208, %v215
    %v218 = vadd.f32 %v209, %v215
    %v219 = vld [vmem:[%s6] sm:$0xff]
    %v220 = vld [vmem:[%s6 + $0x8] sm:$0xff]
    %222 = vset.pattern.permute.xlu0 0
    %223 = vperm.xlu0 %222, %v219
    %v224 = vpop.permute.xlu0 %223
    %227 = vset.pattern.permute.xlu0 0
    %228 = vperm.xlu0 %227, %v220
    %v229 = vpop.permute.xlu0 %228
    %v231 = vmul.f32 %v217, %v224
    %v232 = vmul.f32 %v218, %v229
    %233 = vst.msk [vmem:[%s7] sm:$0xff] %vm88, %v231
    %234 = vst.msk [vmem:[%s7 + $0x8] sm:$0xff] %vm88, %v232
    // Predicated region
    $region46: #{fft_block_forward.6} parent=1 // pred_check
      _
    $region47: #{fft_block_forward.6} parent=1 // pred_check_branch
      %236 = sbr.rel (0) target = $region49
    $region48: #{fft_block_forward.6} parent=1 // pred_region
      _
    $region49: #{fft_block_forward.6} parent=1 // pred_fallthru
      _
    // Predicated region
    $region50: #{fft_block_forward.6} parent=1 // pred_check
      _
    $region51: #{fft_block_forward.6} parent=1 // pred_check_branch
      %238 = sbr.rel (0) target = $region53
    $region52: #{fft_block_forward.6} parent=1 // pred_region
      _
    $region53: #{fft_block_forward.6} parent=1 // pred_fallthru
      _
    %239 = vsyncpa [#allocation3], 1
    %240 = vsyncpa [#allocation5], 1
    %241 = vsyncpa [#allocation8], 1

// kernel: fft_block_forward.7
$region0: #{fft_block_forward.7}
  #allocation0 [shape = 'u32[]', space=smem, size = 0x4, offset = 0x4, fixed_abs, tag = 'smem constant byte address 0x4 - core index']
  #allocation1 [shape = 'u32[144,128]{1,0:T(1,128)}', space=vmem, size = 0x12000, scoped, tag = 'internal scratch']
  %s0 = inlined_call_operand.vmem [shape: f32[2,8,32], index: 0, kind: input, shape index: {}]
  %s1 = inlined_call_operand.vmem [shape: f32[9,32,64], index: 1, kind: input, shape index: {}]
  %s2 = inlined_call_operand.vmem [shape: f32[1,64], index: 2, kind: input, shape index: {}]
  %s3 = inlined_call_operand.vmem [shape: f32[1,64,32], index: 3, kind: input, shape index: {}]
  %s4 = inlined_call_operand.vmem [shape: f32[1,32], index: 4, kind: input, shape index: {}]
  %s5 = inlined_call_operand.vmem [shape: f32[1,32], index: 5, kind: input, shape index: {}]
  %s6 = inlined_call_operand.vmem [shape: f32[1,32], index: 6, kind: input, shape index: {}]
  %s7 = inlined_call_operand.vmem [shape: f32[2,8,1], index: 7, kind: input, shape index: {}]
  %s8 = inlined_call_operand.hbm [shape: f32[2,8,32], index: 8, kind: output, shape index: {}]
  %s9 = sld [smem:[#allocation0]]
  $region65: #{fft_block_forward.7} parent=0
    _
  %s11 = ssub.s32 1, %s9
  %s12 = scalar_select 0, %s11, %s9
  $region1: #{fft_block_forward.7} parent=0
    #allocation2 [shape = 'u8[8192]{0}', space=vmem, size = 0x2000, scoped, tag = 'output window, operand 0']
    #allocation3 [shape = 's32[2]{0}', space=sflag, size = 0x8, scoped, tag = 'scoped memory for fft_block_forward.7']
    %13 = vsyncpa [#allocation3], 0
    %s14 = scalar_lea.sflag [#allocation3], 1
    %15 = vsyncpa %s14, 0
    loop: start=0, step=1, limit=4
    $region2: #{fft_block_forward.7} parent=1 // loop_pre_header
      _
    $region3: #{fft_block_forward.7} parent=1 // loop_header
      %s17 = sphi 0, %s21
      %p18 = scmp.ge.s32.totalorder %s17, 4
      %s27 = sphi 0, %s29
      %s30 = sphi 0, %s27
      %s31 = sphi 0, %s30
      %s47 = sphi 0, %s31
      %s51 = sphi 0, %s51
      %s53 = sphi 0, %s51
      %s54 = sphi 0, %s53
      %s68 = sphi 0, %s54
      %s72 = sphi 0, %s72
      %s74 = sphi 0, %s72
      %s75 = sphi 0, %s74
      %s89 = sphi 0, %s75
      %s93 = sphi 0, %s93
      %s95 = sphi 0, %s93
      %s96 = sphi 0, %s95
      %s110 = sphi 0, %s96
      %s114 = sphi 0, %s114
      %s116 = sphi 0, %s114
      %s117 = sphi 0, %s116
      %s131 = sphi 0, %s117
      %s135 = sphi 0, %s135
      %s137 = sphi 0, %s135
      %s138 = sphi 0, %s137
      %s152 = sphi 0, %s138
      %s156 = sphi 0, %s156
      %s158 = sphi 0, %s156
      %s159 = sphi 0, %s158
      %s173 = sphi 0, %s159
      %s179 = sphi 0, %s181
      %s182 = sphi 0, %s179
      %s183 = sphi 0, %s182
      %s199 = sphi 0, %s183
      %s205 = sphi 0, %s207
      %s208 = sphi 0, %s205
      %s209 = sphi 0, %s208
      %s225 = sphi 0, %s209
    $region4: #{fft_block_forward.7} parent=1 // loop_header_branch
      %20 = sbr.rel (%p18) target = $region8
    $region5: #{fft_block_forward.7} parent=1 // loop_body
      %s22 = ssub.s32 %s17, 1
      %s23 = ssub.s32 %s17, 2
      %s24 = sadd.s32 %s17, 1
      %s25 = ssub.s32 %s17, %s24
      %p26 = scmp.eq.s32.totalorder %s25, 0
      %s28 = sadd.s32 %s27, 1
      %s29 = scalar_select %p26, %s27, %s28
      %p32 = pneg %p26
      %p33 = scmp.eq.s32.totalorder %s17, 1
      %p34 = por %p32, %p33
      %p35 = scmp.ne.s32.totalorder %s27, %s30
      %p36 = scmp.eq.s32.totalorder %s17, 0
      %p37 = por %p35, %p36
      %p38 = scmp.ne.s32.totalorder %s27, %s30
      %p39 = scmp.eq.s32.totalorder %s22, 1
      %p40 = por %p38, %p39
      %p41 = scmp.ne.s32.totalorder %s30, %s31
      %p42 = scmp.eq.s32.totalorder %s22, 0
      %p43 = por %p41, %p42
      %p44 = scmp.ne.s32.totalorder %s30, %s31
      %p45 = scmp.eq.s32.totalorder %s23, 1
      %p46 = por %p44, %p45
      %p48 = scmp.ne.s32.totalorder %s31, %s47
      %p49 = scmp.eq.s32.totalorder %s23, 0
      %p50 = por %p48, %p49
      %s52 = sadd.s32 %s51, 1
      %p55 = scmp.eq.s32.totalorder %s17, 1
      %p56 = scmp.ne.s32.totalorder %s51, %s53
      %p57 = scmp.eq.s32.totalorder %s17, 0
      %p58 = por %p56, %p57
      %p59 = scmp.ne.s32.totalorder %s51, %s53
      %p60 = scmp.eq.s32.totalorder %s22, 1
      %p61 = por %p59, %p60
      %p62 = scmp.ne.s32.totalorder %s53, %s54
      %p63 = scmp.eq.s32.totalorder %s22, 0
      %p64 = por %p62, %p63
      %p65 = scmp.ne.s32.totalorder %s53, %s54
      %p66 = scmp.eq.s32.totalorder %s23, 1
      %p67 = por %p65, %p66
      %p69 = scmp.ne.s32.totalorder %s54, %s68
      %p70 = scmp.eq.s32.totalorder %s23, 0
      %p71 = por %p69, %p70
      %s73 = sadd.s32 %s72, 1
      %p76 = scmp.eq.s32.totalorder %s17, 1
      %p77 = scmp.ne.s32.totalorder %s72, %s74
      %p78 = scmp.eq.s32.totalorder %s17, 0
      %p79 = por %p77, %p78
      %p80 = scmp.ne.s32.totalorder %s72, %s74
      %p81 = scmp.eq.s32.totalorder %s22, 1
      %p82 = por %p80, %p81
      %p83 = scmp.ne.s32.totalorder %s74, %s75
      %p84 = scmp.eq.s32.totalorder %s22, 0
      %p85 = por %p83, %p84
      %p86 = scmp.ne.s32.totalorder %s74, %s75
      %p87 = scmp.eq.s32.totalorder %s23, 1
      %p88 = por %p86, %p87
      %p90 = scmp.ne.s32.totalorder %s75, %s89
      %p91 = scmp.eq.s32.totalorder %s23, 0
      %p92 = por %p90, %p91
      %s94 = sadd.s32 %s93, 1
      %p97 = scmp.eq.s32.totalorder %s17, 1
      %p98 = scmp.ne.s32.totalorder %s93, %s95
      %p99 = scmp.eq.s32.totalorder %s17, 0
      %p100 = por %p98, %p99
      %p101 = scmp.ne.s32.totalorder %s93, %s95
      %p102 = scmp.eq.s32.totalorder %s22, 1
      %p103 = por %p101, %p102
      %p104 = scmp.ne.s32.totalorder %s95, %s96
      %p105 = scmp.eq.s32.totalorder %s22, 0
      %p106 = por %p104, %p105
      %p107 = scmp.ne.s32.totalorder %s95, %s96
      %p108 = scmp.eq.s32.totalorder %s23, 1
      %p109 = por %p107, %p108
      %p111 = scmp.ne.s32.totalorder %s96, %s110
      %p112 = scmp.eq.s32.totalorder %s23, 0
      %p113 = por %p111, %p112
      %s115 = sadd.s32 %s114, 1
      %p118 = scmp.eq.s32.totalorder %s17, 1
      %p119 = scmp.ne.s32.totalorder %s114, %s116
      %p120 = scmp.eq.s32.totalorder %s17, 0
      %p121 = por %p119, %p120
      %p122 = scmp.ne.s32.totalorder %s114, %s116
      %p123 = scmp.eq.s32.totalorder %s22, 1
      %p124 = por %p122, %p123
      %p125 = scmp.ne.s32.totalorder %s116, %s117
      %p126 = scmp.eq.s32.totalorder %s22, 0
      %p127 = por %p125, %p126
      %p128 = scmp.ne.s32.totalorder %s116, %s117
      %p129 = scmp.eq.s32.totalorder %s23, 1
      %p130 = por %p128, %p129
      %p132 = scmp.ne.s32.totalorder %s117, %s131
      %p133 = scmp.eq.s32.totalorder %s23, 0
      %p134 = por %p132, %p133
      %s136 = sadd.s32 %s135, 1
      %p139 = scmp.eq.s32.totalorder %s17, 1
      %p140 = scmp.ne.s32.totalorder %s135, %s137
      %p141 = scmp.eq.s32.totalorder %s17, 0
      %p142 = por %p140, %p141
      %p143 = scmp.ne.s32.totalorder %s135, %s137
      %p144 = scmp.eq.s32.totalorder %s22, 1
      %p145 = por %p143, %p144
      %p146 = scmp.ne.s32.totalorder %s137, %s138
      %p147 = scmp.eq.s32.totalorder %s22, 0
      %p148 = por %p146, %p147
      %p149 = scmp.ne.s32.totalorder %s137, %s138
      %p150 = scmp.eq.s32.totalorder %s23, 1
      %p151 = por %p149, %p150
      %p153 = scmp.ne.s32.totalorder %s138, %s152
      %p154 = scmp.eq.s32.totalorder %s23, 0
      %p155 = por %p153, %p154
      %s157 = sadd.s32 %s156, 1
      %p160 = scmp.eq.s32.totalorder %s17, 1
      %p161 = scmp.ne.s32.totalorder %s156, %s158
      %p162 = scmp.eq.s32.totalorder %s17, 0
      %p163 = por %p161, %p162
      %p164 = scmp.ne.s32.totalorder %s156, %s158
      %p165 = scmp.eq.s32.totalorder %s22, 1
      %p166 = por %p164, %p165
      %p167 = scmp.ne.s32.totalorder %s158, %s159
      %p168 = scmp.eq.s32.totalorder %s22, 0
      %p169 = por %p167, %p168
      %p170 = scmp.ne.s32.totalorder %s158, %s159
      %p171 = scmp.eq.s32.totalorder %s23, 1
      %p172 = por %p170, %p171
      %p174 = scmp.ne.s32.totalorder %s159, %s173
      %p175 = scmp.eq.s32.totalorder %s23, 0
      %p176 = por %p174, %p175
      %s177 = ssub.s32 %s17, %s24
      %p178 = scmp.eq.s32.totalorder %s177, 0
      %s180 = sadd.s32 %s179, 1
      %s181 = scalar_select %p178, %s179, %s180
      %p184 = pneg %p178
      %p185 = scmp.eq.s32.totalorder %s17, 1
      %p186 = por %p184, %p185
      %p187 = scmp.ne.s32.totalorder %s179, %s182
      %p188 = scmp.eq.s32.totalorder %s17, 0
      %p189 = por %p187, %p188
      %p190 = scmp.ne.s32.totalorder %s179, %s182
      %p191 = scmp.eq.s32.totalorder %s22, 1
      %p192 = por %p190, %p191
      %p193 = scmp.ne.s32.totalorder %s182, %s183
      %p194 = scmp.eq.s32.totalorder %s22, 0
      %p195 = por %p193, %p194
      %p196 = scmp.ne.s32.totalorder %s182, %s183
      %p197 = scmp.eq.s32.totalorder %s23, 1
      %p198 = por %p196, %p197
      %p200 = scmp.ne.s32.totalorder %s183, %s199
      %p201 = scmp.eq.s32.totalorder %s23, 0
      %p202 = por %p200, %p201
      %s203 = ssub.s32 %s17, %s24
      %p204 = scmp.eq.s32.totalorder %s203, 0
      %s206 = sadd.s32 %s205, 1
      %s207 = scalar_select %p204, %s205, %s206
      %p210 = pneg %p204
      %p211 = scmp.eq.s32.totalorder %s17, 1
      %p212 = por %p210, %p211
      %p213 = scmp.ne.s32.totalorder %s205, %s208
      %p214 = scmp.eq.s32.totalorder %s17, 0
      %p215 = por %p213, %p214
      %p216 = scmp.ne.s32.totalorder %s205, %s208
      %p217 = scmp.eq.s32.totalorder %s22, 1
      %p218 = por %p216, %p217
      %p219 = scmp.ne.s32.totalorder %s208, %s209
      %p220 = scmp.eq.s32.totalorder %s22, 0
      %p221 = por %p219, %p220
      %p222 = scmp.ne.s32.totalorder %s208, %s209
      %p223 = scmp.eq.s32.totalorder %s23, 1
      %p224 = por %p222, %p223
      %p226 = scmp.ne.s32.totalorder %s209, %s225
      %p227 = scmp.eq.s32.totalorder %s23, 0
      %p228 = por %p226, %p227
      %p229 = scmp.le.s32.totalorder 1, %s17
      %p230 = scmp.lt.s32.totalorder %s17, 3
      %p231 = pnand %p229, %p230
      %p232 = pneg %p231
      // Predicated region
      $region9: #{fft_block_forward.7} parent=5 // pred_check
        _
      $region10: #{fft_block_forward.7} parent=5 // pred_check_branch
        %234 = sbr.rel (%p231) target = $region12
      $region11: #{fft_block_forward.7} parent=5 // pred_region
        %s235 = ssub.s32 %s17, 1
        // Predicated region
        $region13: #{fft_block_forward.7} parent=11 // pred_check
          %p236 = pneg %p64
        $region14: #{fft_block_forward.7} parent=11 // pred_check_branch
          %238 = sbr.rel (%p236) target = $region16
        $region15: #{fft_block_forward.7} parent=11 // pred_region
          _
        $region16: #{fft_block_forward.7} parent=11 // pred_fallthru
          _
        // Predicated region
        $region17: #{fft_block_forward.7} parent=11 // pred_check
          %p239 = pneg %p85
        $region18: #{fft_block_forward.7} parent=11 // pred_check_branch
          %241 = sbr.rel (%p239) target = $region20
        $region19: #{fft_block_forward.7} parent=11 // pred_region
          _
        $region20: #{fft_block_forward.7} parent=11 // pred_fallthru
          _
        // Predicated region
        $region21: #{fft_block_forward.7} parent=11 // pred_check
          %p242 = pneg %p106
        $region22: #{fft_block_forward.7} parent=11 // pred_check_branch
          %244 = sbr.rel (%p242) target = $region24
        $region23: #{fft_block_forward.7} parent=11 // pred_region
          _
        $region24: #{fft_block_forward.7} parent=11 // pred_fallthru
          _
        // Predicated region
        $region25: #{fft_block_forward.7} parent=11 // pred_check
          %p245 = pneg %p127
        $region26: #{fft_block_forward.7} parent=11 // pred_check_branch
          %247 = sbr.rel (%p245) target = $region28
        $region27: #{fft_block_forward.7} parent=11 // pred_region
          _
        $region28: #{fft_block_forward.7} parent=11 // pred_fallthru
          _
        // Predicated region
        $region29: #{fft_block_forward.7} parent=11 // pred_check
          %p248 = pneg %p148
        $region30: #{fft_block_forward.7} parent=11 // pred_check_branch
          %250 = sbr.rel (%p248) target = $region32
        $region31: #{fft_block_forward.7} parent=11 // pred_region
          _
        $region32: #{fft_block_forward.7} parent=11 // pred_fallthru
          _
        // Predicated region
        $region33: #{fft_block_forward.7} parent=11 // pred_check
          %p251 = pneg %p169
        $region34: #{fft_block_forward.7} parent=11 // pred_check_branch
          %253 = sbr.rel (%p251) target = $region36
        $region35: #{fft_block_forward.7} parent=11 // pred_region
          _
        $region36: #{fft_block_forward.7} parent=11 // pred_fallthru
          _
      $region12: #{fft_block_forward.7} parent=5 // pred_fallthru
        _
      %p254 = scmp.lt.s32.totalorder %s17, 2
      // Predicated region
      $region37: #{fft_block_forward.7} parent=5 // pred_check
        %p255 = pneg %p254
      $region38: #{fft_block_forward.7} parent=5 // pred_check_branch
        %257 = sbr.rel (%p255) target = $region40
      $region39: #{fft_block_forward.7} parent=5 // pred_region
        // Predicated region
        $region41: #{fft_block_forward.7} parent=39 // pred_check
          %p258 = pneg %p37
        $region42: #{fft_block_forward.7} parent=39 // pred_check_branch
          %260 = sbr.rel (%p258) target = $region44
        $region43: #{fft_block_forward.7} parent=39 // pred_region
          %p261 = scmp.lt.s32.totalorder %s17, 1
          %s262 = scalar_select %p261, %s17, 1
          %s263 = smul.addr %s262, 8
          %s264 = scalar_lea.vmem %s0, %s263
        $region44: #{fft_block_forward.7} parent=39 // pred_fallthru
          _
        // Predicated region
        $region45: #{fft_block_forward.7} parent=39 // pred_check
          %p265 = pneg %p189
        $region46: #{fft_block_forward.7} parent=39 // pred_check_branch
          %267 = sbr.rel (%p265) target = $region48
        $region47: #{fft_block_forward.7} parent=39 // pred_region
          %p268 = scmp.lt.s32.totalorder %s17, 1
          %s269 = scalar_select %p268, %s17, 1
          %s270 = smul.addr %s269, 8
          %s271 = scalar_lea.vmem %s7, %s270
        $region48: #{fft_block_forward.7} parent=39 // pred_fallthru
          _
      $region40: #{fft_block_forward.7} parent=5 // pred_fallthru
        _
      %p272 = scmp.le.s32.totalorder 1, %s17
      %p273 = scmp.lt.s32.totalorder %s17, 3
      %p274 = pnand %p272, %p273
      %p275 = pneg %p274
      // Predicated region
      $region49: #{fft_block_forward.7} parent=5 // pred_check
        _
      $region50: #{fft_block_forward.7} parent=5 // pred_check_branch
        %277 = sbr.rel (%p274) target = $region52
      $region51: #{fft_block_forward.7} parent=5 // pred_region
        %s278 = ssub.s32 %s17, 1
        %p279 = scmp.lt.s32.totalorder %s22, 1
        %s280 = scalar_select %p279, %s22, 1
        %s281 = smul.addr %s280, 8
        %s282 = scalar_lea.vmem %s0, %s281
        %p283 = pneg %p43
        %p284 = pneg %p40
        %p285 = pneg %p64
        %p286 = pneg %p61
        %p287 = pneg %p85
        %p288 = pneg %p82
        %p289 = pneg %p106
        %p290 = pneg %p103
        %p291 = pneg %p127
        %p292 = pneg %p124
        %p293 = pneg %p148
        %p294 = pneg %p145
        %p295 = pneg %p169
        %p296 = pneg %p166
        %p297 = scmp.lt.s32.totalorder %s22, 1
        %s298 = scalar_select %p297, %s22, 1
        %s299 = smul.addr %s298, 8
        %s300 = scalar_lea.vmem %s7, %s299
        %p301 = pneg %p195
        %p302 = pneg %p192
        %p303 = pneg %p221
        %p304 = pneg %p218
        %s305 = sand.u32 %s208, 1
        %s306 = scalar_lea.sflag [#allocation3], %s305
        %s307 = sand.u32 %s208, 1
        %s308 = smul.addr %s307, 8
        %s309 = scalar_lea.vmem [#allocation2], %s308
        %p310 = scmp.lt.s32.totalorder %s22, 1
        %s311 = scalar_select %p310, %s22, 1
        %s312 = smul.addr %s311, 8
        %s313 = scalar_lea.vmem %s0, %s312
        %p314 = scmp.lt.s32.totalorder %s22, 1
        %s315 = scalar_select %p314, %s22, 1
        %s316 = smul.addr %s315, 8
        %s317 = scalar_lea.vmem %s7, %s316
        %v318 = vld [vmem:[%s313] sm:$0xff]
        %v320 = vrot.slane %v318, 4
        %vm322 = vcmask 1043456
        %v323 = vsel %vm322, 0.0, %v320
        %v324 = vsel %vm322, %v320, 0.0
        %v325 = vld [vmem:[%s1] sm:$0xff]
        %v326 = vld [vmem:[%s1 + $0x8] sm:$0xff]
        %v327 = vld [vmem:[%s1 + $0x10] sm:$0xff]
        %v328 = vld [vmem:[%s1 + $0x18] sm:$0xff]
        %s329 = scalar_lea.vmem %s1, 32
        %v330 = vld [vmem:[%s329] sm:$0xff]
        %v331 = vld [vmem:[%s329 + $0x8] sm:$0xff]
        %v332 = vld [vmem:[%s329 + $0x10] sm:$0xff]
        %v333 = vld [vmem:[%s329 + $0x18] sm:$0xff]
        %vm336 = vcmask 1046528
        %v337 = vrot.slane %v323, 1
        %v338 = vrot.slane %v324, 1
        %v339 = vsel %vm336, %v337, %v338
        %vm340 = vcmask 261120
        %v341 = vsel %vm340, %v339, 0
        %343 = vmatprep.subr.mxu0 0.0
        %344 = vmatpush1.msra.mxu0 0.0
        %345 = vmatprep.subr.mxu0 0.0
        %346 = vmatpush1.msra.mxu0 0.0
        %347 = vmatprep.subr.mxu0 0.0
        %348 = vmatpush1.msra.mxu0 0.0
        %349 = vmatprep.subr.mxu0 0.0
        %350 = vmatpush1.msra.mxu0 0.0
        %351 = vmatprep.subr.mxu0 0.0
        %352 = vmatpush1.msra.mxu0 0.0
        %353 = vmatprep.subr.mxu0 0.0
        %354 = vmatpush1.msra.mxu0 0.0
        %355 = vmatprep.subr.mxu0 0.0
        %356 = vmatpush1.msra.mxu0 0.0
        %357 = vmatprep.subr.mxu0 0.0
        %358 = vmatpush1.msra.mxu0 0.0
        %359 = vmatprep.subr.mxu0 0.0
        %360 = vmatpush1.msra.mxu0 0.0
        %361 = vmatprep.subr.mxu0 0.0
        %362 = vmatpush1.msra.mxu0 0.0
        %363 = vmatprep.subr.mxu0 0.0
        %364 = vmatpush1.msra.mxu0 0.0
        %365 = vmatprep.subr.mxu0 0.0
        %366 = vmatpush1.msra.mxu0 0.0
        %367 = vmatprep.subr.mxu0 0.0
        %368 = vmatpush1.msra.mxu0 %v333
        %369 = vmatprep.subr.mxu0 0.0
        %370 = vmatpush1.msra.mxu0 %v332
        %371 = vmatprep.subr.mxu0 0.0
        %372 = vmatpush1.msra.mxu0 %v331
        %373 = vmatprep.subr.mxu0 0.0
        %374 = vmatpush1.msra.mxu0 %v330
        %375 = vmatprep.subr.mxu0 0.0
        %376 = vmatpush2.msra.mxu0 0.0
        %377 = vmatprep.subr.mxu0 0.0
        %378 = vmatpush2.msra.mxu0 0.0
        %379 = vmatprep.subr.mxu0 0.0
        %380 = vmatpush2.msra.mxu0 0.0
        %381 = vmatprep.subr.mxu0 0.0
        %382 = vmatpush2.msra.mxu0 0.0
        %383 = vmatprep.subr.mxu0 0.0
        %384 = vmatpush2.msra.mxu0 0.0
        %385 = vmatprep.subr.mxu0 0.0
        %386 = vmatpush2.msra.mxu0 0.0
        %387 = vmatprep.subr.mxu0 0.0
        %388 = vmatpush2.msra.mxu0 0.0
        %389 = vmatprep.subr.mxu0 0.0
        %390 = vmatpush2.msra.mxu0 0.0
        %391 = vmatprep.subr.mxu0 0.0
        %392 = vmatpush2.msra.mxu0 0.0
        %393 = vmatprep.subr.mxu0 0.0
        %394 = vmatpush2.msra.mxu0 0.0
        %395 = vmatprep.subr.mxu0 0.0
        %396 = vmatpush2.msra.mxu0 0.0
        %397 = vmatprep.subr.mxu0 0.0
        %398 = vmatpush2.msra.mxu0 0.0
        %399 = vmatprep.subr.mxu0 0.0
        %400 = vmatpush2.msra.mxu0 0.0
        %401 = vmatprep.subr.mxu0 0.0
        %402 = vmatpush2.msra.mxu0 0.0
        %403 = vmatprep.subr.mxu0 0.0
        %404 = vmatpush2.msra.mxu0 0.0
        %405 = vmatprep.subr.mxu0 0.0
        %406 = vmatpush2.msra.mxu0 0.0
        %407 = vmatprep.mubr.f32.mxu0 0.0
        %408 = vmatmul.mubr.f32.gmra.mxu0 %v341
        %v409 = vpop.f32.mrf.mxu0
        %v410 = vadd.f32 0.0, %v409
        %v411 = vpop.f32.mrf.mxu0
        %412 = vdwg.mxu0
        %v413 = vsel %vm340, %v323, 0
        %415 = vmatprep.subr.mxu0 0.0
        %416 = vmatpush1.msra.mxu0 0.0
        %417 = vmatprep.subr.mxu0 0.0
        %418 = vmatpush1.msra.mxu0 0.0
        %419 = vmatprep.subr.mxu0 0.0
        %420 = vmatpush1.msra.mxu0 0.0
        %421 = vmatprep.subr.mxu0 0.0
        %422 = vmatpush1.msra.mxu0 0.0
        %423 = vmatprep.subr.mxu0 0.0
        %424 = vmatpush1.msra.mxu0 0.0
        %425 = vmatprep.subr.mxu0 0.0
        %426 = vmatpush1.msra.mxu0 0.0
        %427 = vmatprep.subr.mxu0 0.0
        %428 = vmatpush1.msra.mxu0 0.0
        %429 = vmatprep.subr.mxu0 0.0
        %430 = vmatpush1.msra.mxu0 0.0
        %431 = vmatprep.subr.mxu0 0.0
        %432 = vmatpush1.msra.mxu0 0.0
        %433 = vmatprep.subr.mxu0 0.0
        %434 = vmatpush1.msra.mxu0 0.0
        %435 = vmatprep.subr.mxu0 0.0
        %436 = vmatpush1.msra.mxu0 0.0
        %437 = vmatprep.subr.mxu0 0.0
        %438 = vmatpush1.msra.mxu0 0.0
        %439 = vmatprep.subr.mxu0 0.0
        %440 = vmatpush1.msra.mxu0 %v328
        %441 = vmatprep.subr.mxu0 0.0
        %442 = vmatpush1.msra.mxu0 %v327
        %443 = vmatprep.subr.mxu0 0.0
        %444 = vmatpush1.msra.mxu0 %v326
        %445 = vmatprep.subr.mxu0 0.0
        %446 = vmatpush1.msra.mxu0 %v325
        %447 = vmatprep.subr.mxu0 0.0
        %448 = vmatpush2.msra.mxu0 0.0
        %449 = vmatprep.subr.mxu0 0.0
        %450 = vmatpush2.msra.mxu0 0.0
        %451 = vmatprep.subr.mxu0 0.0
        %452 = vmatpush2.msra.mxu0 0.0
        %453 = vmatprep.subr.mxu0 0.0
        %454 = vmatpush2.msra.mxu0 0.0
        %455 = vmatprep.subr.mxu0 0.0
        %456 = vmatpush2.msra.mxu0 0.0
        %457 = vmatprep.subr.mxu0 0.0
        %458 = vmatpush2.msra.mxu0 0.0
        %459 = vmatprep.subr.mxu0 0.0
        %460 = vmatpush2.msra.mxu0 0.0
        %461 = vmatprep.subr.mxu0 0.0
        %462 = vmatpush2.msra.mxu0 0.0
        %463 = vmatprep.subr.mxu0 0.0
        %464 = vmatpush2.msra.mxu0 0.0
        %465 = vmatprep.subr.mxu0 0.0
        %466 = vmatpush2.msra.mxu0 0.0
        %467 = vmatprep.subr.mxu0 0.0
        %468 = vmatpush2.msra.mxu0 0.0
        %469 = vmatprep.subr.mxu0 0.0
        %470 = vmatpush2.msra.mxu0 0.0
        %471 = vmatprep.subr.mxu0 0.0
        %472 = vmatpush2.msra.mxu0 0.0
        %473 = vmatprep.subr.mxu0 0.0
        %474 = vmatpush2.msra.mxu0 0.0
        %475 = vmatprep.subr.mxu0 0.0
        %476 = vmatpush2.msra.mxu0 0.0
        %477 = vmatprep.subr.mxu0 0.0
        %478 = vmatpush2.msra.mxu0 0.0
        %479 = vmatprep.mubr.f32.mxu0 0.0
        %480 = vmatmul.mubr.f32.gmra.mxu0 %v413
        %v481 = vpop.f32.mrf.mxu0
        %v482 = vadd.f32 %v410, %v481
        %v483 = vpop.f32.mrf.mxu0
        %484 = vdwg.mxu0
        %s485 = scalar_lea.vmem %s1, 64
        %v486 = vld [vmem:[%s485] sm:$0xff]
        %v487 = vld [vmem:[%s485 + $0x8] sm:$0xff]
        %v488 = vld [vmem:[%s485 + $0x10] sm:$0xff]
        %v489 = vld [vmem:[%s485 + $0x18] sm:$0xff]
        %vm490 = vcmask 1045504
        %v491 = vrot.slane %v323, 2
        %v492 = vrot.slane %v324, 2
        %v493 = vsel %vm490, %v491, %v492
        %v494 = vsel %vm340, %v493, 0
        %496 = vmatprep.subr.mxu0 0.0
        %497 = vmatpush1.msra.mxu0 0.0
        %498 = vmatprep.subr.mxu0 0.0
        %499 = vmatpush1.msra.mxu0 0.0
        %500 = vmatprep.subr.mxu0 0.0
        %501 = vmatpush1.msra.mxu0 0.0
        %502 = vmatprep.subr.mxu0 0.0
        %503 = vmatpush1.msra.mxu0 0.0
        %504 = vmatprep.subr.mxu0 0.0
        %505 = vmatpush1.msra.mxu0 0.0
        %506 = vmatprep.subr.mxu0 0.0
        %507 = vmatpush1.msra.mxu0 0.0
        %508 = vmatprep.subr.mxu0 0.0
        %509 = vmatpush1.msra.mxu0 0.0
        %510 = vmatprep.subr.mxu0 0.0
        %511 = vmatpush1.msra.mxu0 0.0
        %512 = vmatprep.subr.mxu0 0.0
        %513 = vmatpush1.msra.mxu0 0.0
        %514 = vmatprep.subr.mxu0 0.0
        %515 = vmatpush1.msra.mxu0 0.0
        %516 = vmatprep.subr.mxu0 0.0
        %517 = vmatpush1.msra.mxu0 0.0
        %518 = vmatprep.subr.mxu0 0.0
        %519 = vmatpush1.msra.mxu0 0.0
        %520 = vmatprep.subr.mxu0 0.0
        %521 = vmatpush1.msra.mxu0 %v489
        %522 = vmatprep.subr.mxu0 0.0
        %523 = vmatpush1.msra.mxu0 %v488
        %524 = vmatprep.subr.mxu0 0.0
        %525 = vmatpush1.msra.mxu0 %v487
        %526 = vmatprep.subr.mxu0 0.0
        %527 = vmatpush1.msra.mxu0 %v486
        %528 = vmatprep.subr.mxu0 0.0
        %529 = vmatpush2.msra.mxu0 0.0
        %530 = vmatprep.subr.mxu0 0.0
        %531 = vmatpush2.msra.mxu0 0.0
        %532 = vmatprep.subr.mxu0 0.0
        %533 = vmatpush2.msra.mxu0 0.0
        %534 = vmatprep.subr.mxu0 0.0
        %535 = vmatpush2.msra.mxu0 0.0
        %536 = vmatprep.subr.mxu0 0.0
        %537 = vmatpush2.msra.mxu0 0.0
        %538 = vmatprep.subr.mxu0 0.0
        %539 = vmatpush2.msra.mxu0 0.0
        %540 = vmatprep.subr.mxu0 0.0
        %541 = vmatpush2.msra.mxu0 0.0
        %542 = vmatprep.subr.mxu0 0.0
        %543 = vmatpush2.msra.mxu0 0.0
        %544 = vmatprep.subr.mxu0 0.0
        %545 = vmatpush2.msra.mxu0 0.0
        %546 = vmatprep.subr.mxu0 0.0
        %547 = vmatpush2.msra.mxu0 0.0
        %548 = vmatprep.subr.mxu0 0.0
        %549 = vmatpush2.msra.mxu0 0.0
        %550 = vmatprep.subr.mxu0 0.0
        %551 = vmatpush2.msra.mxu0 0.0
        %552 = vmatprep.subr.mxu0 0.0
        %553 = vmatpush2.msra.mxu0 0.0
        %554 = vmatprep.subr.mxu0 0.0
        %555 = vmatpush2.msra.mxu0 0.0
        %556 = vmatprep.subr.mxu0 0.0
        %557 = vmatpush2.msra.mxu0 0.0
        %558 = vmatprep.subr.mxu0 0.0
        %559 = vmatpush2.msra.mxu0 0.0
        %560 = vmatprep.mubr.f32.mxu0 0.0
        %561 = vmatmul.mubr.f32.gmra.mxu0 %v494
        %v562 = vpop.f32.mrf.mxu0
        %v563 = vadd.f32 0.0, %v562
        %v564 = vpop.f32.mrf.mxu0
        %565 = vdwg.mxu0
        %v566 = vadd.f32 %v482, %v563
        %s567 = scalar_lea.vmem %s1, 96
        %v568 = vld [vmem:[%s567] sm:$0xff]
        %v569 = vld [vmem:[%s567 + $0x8] sm:$0xff]
        %v570 = vld [vmem:[%s567 + $0x10] sm:$0xff]
        %v571 = vld [vmem:[%s567 + $0x18] sm:$0xff]
        %vm572 = vcmask 1044480
        %v573 = vrot.slane %v323, 3
        %v574 = vrot.slane %v324, 3
        %v575 = vsel %vm572, %v573, %v574
        %v576 = vsel %vm340, %v575, 0
        %578 = vmatprep.subr.mxu0 0.0
        %579 = vmatpush1.msra.mxu0 0.0
        %580 = vmatprep.subr.mxu0 0.0
        %581 = vmatpush1.msra.mxu0 0.0
        %582 = vmatprep.subr.mxu0 0.0
        %583 = vmatpush1.msra.mxu0 0.0
        %584 = vmatprep.subr.mxu0 0.0
        %585 = vmatpush1.msra.mxu0 0.0
        %586 = vmatprep.subr.mxu0 0.0
        %587 = vmatpush1.msra.mxu0 0.0
        %588 = vmatprep.subr.mxu0 0.0
        %589 = vmatpush1.msra.mxu0 0.0
        %590 = vmatprep.subr.mxu0 0.0
        %591 = vmatpush1.msra.mxu0 0.0
        %592 = vmatprep.subr.mxu0 0.0
        %593 = vmatpush1.msra.mxu0 0.0
        %594 = vmatprep.subr.mxu0 0.0
        %595 = vmatpush1.msra.mxu0 0.0
        %596 = vmatprep.subr.mxu0 0.0
        %597 = vmatpush1.msra.mxu0 0.0
        %598 = vmatprep.subr.mxu0 0.0
        %599 = vmatpush1.msra.mxu0 0.0
        %600 = vmatprep.subr.mxu0 0.0
        %601 = vmatpush1.msra.mxu0 0.0
        %602 = vmatprep.subr.mxu0 0.0
        %603 = vmatpush1.msra.mxu0 %v571
        %604 = vmatprep.subr.mxu0 0.0
        %605 = vmatpush1.msra.mxu0 %v570
        %606 = vmatprep.subr.mxu0 0.0
        %607 = vmatpush1.msra.mxu0 %v569
        %608 = vmatprep.subr.mxu0 0.0
        %609 = vmatpush1.msra.mxu0 %v568
        %610 = vmatprep.subr.mxu0 0.0
        %611 = vmatpush2.msra.mxu0 0.0
        %612 = vmatprep.subr.mxu0 0.0
        %613 = vmatpush2.msra.mxu0 0.0
        %614 = vmatprep.subr.mxu0 0.0
        %615 = vmatpush2.msra.mxu0 0.0
        %616 = vmatprep.subr.mxu0 0.0
        %617 = vmatpush2.msra.mxu0 0.0
        %618 = vmatprep.subr.mxu0 0.0
        %619 = vmatpush2.msra.mxu0 0.0
        %620 = vmatprep.subr.mxu0 0.0
        %621 = vmatpush2.msra.mxu0 0.0
        %622 = vmatprep.subr.mxu0 0.0
        %623 = vmatpush2.msra.mxu0 0.0
        %624 = vmatprep.subr.mxu0 0.0
        %625 = vmatpush2.msra.mxu0 0.0
        %626 = vmatprep.subr.mxu0 0.0
        %627 = vmatpush2.msra.mxu0 0.0
        %628 = vmatprep.subr.mxu0 0.0
        %629 = vmatpush2.msra.mxu0 0.0
        %630 = vmatprep.subr.mxu0 0.0
        %631 = vmatpush2.msra.mxu0 0.0
        %632 = vmatprep.subr.mxu0 0.0
        %633 = vmatpush2.msra.mxu0 0.0
        %634 = vmatprep.subr.mxu0 0.0
        %635 = vmatpush2.msra.mxu0 0.0
        %636 = vmatprep.subr.mxu0 0.0
        %637 = vmatpush2.msra.mxu0 0.0
        %638 = vmatprep.subr.mxu0 0.0
        %639 = vmatpush2.msra.mxu0 0.0
        %640 = vmatprep.subr.mxu0 0.0
        %641 = vmatpush2.msra.mxu0 0.0
        %642 = vmatprep.mubr.f32.mxu0 0.0
        %643 = vmatmul.mubr.f32.gmra.mxu0 %v576
        %v644 = vpop.f32.mrf.mxu0
        %v645 = vadd.f32 0.0, %v644
        %v646 = vpop.f32.mrf.mxu0
        %647 = vdwg.mxu0
        %v648 = vadd.f32 %v566, %v645
        %s649 = scalar_lea.vmem %s1, 128
        %v650 = vld [vmem:[%s649] sm:$0xff]
        %v651 = vld [vmem:[%s649 + $0x8] sm:$0xff]
        %v652 = vld [vmem:[%s649 + $0x10] sm:$0xff]
        %v653 = vld [vmem:[%s649 + $0x18] sm:$0xff]
        %v654 = vrot.slane %v323, 4
        %v655 = vrot.slane %v324, 4
        %v656 = vsel %vm322, %v654, %v655
        %v657 = vsel %vm340, %v656, 0
        %659 = vmatprep.subr.mxu0 0.0
        %660 = vmatpush1.msra.mxu0 0.0
        %661 = vmatprep.subr.mxu0 0.0
        %662 = vmatpush1.msra.mxu0 0.0
        %663 = vmatprep.subr.mxu0 0.0
        %664 = vmatpush1.msra.mxu0 0.0
        %665 = vmatprep.subr.mxu0 0.0
        %666 = vmatpush1.msra.mxu0 0.0
        %667 = vmatprep.subr.mxu0 0.0
        %668 = vmatpush1.msra.mxu0 0.0
        %669 = vmatprep.subr.mxu0 0.0
        %670 = vmatpush1.msra.mxu0 0.0
        %671 = vmatprep.subr.mxu0 0.0
        %672 = vmatpush1.msra.mxu0 0.0
        %673 = vmatprep.subr.mxu0 0.0
        %674 = vmatpush1.msra.mxu0 0.0
        %675 = vmatprep.subr.mxu0 0.0
        %676 = vmatpush1.msra.mxu0 0.0
        %677 = vmatprep.subr.mxu0 0.0
        %678 = vmatpush1.msra.mxu0 0.0
        %679 = vmatprep.subr.mxu0 0.0
        %680 = vmatpush1.msra.mxu0 0.0
        %681 = vmatprep.subr.mxu0 0.0
        %682 = vmatpush1.msra.mxu0 0.0
        %683 = vmatprep.subr.mxu0 0.0
        %684 = vmatpush1.msra.mxu0 %v653
        %685 = vmatprep.subr.mxu0 0.0
        %686 = vmatpush1.msra.mxu0 %v652
        %687 = vmatprep.subr.mxu0 0.0
        %688 = vmatpush1.msra.mxu0 %v651
        %689 = vmatprep.subr.mxu0 0.0
        %690 = vmatpush1.msra.mxu0 %v650
        %691 = vmatprep.subr.mxu0 0.0
        %692 = vmatpush2.msra.mxu0 0.0
        %693 = vmatprep.subr.mxu0 0.0
        %694 = vmatpush2.msra.mxu0 0.0
        %695 = vmatprep.subr.mxu0 0.0
        %696 = vmatpush2.msra.mxu0 0.0
        %697 = vmatprep.subr.mxu0 0.0
        %698 = vmatpush2.msra.mxu0 0.0
        %699 = vmatprep.subr.mxu0 0.0
        %700 = vmatpush2.msra.mxu0 0.0
        %701 = vmatprep.subr.mxu0 0.0
        %702 = vmatpush2.msra.mxu0 0.0
        %703 = vmatprep.subr.mxu0 0.0
        %704 = vmatpush2.msra.mxu0 0.0
        %705 = vmatprep.subr.mxu0 0.0
        %706 = vmatpush2.msra.mxu0 0.0
        %707 = vmatprep.subr.mxu0 0.0
        %708 = vmatpush2.msra.mxu0 0.0
        %709 = vmatprep.subr.mxu0 0.0
        %710 = vmatpush2.msra.mxu0 0.0
        %711 = vmatprep.subr.mxu0 0.0
        %712 = vmatpush2.msra.mxu0 0.0
        %713 = vmatprep.subr.mxu0 0.0
        %714 = vmatpush2.msra.mxu0 0.0
        %715 = vmatprep.subr.mxu0 0.0
        %716 = vmatpush2.msra.mxu0 0.0
        %717 = vmatprep.subr.mxu0 0.0
        %718 = vmatpush2.msra.mxu0 0.0
        %719 = vmatprep.subr.mxu0 0.0
        %720 = vmatpush2.msra.mxu0 0.0
        %721 = vmatprep.subr.mxu0 0.0
        %722 = vmatpush2.msra.mxu0 0.0
        %723 = vmatprep.mubr.f32.mxu0 0.0
        %724 = vmatmul.mubr.f32.gmra.mxu0 %v657
        %v725 = vpop.f32.mrf.mxu0
        %v726 = vadd.f32 0.0, %v725
        %v727 = vpop.f32.mrf.mxu0
        %728 = vdwg.mxu0
        %v729 = vadd.f32 %v648, %v726
        %s730 = scalar_lea.vmem %s1, 160
        %v731 = vld [vmem:[%s730] sm:$0xff]
        %v732 = vld [vmem:[%s730 + $0x8] sm:$0xff]
        %v733 = vld [vmem:[%s730 + $0x10] sm:$0xff]
        %v734 = vld [vmem:[%s730 + $0x18] sm:$0xff]
        %vm735 = vcmask 1042432
        %v736 = vrot.slane %v323, 5
        %v737 = vrot.slane %v324, 5
        %v738 = vsel %vm735, %v736, %v737
        %v739 = vsel %vm340, %v738, 0
        %741 = vmatprep.subr.mxu0 0.0
        %742 = vmatpush1.msra.mxu0 0.0
        %743 = vmatprep.subr.mxu0 0.0
        %744 = vmatpush1.msra.mxu0 0.0
        %745 = vmatprep.subr.mxu0 0.0
        %746 = vmatpush1.msra.mxu0 0.0
        %747 = vmatprep.subr.mxu0 0.0
        %748 = vmatpush1.msra.mxu0 0.0
        %749 = vmatprep.subr.mxu0 0.0
        %750 = vmatpush1.msra.mxu0 0.0
        %751 = vmatprep.subr.mxu0 0.0
        %752 = vmatpush1.msra.mxu0 0.0
        %753 = vmatprep.subr.mxu0 0.0
        %754 = vmatpush1.msra.mxu0 0.0
        %755 = vmatprep.subr.mxu0 0.0
        %756 = vmatpush1.msra.mxu0 0.0
        %757 = vmatprep.subr.mxu0 0.0
        %758 = vmatpush1.msra.mxu0 0.0
        %759 = vmatprep.subr.mxu0 0.0
        %760 = vmatpush1.msra.mxu0 0.0
        %761 = vmatprep.subr.mxu0 0.0
        %762 = vmatpush1.msra.mxu0 0.0
        %763 = vmatprep.subr.mxu0 0.0
        %764 = vmatpush1.msra.mxu0 0.0
        %765 = vmatprep.subr.mxu0 0.0
        %766 = vmatpush1.msra.mxu0 %v734
        %767 = vmatprep.subr.mxu0 0.0
        %768 = vmatpush1.msra.mxu0 %v733
        %769 = vmatprep.subr.mxu0 0.0
        %770 = vmatpush1.msra.mxu0 %v732
        %771 = vmatprep.subr.mxu0 0.0
        %772 = vmatpush1.msra.mxu0 %v731
        %773 = vmatprep.subr.mxu0 0.0
        %774 = vmatpush2.msra.mxu0 0.0
        %775 = vmatprep.subr.mxu0 0.0
        %776 = vmatpush2.msra.mxu0 0.0
        %777 = vmatprep.subr.mxu0 0.0
        %778 = vmatpush2.msra.mxu0 0.0
        %779 = vmatprep.subr.mxu0 0.0
        %780 = vmatpush2.msra.mxu0 0.0
        %781 = vmatprep.subr.mxu0 0.0
        %782 = vmatpush2.msra.mxu0 0.0
        %783 = vmatprep.subr.mxu0 0.0
        %784 = vmatpush2.msra.mxu0 0.0
        %785 = vmatprep.subr.mxu0 0.0
        %786 = vmatpush2.msra.mxu0 0.0
        %787 = vmatprep.subr.mxu0 0.0
        %788 = vmatpush2.msra.mxu0 0.0
        %789 = vmatprep.subr.mxu0 0.0
        %790 = vmatpush2.msra.mxu0 0.0
        %791 = vmatprep.subr.mxu0 0.0
        %792 = vmatpush2.msra.mxu0 0.0
        %793 = vmatprep.subr.mxu0 0.0
        %794 = vmatpush2.msra.mxu0 0.0
        %795 = vmatprep.subr.mxu0 0.0
        %796 = vmatpush2.msra.mxu0 0.0
        %797 = vmatprep.subr.mxu0 0.0
        %798 = vmatpush2.msra.mxu0 0.0
        %799 = vmatprep.subr.mxu0 0.0
        %800 = vmatpush2.msra.mxu0 0.0
        %801 = vmatprep.subr.mxu0 0.0
        %802 = vmatpush2.msra.mxu0 0.0
        %803 = vmatprep.subr.mxu0 0.0
        %804 = vmatpush2.msra.mxu0 0.0
        %805 = vmatprep.mubr.f32.mxu0 0.0
        %806 = vmatmul.mubr.f32.gmra.mxu0 %v739
        %v807 = vpop.f32.mrf.mxu0
        %v808 = vadd.f32 0.0, %v807
        %v809 = vpop.f32.mrf.mxu0
        %810 = vdwg.mxu0
        %v811 = vadd.f32 %v729, %v808
        %s812 = scalar_lea.vmem %s1, 192
        %v813 = vld [vmem:[%s812] sm:$0xff]
        %v814 = vld [vmem:[%s812 + $0x8] sm:$0xff]
        %v815 = vld [vmem:[%s812 + $0x10] sm:$0xff]
        %v816 = vld [vmem:[%s812 + $0x18] sm:$0xff]
        %vm817 = vcmask 1041408
        %v818 = vrot.slane %v323, 6
        %v819 = vrot.slane %v324, 6
        %v820 = vsel %vm817, %v818, %v819
        %v821 = vsel %vm340, %v820, 0
        %823 = vmatprep.subr.mxu0 0.0
        %824 = vmatpush1.msra.mxu0 0.0
        %825 = vmatprep.subr.mxu0 0.0
        %826 = vmatpush1.msra.mxu0 0.0
        %827 = vmatprep.subr.mxu0 0.0
        %828 = vmatpush1.msra.mxu0 0.0
        %829 = vmatprep.subr.mxu0 0.0
        %830 = vmatpush1.msra.mxu0 0.0
        %831 = vmatprep.subr.mxu0 0.0
        %832 = vmatpush1.msra.mxu0 0.0
        %833 = vmatprep.subr.mxu0 0.0
        %834 = vmatpush1.msra.mxu0 0.0
        %835 = vmatprep.subr.mxu0 0.0
        %836 = vmatpush1.msra.mxu0 0.0
        %837 = vmatprep.subr.mxu0 0.0
        %838 = vmatpush1.msra.mxu0 0.0
        %839 = vmatprep.subr.mxu0 0.0
        %840 = vmatpush1.msra.mxu0 0.0
        %841 = vmatprep.subr.mxu0 0.0
        %842 = vmatpush1.msra.mxu0 0.0
        %843 = vmatprep.subr.mxu0 0.0
        %844 = vmatpush1.msra.mxu0 0.0
        %845 = vmatprep.subr.mxu0 0.0
        %846 = vmatpush1.msra.mxu0 0.0
        %847 = vmatprep.subr.mxu0 0.0
        %848 = vmatpush1.msra.mxu0 %v816
        %849 = vmatprep.subr.mxu0 0.0
        %850 = vmatpush1.msra.mxu0 %v815
        %851 = vmatprep.subr.mxu0 0.0
        %852 = vmatpush1.msra.mxu0 %v814
        %853 = vmatprep.subr.mxu0 0.0
        %854 = vmatpush1.msra.mxu0 %v813
        %855 = vmatprep.subr.mxu0 0.0
        %856 = vmatpush2.msra.mxu0 0.0
        %857 = vmatprep.subr.mxu0 0.0
        %858 = vmatpush2.msra.mxu0 0.0
        %859 = vmatprep.subr.mxu0 0.0
        %860 = vmatpush2.msra.mxu0 0.0
        %861 = vmatprep.subr.mxu0 0.0
        %862 = vmatpush2.msra.mxu0 0.0
        %863 = vmatprep.subr.mxu0 0.0
        %864 = vmatpush2.msra.mxu0 0.0
        %865 = vmatprep.subr.mxu0 0.0
        %866 = vmatpush2.msra.mxu0 0.0
        %867 = vmatprep.subr.mxu0 0.0
        %868 = vmatpush2.msra.mxu0 0.0
        %869 = vmatprep.subr.mxu0 0.0
        %870 = vmatpush2.msra.mxu0 0.0
        %871 = vmatprep.subr.mxu0 0.0
        %872 = vmatpush2.msra.mxu0 0.0
        %873 = vmatprep.subr.mxu0 0.0
        %874 = vmatpush2.msra.mxu0 0.0
        %875 = vmatprep.subr.mxu0 0.0
        %876 = vmatpush2.msra.mxu0 0.0
        %877 = vmatprep.subr.mxu0 0.0
        %878 = vmatpush2.msra.mxu0 0.0
        %879 = vmatprep.subr.mxu0 0.0
        %880 = vmatpush2.msra.mxu0 0.0
        %881 = vmatprep.subr.mxu0 0.0
        %882 = vmatpush2.msra.mxu0 0.0
        %883 = vmatprep.subr.mxu0 0.0
        %884 = vmatpush2.msra.mxu0 0.0
        %885 = vmatprep.subr.mxu0 0.0
        %886 = vmatpush2.msra.mxu0 0.0
        %887 = vmatprep.mubr.f32.mxu0 0.0
        %888 = vmatmul.mubr.f32.gmra.mxu0 %v821
        %v889 = vpop.f32.mrf.mxu0
        %v890 = vadd.f32 0.0, %v889
        %v891 = vpop.f32.mrf.mxu0
        %892 = vdwg.mxu0
        %v893 = vadd.f32 %v811, %v890
        %s894 = scalar_lea.vmem %s1, 224
        %v895 = vld [vmem:[%s894] sm:$0xff]
        %v896 = vld [vmem:[%s894 + $0x8] sm:$0xff]
        %v897 = vld [vmem:[%s894 + $0x10] sm:$0xff]
        %v898 = vld [vmem:[%s894 + $0x18] sm:$0xff]
        %vm899 = vcmask 1040384
        %v900 = vrot.slane %v323, 7
        %v901 = vrot.slane %v324, 7
        %v902 = vsel %vm899, %v900, %v901
        %v903 = vsel %vm340, %v902, 0
        %905 = vmatprep.subr.mxu0 0.0
        %906 = vmatpush1.msra.mxu0 0.0
        %907 = vmatprep.subr.mxu0 0.0
        %908 = vmatpush1.msra.mxu0 0.0
        %909 = vmatprep.subr.mxu0 0.0
        %910 = vmatpush1.msra.mxu0 0.0
        %911 = vmatprep.subr.mxu0 0.0
        %912 = vmatpush1.msra.mxu0 0.0
        %913 = vmatprep.subr.mxu0 0.0
        %914 = vmatpush1.msra.mxu0 0.0
        %915 = vmatprep.subr.mxu0 0.0
        %916 = vmatpush1.msra.mxu0 0.0
        %917 = vmatprep.subr.mxu0 0.0
        %918 = vmatpush1.msra.mxu0 0.0
        %919 = vmatprep.subr.mxu0 0.0
        %920 = vmatpush1.msra.mxu0 0.0
        %921 = vmatprep.subr.mxu0 0.0
        %922 = vmatpush1.msra.mxu0 0.0
        %923 = vmatprep.subr.mxu0 0.0
        %924 = vmatpush1.msra.mxu0 0.0
        %925 = vmatprep.subr.mxu0 0.0
        %926 = vmatpush1.msra.mxu0 0.0
        %927 = vmatprep.subr.mxu0 0.0
        %928 = vmatpush1.msra.mxu0 0.0
        %929 = vmatprep.subr.mxu0 0.0
        %930 = vmatpush1.msra.mxu0 %v898
        %931 = vmatprep.subr.mxu0 0.0
        %932 = vmatpush1.msra.mxu0 %v897
        %933 = vmatprep.subr.mxu0 0.0
        %934 = vmatpush1.msra.mxu0 %v896
        %935 = vmatprep.subr.mxu0 0.0
        %936 = vmatpush1.msra.mxu0 %v895
        %937 = vmatprep.subr.mxu0 0.0
        %938 = vmatpush2.msra.mxu0 0.0
        %939 = vmatprep.subr.mxu0 0.0
        %940 = vmatpush2.msra.mxu0 0.0
        %941 = vmatprep.subr.mxu0 0.0
        %942 = vmatpush2.msra.mxu0 0.0
        %943 = vmatprep.subr.mxu0 0.0
        %944 = vmatpush2.msra.mxu0 0.0
        %945 = vmatprep.subr.mxu0 0.0
        %946 = vmatpush2.msra.mxu0 0.0
        %947 = vmatprep.subr.mxu0 0.0
        %948 = vmatpush2.msra.mxu0 0.0
        %949 = vmatprep.subr.mxu0 0.0
        %950 = vmatpush2.msra.mxu0 0.0
        %951 = vmatprep.subr.mxu0 0.0
        %952 = vmatpush2.msra.mxu0 0.0
        %953 = vmatprep.subr.mxu0 0.0
        %954 = vmatpush2.msra.mxu0 0.0
        %955 = vmatprep.subr.mxu0 0.0
        %956 = vmatpush2.msra.mxu0 0.0
        %957 = vmatprep.subr.mxu0 0.0
        %958 = vmatpush2.msra.mxu0 0.0
        %959 = vmatprep.subr.mxu0 0.0
        %960 = vmatpush2.msra.mxu0 0.0
        %961 = vmatprep.subr.mxu0 0.0
        %962 = vmatpush2.msra.mxu0 0.0
        %963 = vmatprep.subr.mxu0 0.0
        %964 = vmatpush2.msra.mxu0 0.0
        %965 = vmatprep.subr.mxu0 0.0
        %966 = vmatpush2.msra.mxu0 0.0
        %967 = vmatprep.subr.mxu0 0.0
        %968 = vmatpush2.msra.mxu0 0.0
        %969 = vmatprep.mubr.f32.mxu0 0.0
        %970 = vmatmul.mubr.f32.gmra.mxu0 %v903
        %v971 = vpop.f32.mrf.mxu0
        %v972 = vadd.f32 0.0, %v971
        %v973 = vpop.f32.mrf.mxu0
        %974 = vdwg.mxu0
        %v975 = vadd.f32 %v893, %v972
        %s976 = scalar_lea.vmem %s1, 256
        %v977 = vld [vmem:[%s976] sm:$0xff]
        %v978 = vld [vmem:[%s976 + $0x8] sm:$0xff]
        %v979 = vld [vmem:[%s976 + $0x10] sm:$0xff]
        %v980 = vld [vmem:[%s976 + $0x18] sm:$0xff]
        %v981 = vsel %vm340, %v324, 0
        %983 = vmatprep.subr.mxu0 0.0
        %984 = vmatpush1.msra.mxu0 0.0
        %985 = vmatprep.subr.mxu0 0.0
        %986 = vmatpush1.msra.mxu0 0.0
        %987 = vmatprep.subr.mxu0 0.0
        %988 = vmatpush1.msra.mxu0 0.0
        %989 = vmatprep.subr.mxu0 0.0
        %990 = vmatpush1.msra.mxu0 0.0
        %991 = vmatprep.subr.mxu0 0.0
        %992 = vmatpush1.msra.mxu0 0.0
        %993 = vmatprep.subr.mxu0 0.0
        %994 = vmatpush1.msra.mxu0 0.0
        %995 = vmatprep.subr.mxu0 0.0
        %996 = vmatpush1.msra.mxu0 0.0
        %997 = vmatprep.subr.mxu0 0.0
        %998 = vmatpush1.msra.mxu0 0.0
        %999 = vmatprep.subr.mxu0 0.0
        %1000 = vmatpush1.msra.mxu0 0.0
        %1001 = vmatprep.subr.mxu0 0.0
        %1002 = vmatpush1.msra.mxu0 0.0
        %1003 = vmatprep.subr.mxu0 0.0
        %1004 = vmatpush1.msra.mxu0 0.0
        %1005 = vmatprep.subr.mxu0 0.0
        %1006 = vmatpush1.msra.mxu0 0.0
        %1007 = vmatprep.subr.mxu0 0.0
        %1008 = vmatpush1.msra.mxu0 %v980
        %1009 = vmatprep.subr.mxu0 0.0
        %1010 = vmatpush1.msra.mxu0 %v979
        %1011 = vmatprep.subr.mxu0 0.0
        %1012 = vmatpush1.msra.mxu0 %v978
        %1013 = vmatprep.subr.mxu0 0.0
        %1014 = vmatpush1.msra.mxu0 %v977
        %1015 = vmatprep.subr.mxu0 0.0
        %1016 = vmatpush2.msra.mxu0 0.0
        %1017 = vmatprep.subr.mxu0 0.0
        %1018 = vmatpush2.msra.mxu0 0.0
        %1019 = vmatprep.subr.mxu0 0.0
        %1020 = vmatpush2.msra.mxu0 0.0
        %1021 = vmatprep.subr.mxu0 0.0
        %1022 = vmatpush2.msra.mxu0 0.0
        %1023 = vmatprep.subr.mxu0 0.0
        %1024 = vmatpush2.msra.mxu0 0.0
        %1025 = vmatprep.subr.mxu0 0.0
        %1026 = vmatpush2.msra.mxu0 0.0
        %1027 = vmatprep.subr.mxu0 0.0
        %1028 = vmatpush2.msra.mxu0 0.0
        %1029 = vmatprep.subr.mxu0 0.0
        %1030 = vmatpush2.msra.mxu0 0.0
        %1031 = vmatprep.subr.mxu0 0.0
        %1032 = vmatpush2.msra.mxu0 0.0
        %1033 = vmatprep.subr.mxu0 0.0
        %1034 = vmatpush2.msra.mxu0 0.0
        %1035 = vmatprep.subr.mxu0 0.0
        %1036 = vmatpush2.msra.mxu0 0.0
        %1037 = vmatprep.subr.mxu0 0.0
        %1038 = vmatpush2.msra.mxu0 0.0
        %1039 = vmatprep.subr.mxu0 0.0
        %1040 = vmatpush2.msra.mxu0 0.0
        %1041 = vmatprep.subr.mxu0 0.0
        %1042 = vmatpush2.msra.mxu0 0.0
        %1043 = vmatprep.subr.mxu0 0.0
        %1044 = vmatpush2.msra.mxu0 0.0
        %1045 = vmatprep.subr.mxu0 0.0
        %1046 = vmatpush2.msra.mxu0 0.0
        %1047 = vmatprep.mubr.f32.mxu0 0.0
        %1048 = vmatmul.mubr.f32.gmra.mxu0 %v981
        %v1049 = vpop.f32.mrf.mxu0
        %v1050 = vadd.f32 0.0, %v1049
        %v1051 = vpop.f32.mrf.mxu0
        %1052 = vdwg.mxu0
        %v1053 = vadd.f32 %v975, %v1050
        %v1054 = vld [vmem:[%s2] sm:$0x1]
        %v1056 = vlaneseq
        %v1057 = vshrl.u32 %v1056, 7
        %v1058 = vsub.s32 0, %v1057
        %v1059 = vrot.slane %v1054, %v1058
        %v1061 = vadd.f32 %v1053, %v1059
        %v1062 = vmax.f32 %v1061, 0.0
        %v1063 = vld [vmem:[%s3] sm:$0xff]
        %v1064 = vld [vmem:[%s3 + $0x8] sm:$0xff]
        %v1065 = vld [vmem:[%s3 + $0x10] sm:$0xff]
        %v1066 = vld [vmem:[%s3 + $0x18] sm:$0xff]
        %v1067 = vld [vmem:[%s3 + $0x20] sm:$0xff]
        %v1068 = vld [vmem:[%s3 + $0x28] sm:$0xff]
        %v1069 = vld [vmem:[%s3 + $0x30] sm:$0xff]
        %v1070 = vld [vmem:[%s3 + $0x38] sm:$0xff]
        %v1071 = vld [vmem:[%s4] sm:$0x1]
        %v1073 = vlaneseq
        %v1074 = vshrl.u32 %v1073, 7
        %v1075 = vsub.s32 0, %v1074
        %v1076 = vrot.slane %v1071, %v1075
        %vm1078 = vcmask 523264
        %v1080 = vsel %vm1078, %v1062, 0
        %1082 = vmatprep.subr.mxu0 0.0
        %1083 = vmatpush1.msra.mxu0 0.0
        %1084 = vmatprep.subr.mxu0 0.0
        %1085 = vmatpush1.msra.mxu0 0.0
        %1086 = vmatprep.subr.mxu0 0.0
        %1087 = vmatpush1.msra.mxu0 0.0
        %1088 = vmatprep.subr.mxu0 0.0
        %1089 = vmatpush1.msra.mxu0 0.0
        %1090 = vmatprep.subr.mxu0 0.0
        %1091 = vmatpush1.msra.mxu0 0.0
        %1092 = vmatprep.subr.mxu0 0.0
        %1093 = vmatpush1.msra.mxu0 0.0
        %1094 = vmatprep.subr.mxu0 0.0
        %1095 = vmatpush1.msra.mxu0 0.0
        %1096 = vmatprep.subr.mxu0 0.0
        %1097 = vmatpush1.msra.mxu0 0.0
        %1098 = vmatprep.subr.mxu0 0.0
        %1099 = vmatpush1.msra.mxu0 %v1070
        %1100 = vmatprep.subr.mxu0 0.0
        %1101 = vmatpush1.msra.mxu0 %v1069
        %1102 = vmatprep.subr.mxu0 0.0
        %1103 = vmatpush1.msra.mxu0 %v1068
        %1104 = vmatprep.subr.mxu0 0.0
        %1105 = vmatpush1.msra.mxu0 %v1067
        %1106 = vmatprep.subr.mxu0 0.0
        %1107 = vmatpush1.msra.mxu0 %v1066
        %1108 = vmatprep.subr.mxu0 0.0
        %1109 = vmatpush1.msra.mxu0 %v1065
        %1110 = vmatprep.subr.mxu0 0.0
        %1111 = vmatpush1.msra.mxu0 %v1064
        %1112 = vmatprep.subr.mxu0 0.0
        %1113 = vmatpush1.msra.mxu0 %v1063
        %1114 = vmatprep.subr.mxu0 0.0
        %1115 = vmatpush2.msra.mxu0 0.0
        %1116 = vmatprep.subr.mxu0 0.0
        %1117 = vmatpush2.msra.mxu0 0.0
        %1118 = vmatprep.subr.mxu0 0.0
        %1119 = vmatpush2.msra.mxu0 0.0
        %1120 = vmatprep.subr.mxu0 0.0
        %1121 = vmatpush2.msra.mxu0 0.0
        %1122 = vmatprep.subr.mxu0 0.0
        %1123 = vmatpush2.msra.mxu0 0.0
        %1124 = vmatprep.subr.mxu0 0.0
        %1125 = vmatpush2.msra.mxu0 0.0
        %1126 = vmatprep.subr.mxu0 0.0
        %1127 = vmatpush2.msra.mxu0 0.0
        %1128 = vmatprep.subr.mxu0 0.0
        %1129 = vmatpush2.msra.mxu0 0.0
        %1130 = vmatprep.subr.mxu0 0.0
        %1131 = vmatpush2.msra.mxu0 0.0
        %1132 = vmatprep.subr.mxu0 0.0
        %1133 = vmatpush2.msra.mxu0 0.0
        %1134 = vmatprep.subr.mxu0 0.0
        %1135 = vmatpush2.msra.mxu0 0.0
        %1136 = vmatprep.subr.mxu0 0.0
        %1137 = vmatpush2.msra.mxu0 0.0
        %1138 = vmatprep.subr.mxu0 0.0
        %1139 = vmatpush2.msra.mxu0 0.0
        %1140 = vmatprep.subr.mxu0 0.0
        %1141 = vmatpush2.msra.mxu0 0.0
        %1142 = vmatprep.subr.mxu0 0.0
        %1143 = vmatpush2.msra.mxu0 0.0
        %1144 = vmatprep.subr.mxu0 0.0
        %1145 = vmatpush2.msra.mxu0 0.0
        %1146 = vmatprep.mubr.f32.mxu0 0.0
        %1147 = vmatmul.mubr.f32.gmra.mxu0 %v1080
        %v1148 = vpop.f32.mrf.mxu0
        %v1149 = vadd.f32 %v1076, %v1148
        %v1150 = vpop.f32.mrf.mxu0
        %1151 = vdwg.mxu0
        %v1152 = vadd.f32 %v1149, %v318
        %v1153 = vsel %vm340, %v1152, 0.0
        %1154 = vadd.xlane.f32.xlu0 %v1153
        %v1155 = vpop.xlane.xlu0 %1154
        %v1156 = vrcp.pop 32.0
        %v1157 = vmul.f32 %v1155, %v1156
        %v1158 = vsub.f32 %v1152, %v1157
        %v1159 = vmul.f32 %v1158, %v1158
        %v1160 = vsel %vm340, %v1159, 0.0
        %1161 = vadd.xlane.f32.xlu0 %v1160
        %v1162 = vpop.xlane.xlu0 %1161
        %v1163 = vmul.f32 %v1162, %v1156
        %v1164 = vadd.f32 %v1163, 1e-05
        %v1165 = vrsqrt.pop %v1164
        %v1166 = vmul.f32 %v1158, %v1165
        %v1167 = vld [vmem:[%s5] sm:$0x1]
        %v1169 = vlaneseq
        %v1170 = vshrl.u32 %v1169, 7
        %v1171 = vsub.s32 0, %v1170
        %v1172 = vrot.slane %v1167, %v1171
        %v1174 = vmul.f32 %v1166, %v1172
        %v1175 = vld [vmem:[%s6] sm:$0x1]
        %v1177 = vlaneseq
        %v1178 = vshrl.u32 %v1177, 7
        %v1179 = vsub.s32 0, %v1178
        %v1180 = vrot.slane %v1175, %v1179
        %v1182 = vadd.f32 %v1174, %v1180
        %v1183 = vld [vmem:[%s317] sm:$0xff]
        %1185 = vset.pattern.permute.xlu0 0
        %1186 = vperm.xlu0 %1185, %v1183
        %v1187 = vpop.permute.xlu0 %1186
        %v1189 = vmul.f32 %v1182, %v1187
        %1190 = vst.msk [vmem:[%s309] sm:$0xff] %vm340, %v1189
        %s1191 = sand.u32 %s208, 1
        %s1192 = scalar_lea.sflag [#allocation3], %s1191
        %s1193 = sand.u32 %s208, 1
        %s1194 = smul.addr %s1193, 8
        %s1195 = scalar_lea.vmem [#allocation2], %s1194
        // Predicated region
        $region53: #{fft_block_forward.7} parent=51 // pred_check
          %p1196 = pneg %p218
        $region54: #{fft_block_forward.7} parent=51 // pred_check_branch
          %1198 = sbr.rel (%p1196) target = $region56
        $region55: #{fft_block_forward.7} parent=51 // pred_region
          %s1200 = ssub.s32 128, 128
          %1201 = vsyncadd %s1192, %s1200
          %s1202 = smul.addr %s22, 128
          %s1203 = scalar_lea.hbm %s8, %s1202
          %s1205 = sshll.u32 %s1195, 4
          %s1206 = int_to_ptr.vmem [resolvable:$true] %s1205
          %1208 = dma.vmem_to_hbm [thread:$0]  %s1206, 128, %s1203, %s1192
        $region56: #{fft_block_forward.7} parent=51 // pred_fallthru
          _
      $region52: #{fft_block_forward.7} parent=5 // pred_fallthru
        _
      %p1209 = scmp.le.s32.totalorder 2, %s17
      // Predicated region
      $region57: #{fft_block_forward.7} parent=5 // pred_check
        %p1210 = pneg %p1209
      $region58: #{fft_block_forward.7} parent=5 // pred_check_branch
        %1212 = sbr.rel (%p1210) target = $region60
      $region59: #{fft_block_forward.7} parent=5 // pred_region
        %s1213 = ssub.s32 %s17, 2
        // Predicated region
        $region61: #{fft_block_forward.7} parent=59 // pred_check
          %p1214 = pneg %p224
        $region62: #{fft_block_forward.7} parent=59 // pred_check_branch
          %1216 = sbr.rel (%p1214) target = $region64
        $region63: #{fft_block_forward.7} parent=59 // pred_region
          %s1217 = sand.u32 %s209, 1
          %s1218 = scalar_lea.sflag [#allocation3], %s1217
          %s1219 = sand.u32 %s209, 1
          %s1220 = smul.addr %s1219, 8
          %s1221 = scalar_lea.vmem [#allocation2], %s1220
          %1222 = dma.done %s1218, 128
        $region64: #{fft_block_forward.7} parent=59 // pred_fallthru
          _
      $region60: #{fft_block_forward.7} parent=5 // pred_fallthru
        _
    $region6: #{fft_block_forward.7} parent=1 // loop_footer
      %s21 = sadd.s32 1, %s17
    $region7: #{fft_block_forward.7} parent=1 // loop_footer_branch
      %16 = sbr.rel target = $region3
    $region8: #{fft_block_forward.7} parent=1 // loop_exit
      _
    %1223 = vsyncpa [#allocation3], 1
    %s1224 = scalar_lea.sflag [#allocation3], 1
    %1225 = vsyncpa %s1224, 1

</llo_original>
